<compile_context>
chip_gen: v7x
topology: tpu7x:2x2x1
jax: 0.10.0
libtpu: 0.0.40
codegen_flags: <defaults>
</compile_context>

<pallas_src>
import functools

import numpy as np
import jax
import jax.numpy as jnp
from jax.experimental import pallas as pl
from jax.experimental.pallas import tpu as pltpu


def encoder_layer_kernel(
    x_ref, mask_ref,
    wqkv_ref, bqkv_ref,
    wo_ref, bo_ref, ln1g_ref, ln1b_ref,
    w1_ref, b1_ref, w2_ref, b2_ref, ln2g_ref, ln2b_ref,
    *out_refs,
    bt, n_heads, d_k, d_v, eps=1e-5, compute_dtype=jnp.float32,
    mask_is_key=False, with_attn=True,
):
    if with_attn:
        out_ref, attn_ref = out_refs
    else:
        (out_ref,) = out_refs
        attn_ref = None

    S = x_ref.shape[1]
    D = x_ref.shape[2]
    rows = bt * S
    H = n_heads

    # Fold the batch tile onto the sublane / M axis for every dense phase.
    x = x_ref[...].reshape(rows, D)                              # (Bt*S, D) f32
    xc = x.astype(compute_dtype)

    # --- fused Q|K|V projection: one wide MXU pass instead of three ---
    qkv = jnp.dot(xc, wqkv_ref[...],
                  preferred_element_type=jnp.float32) + bqkv_ref[...]
    q_off = 0
    k_off = H * d_k
    v_off = 2 * H * d_k

    # Mask hoisted out of the head loop. Hard-replace semantics (torch masked_fill_).
    if mask_is_key:
        mask_b = mask_ref[...] > 0.0          # (Bt, 1, S): broadcasts over query axis
    else:
        mask_b = mask_ref[...] > 0.0          # (Bt, S, S)

    scale = jnp.float32(1.0 / np.sqrt(d_k))
    neg_inf = jnp.float32(-1e9)

    # --- attention: head loop (H is small), every contraction batched over Bt ---
    # TODO(synk): a fully head-batched multi-batch-dim einsum would also remove the
    # per-head lane slices of qkv once that dot_general lowering is assured on Mosaic.
    acc = jnp.zeros((rows, D), jnp.float32)
    for h in range(H):
        qh = qkv[:, q_off + h * d_k: q_off + (h + 1) * d_k].reshape(bt, S, d_k)
        kh = qkv[:, k_off + h * d_k: k_off + (h + 1) * d_k].reshape(bt, S, d_k)
        vh = qkv[:, v_off + h * d_v: v_off + (h + 1) * d_v].reshape(bt, S, d_v)

        # No kh.T — einsum contracts the last dims natively on the MXU.
        scores = jnp.einsum('bqd,bkd->bqk',
                            qh.astype(compute_dtype), kh.astype(compute_dtype),
                            preferred_element_type=jnp.float32) * scale
        scores = jnp.where(mask_b, neg_inf, scores)
        m = jnp.max(scores, axis=-1, keepdims=True)
        e = jnp.exp(scores - m)
        # TODO(synk): pl.reciprocal(sum, approx=True) moves the divide to the EUP slot
        # (~2^-12 rel error) if the caller can tolerate it.
        attn = e / jnp.sum(e, axis=-1, keepdims=True)
        if with_attn:
            attn_ref[:, h, :, :] = attn.astype(attn_ref.dtype)

        ctx = jnp.einsum('bqk,bkd->bqd',
                         attn.astype(compute_dtype), vh.astype(compute_dtype),
                         preferred_element_type=jnp.float32)          # (Bt, S, d_v)
        wo_h = wo_ref[h * d_v:(h + 1) * d_v, :]                        # (d_v, D)
        acc = acc + jnp.dot(ctx.reshape(rows, d_v).astype(compute_dtype), wo_h,
                            preferred_element_type=jnp.float32)

    # --- residual + LayerNorm 1 (no VMEM scratch round-trip; f32 VPU math) ---
    y = acc + bo_ref[...] + x
    mu = jnp.mean(y, axis=-1, keepdims=True)
    var = jnp.mean((y - mu) ** 2, axis=-1, keepdims=True)
    y = (y - mu) * jax.lax.rsqrt(var + eps) * ln1g_ref[...] + ln1b_ref[...]

    # --- position-wise FFN (Conv1d kernel_size=1 == per-position linear) ---
    h1 = jnp.dot(y.astype(compute_dtype), w1_ref[...],
                 preferred_element_type=jnp.float32) + b1_ref[...]
    h1 = jnp.maximum(h1, 0.0)
    h2 = jnp.dot(h1.astype(compute_dtype), w2_ref[...],
                 preferred_element_type=jnp.float32) + b2_ref[...]
    z = h2 + y
    mu2 = jnp.mean(z, axis=-1, keepdims=True)
    var2 = jnp.mean((z - mu2) ** 2, axis=-1, keepdims=True)
    z = (z - mu2) * jax.lax.rsqrt(var2 + eps) * ln2g_ref[...] + ln2b_ref[...]

    out_ref[...] = z.reshape(bt, S, D)


def _vmem_capacity_bytes():
    try:
        cap = getattr(pltpu.get_tpu_info(), "vmem_capacity_bytes", None)
        if cap:
            return int(cap)
    except Exception:
        pass
    return 64 * 2 ** 20   # conservative fallback (v7x per-TC)


def _choose_batch_tile(B, S, target_rows):
    """Largest divisor of B such that bt*S stays near the MXU-friendly row target."""
    bt = max(1, min(B, max(1, target_rows // max(1, S))))
    while B % bt != 0:
        bt -= 1
    return bt


def encoder_layer(x, attn_mask, params, *, n_heads, d_k, d_v,
                  compute_dtype=jnp.float32, batch_tile=None,
                  return_attn=True, attn_dtype=jnp.float32, eps=1e-5):
    B, S, D = x.shape
    H = n_heads

    vmem_cap = _vmem_capacity_bytes()
    # Bigger folded-row targets on 128-MiB-VMEM parts (v5e/v6e); smaller on v7x (64 MiB/TC).
    target_rows = 256 if vmem_cap <= 64 * 2 ** 20 else 512
    bt = batch_tile if batch_tile is not None else _choose_batch_tile(B, S, target_rows)
    assert B % bt == 0, "batch tile must divide the batch"

    # attn_mask: (B, S) key-padding mask (>0 => masked key) or dense (B, S, S).
    mask_is_key = (attn_mask.ndim == 2)
    if mask_is_key:
        mask_arr = attn_mask.astype(jnp.float32).reshape(B, 1, S)
        mask_spec = pl.BlockSpec((bt, 1, S), lambda b: (b, 0, 0))
    else:
        mask_arr = attn_mask.astype(jnp.float32)
        mask_spec = pl.BlockSpec((bt, S, S), lambda b: (b, 0, 0))

    # Fuse the three projection weights/biases into one matmul operand.
    wqkv = jnp.concatenate([params["wq"], params["wk"], params["wv"]], axis=1)
    bqkv = jnp.concatenate([params["bq"], params["bk"], params["bv"]], axis=1)

    def w_cast(w):  # matmul weights may be downcast (bf16); bias/LN params stay f32
        return w.astype(compute_dtype)

    ordered = [
        w_cast(wqkv), bqkv.astype(jnp.float32),
        w_cast(params["wo"]), params["bo"],
        params["ln1_g"], params["ln1_b"],
        w_cast(params["w1"]), params["b1"],
        w_cast(params["w2"]), params["b2"],
        params["ln2_g"], params["ln2_b"],
    ]

    def const_spec(arr):
        # TODO(synk): pipeline_mode=pl.Buffered(1) on these grid-invariant weight blocks
        # would halve their VMEM residency (matters at production d_model/d_inner on v7x).
        nd = arr.ndim
        return pl.BlockSpec(arr.shape, lambda b, _n=nd: (0,) * _n)

    in_specs = [
        pl.BlockSpec((bt, S, D), lambda b: (b, 0, 0)),
        mask_spec,
    ] + [const_spec(a) for a in ordered]

    out_specs = [pl.BlockSpec((bt, S, D), lambda b: (b, 0, 0))]
    out_shape = [jax.ShapeDtypeStruct((B, S, D), jnp.float32)]
    if return_attn:
        out_specs.append(pl.BlockSpec((bt, H, S, S), lambda b: (b, 0, 0, 0)))
        out_shape.append(jax.ShapeDtypeStruct((B, H, S, S), attn_dtype))

    # Rough per-step VMEM estimate (x2 for BlockSpec double-buffering) -> scoped limit.
    mask_blk = 4 * (bt * S if mask_is_key else bt * S * S)
    attn_blk = (bt * H * S * S * jnp.dtype(attn_dtype).itemsize) if return_attn else 0
    blk_bytes = 4 * (2 * bt * S * D) + mask_blk + attn_blk
    wgt_bytes = sum(int(np.prod(a.shape)) * a.dtype.itemsize for a in ordered)
    inter_bytes = 4 * bt * S * (2 * H * d_k + H * d_v + 2 * D + S)
    est = 2 * blk_bytes + 2 * wgt_bytes + inter_bytes
    vmem_limit = int(min(max(32 * 2 ** 20, 3 * est), int(0.9 * vmem_cap)))

    kernel = functools.partial(
        encoder_layer_kernel, bt=bt, n_heads=H, d_k=d_k, d_v=d_v, eps=eps,
        compute_dtype=compute_dtype, mask_is_key=mask_is_key, with_attn=return_attn)

    # TODO(synk): on v7x use pltpu.CORE_PARALLEL (or pl.core_map) on this axis to split
    # the batch across the 2 TensorCores; plain "parallel" is a no-op for that.
    result = pl.pallas_call(
        kernel,
        grid=(B // bt,),
        in_specs=in_specs,
        out_specs=tuple(out_specs),
        out_shape=tuple(out_shape),
        compiler_params=pltpu.CompilerParams(
            dimension_semantics=("parallel",),
            vmem_limit_bytes=vmem_limit),
    )(x, mask_arr, *ordered)

    if return_attn:
        return result
    return result[0]


def encoder_layer_ref(x, attn_mask, params, *, n_heads, d_k, d_v, eps=1e-5):
    """Pure-JAX reference matching the PyTorch forward semantics."""
    B, S, D = x.shape
    q = x @ params["wq"] + params["bq"][0]
    k = x @ params["wk"] + params["bk"][0]
    v = x @ params["wv"] + params["bv"][0]
    q = q.reshape(B, S, n_heads, d_k).transpose(0, 2, 1, 3)
    k = k.reshape(B, S, n_heads, d_k).transpose(0, 2, 1, 3)
    v = v.reshape(B, S, n_heads, d_v).transpose(0, 2, 1, 3)
    scores = jnp.einsum("bhqd,bhkd->bhqk", q, k) / np.sqrt(d_k)
    mask = attn_mask[:, None, :, :] > 0
    scores = jnp.where(mask, -1e9, scores)
    attn = jax.nn.softmax(scores, axis=-1)
    ctx = jnp.einsum("bhqk,bhkd->bhqd", attn, v)
    ctx = ctx.transpose(0, 2, 1, 3).reshape(B, S, n_heads * d_v)
    out = ctx @ params["wo"] + params["bo"][0]
    y = out + x
    mu = y.mean(-1, keepdims=True)
    var = ((y - mu) ** 2).mean(-1, keepdims=True)
    y = (y - mu) / jnp.sqrt(var + eps) * params["ln1_g"][0] + params["ln1_b"][0]
    h1 = jnp.maximum(y @ params["w1"] + params["b1"][0], 0.0)
    h2 = h1 @ params["w2"] + params["b2"][0]
    z = h2 + y
    mu2 = z.mean(-1, keepdims=True)
    var2 = ((z - mu2) ** 2).mean(-1, keepdims=True)
    z = (z - mu2) / jnp.sqrt(var2 + eps) * params["ln2_g"][0] + params["ln2_b"][0]
    return z, attn


if __name__ == "__main__":
    # Small, consistent shapes.
    B, S = 8, 8
    d_model, d_inner = 32, 64
    n_heads, d_k, d_v = 4, 8, 8

    key = jax.random.PRNGKey(0)
    keys = jax.random.split(key, 16)

    def rnd(k, shape, scale=0.1):
        return jax.random.normal(k, shape, dtype=jnp.float32) * scale

    params = {
        # attention projections (stored as (in, out))
        "wq": rnd(keys[0], (d_model, n_heads * d_k)),
        "bq": rnd(keys[1], (1, n_heads * d_k)),
        "wk": rnd(keys[2], (d_model, n_heads * d_k)),
        "bk": rnd(keys[3], (1, n_heads * d_k)),
        "wv": rnd(keys[4], (d_model, n_heads * d_v)),
        "bv": rnd(keys[5], (1, n_heads * d_v)),
        "wo": rnd(keys[6], (n_heads * d_v, d_model)),
        "bo": rnd(keys[7], (1, d_model)),
        "ln1_g": jnp.ones((1, d_model), jnp.float32),
        "ln1_b": jnp.zeros((1, d_model), jnp.float32),
        # FFN (Conv1d kernel_size=1 weights, stored as (in, out))
        "w1": rnd(keys[8], (d_model, d_inner)),
        "b1": rnd(keys[9], (1, d_inner)),
        "w2": rnd(keys[10], (d_inner, d_model)),
        "b2": rnd(keys[11], (1, d_model)),
        "ln2_g": jnp.ones((1, d_model), jnp.float32),
        "ln2_b": jnp.zeros((1, d_model), jnp.float32),
    }

    x = rnd(keys[12], (B, S, d_model), scale=1.0)

    # Key-padding self-attention mask: mask[b, k] = 1.0 means key k is masked.
    lengths = (S - (jnp.arange(B) % 4)).astype(jnp.int32)
    key_mask = (jnp.arange(S)[None, :] >= lengths[:, None]).astype(jnp.float32)   # (B, S)
    dense_mask = jnp.broadcast_to(key_mask[:, None, :], (B, S, S))                # (B, S, S)

    # 1) Dense-mask module interface, attention probs returned; batch_tile=4 exercises a
    #    multi-step ("parallel") grid at this tiny size. In production leave it None.
    enc_out, attn = encoder_layer(
        x, dense_mask, params, n_heads=n_heads, d_k=d_k, d_v=d_v, batch_tile=4)
    jax.block_until_ready((enc_out, attn))

    # 2) Bandwidth-optimized path: (B, S) key-padding mask, no attention-prob writeback.
    enc_out2 = encoder_layer(
        x, key_mask, params, n_heads=n_heads, d_k=d_k, d_v=d_v, return_attn=False)
    jax.block_until_ready(enc_out2)

    ref_out, ref_attn = encoder_layer_ref(
        x, dense_mask, params, n_heads=n_heads, d_k=d_k, d_v=d_v)

    assert np.allclose(np.asarray(enc_out), np.asarray(ref_out), atol=2e-4, rtol=2e-4)
    assert np.allclose(np.asarray(attn), np.asarray(ref_attn), atol=2e-4, rtol=2e-4)
    assert np.allclose(np.asarray(enc_out2), np.asarray(ref_out), atol=2e-4, rtol=2e-4)

    print("KERNEL_OK")
</pallas_src>

<mosaic_0001>
module attributes {stable_mosaic.version = 11 : i64} {
  func.func @encoder_layer_kernel(%arg0: i32, %arg1: memref<4x8x32xf32, #tpu.memory_space<vmem>>, %arg2: memref<4x8x8xf32, #tpu.memory_space<vmem>>, %arg3: memref<32x96xf32, #tpu.memory_space<vmem>>, %arg4: memref<1x96xf32, #tpu.memory_space<vmem>>, %arg5: memref<32x32xf32, #tpu.memory_space<vmem>>, %arg6: memref<1x32xf32, #tpu.memory_space<vmem>>, %arg7: memref<1x32xf32, #tpu.memory_space<vmem>>, %arg8: memref<1x32xf32, #tpu.memory_space<vmem>>, %arg9: memref<32x64xf32, #tpu.memory_space<vmem>>, %arg10: memref<1x64xf32, #tpu.memory_space<vmem>>, %arg11: memref<64x32xf32, #tpu.memory_space<vmem>>, %arg12: memref<1x32xf32, #tpu.memory_space<vmem>>, %arg13: memref<1x32xf32, #tpu.memory_space<vmem>>, %arg14: memref<1x32xf32, #tpu.memory_space<vmem>>, %arg15: memref<4x8x32xf32, #tpu.memory_space<vmem>>, %arg16: memref<4x4x8x8xf32, #tpu.memory_space<vmem>>) attributes {dimension_semantics = [#tpu.dimension_semantics<parallel>], iteration_bounds = array<i64: 2>, scalar_prefetch = 0 : i64, scratch_operands = 0 : i64, tpu.core_type = #tpu.core_type<tc>, window_params = [{transform_indices = @transform_0, window_bounds = array<i64: 4, 8, 32>}, {transform_indices = @transform_1, window_bounds = array<i64: 4, 8, 8>}, {pipeline_mode = #tpu.pipeline_mode<synchronous>, transform_indices = @transform_2, window_bounds = array<i64: 32, 96>}, {pipeline_mode = #tpu.pipeline_mode<synchronous>, transform_indices = @transform_3, window_bounds = array<i64: 1, 96>}, {pipeline_mode = #tpu.pipeline_mode<synchronous>, transform_indices = @transform_4, window_bounds = array<i64: 32, 32>}, {pipeline_mode = #tpu.pipeline_mode<synchronous>, transform_indices = @transform_5, window_bounds = array<i64: 1, 32>}, {pipeline_mode = #tpu.pipeline_mode<synchronous>, transform_indices = @transform_6, window_bounds = array<i64: 1, 32>}, {pipeline_mode = #tpu.pipeline_mode<synchronous>, transform_indices = @transform_7, window_bounds = array<i64: 1, 32>}, {pipeline_mode = #tpu.pipeline_mode<synchronous>, transform_indices = @transform_8, window_bounds = array<i64: 32, 64>}, {pipeline_mode = #tpu.pipeline_mode<synchronous>, transform_indices = @transform_9, window_bounds = array<i64: 1, 64>}, {pipeline_mode = #tpu.pipeline_mode<synchronous>, transform_indices = @transform_10, window_bounds = array<i64: 64, 32>}, {pipeline_mode = #tpu.pipeline_mode<synchronous>, transform_indices = @transform_11, window_bounds = array<i64: 1, 32>}, {pipeline_mode = #tpu.pipeline_mode<synchronous>, transform_indices = @transform_12, window_bounds = array<i64: 1, 32>}, {pipeline_mode = #tpu.pipeline_mode<synchronous>, transform_indices = @transform_13, window_bounds = array<i64: 1, 32>}, {transform_indices = @transform_14, window_bounds = array<i64: 4, 8, 32>}, {transform_indices = @transform_15, window_bounds = array<i64: 4, 4, 8, 8>}]} {
    %c0 = arith.constant 0 : index
    %c0_0 = arith.constant 0 : index
    %c0_1 = arith.constant 0 : index
    %0 = vector.load %arg1[%c0, %c0_0, %c0_1] : memref<4x8x32xf32, #tpu.memory_space<vmem>>, vector<4x8x32xf32>
    %1 = vector.shape_cast %0 : vector<4x8x32xf32> to vector<32x32xf32>
    %c0_2 = arith.constant 0 : index
    %c0_3 = arith.constant 0 : index
    %2 = vector.load %arg3[%c0_2, %c0_3] : memref<32x96xf32, #tpu.memory_space<vmem>>, vector<32x96xf32>
    %cst = arith.constant dense<0.000000e+00> : vector<32x96xf32>
    %3 = tpu.matmul %1, %2, %cst {dimension_numbers = #tpu.dot_dimension_numbers<[1], [0], [0], [1], [0, 0, 1, 1], [], []>} : vector<32x32xf32>, vector<32x96xf32>, vector<32x96xf32> -> vector<32x96xf32>
    %c0_4 = arith.constant 0 : index
    %c0_5 = arith.constant 0 : index
    %4 = vector.load %arg4[%c0_4, %c0_5] : memref<1x96xf32, #tpu.memory_space<vmem>>, vector<1x96xf32>
    %5 = vector.broadcast %4 : vector<1x96xf32> to vector<32x96xf32>
    %6 = arith.addf %3, %5 : vector<32x96xf32>
    %c0_6 = arith.constant 0 : index
    %c0_7 = arith.constant 0 : index
    %c0_8 = arith.constant 0 : index
    %7 = vector.load %arg2[%c0_6, %c0_7, %c0_8] : memref<4x8x8xf32, #tpu.memory_space<vmem>>, vector<4x8x8xf32>
    %cst_9 = arith.constant 0.000000e+00 : f32
    %8 = vector.broadcast %cst_9 : f32 to vector<4x8x8xf32>
    %9 = arith.cmpf ogt, %7, %8 : vector<4x8x8xf32>
    %cst_10 = arith.constant 0.000000e+00 : f32
    %10 = vector.broadcast %cst_10 : f32 to vector<32x32xf32>
    %11 = vector.extract_strided_slice %6 {offsets = [0, 0], sizes = [32, 8], strides = [1, 1]} : vector<32x96xf32> to vector<32x8xf32>
    %12 = vector.shape_cast %11 : vector<32x8xf32> to vector<4x8x8xf32>
    %13 = vector.extract_strided_slice %6 {offsets = [0, 32], sizes = [32, 8], strides = [1, 1]} : vector<32x96xf32> to vector<32x8xf32>
    %14 = vector.shape_cast %13 : vector<32x8xf32> to vector<4x8x8xf32>
    %15 = vector.extract_strided_slice %6 {offsets = [0, 64], sizes = [32, 8], strides = [1, 1]} : vector<32x96xf32> to vector<32x8xf32>
    %16 = vector.shape_cast %15 : vector<32x8xf32> to vector<4x8x8xf32>
    "tpu.trace_start"() <{level = 10 : i32, message = "bqd,bkd->bqk"}> : () -> ()
    %cst_11 = arith.constant dense<0.000000e+00> : vector<4x8x8xf32>
    %17 = tpu.matmul %12, %14, %cst_11 {dimension_numbers = #tpu.dot_dimension_numbers<[2], [2], [1], [1], [0, 0, 0, 1, 1, 1], [0], [0]>} : vector<4x8x8xf32>, vector<4x8x8xf32>, vector<4x8x8xf32> -> vector<4x8x8xf32>
    "tpu.trace_stop"() : () -> ()
    %cst_12 = arith.constant 0.353553385 : f32
    %18 = vector.broadcast %cst_12 : f32 to vector<4x8x8xf32>
    %19 = arith.mulf %17, %18 : vector<4x8x8xf32>
    %cst_13 = arith.constant -1.000000e+09 : f32
    %20 = vector.broadcast %cst_13 : f32 to vector<4x8x8xf32>
    %21 = arith.select %9, %20, %19 : vector<4x8x8xi1>, vector<4x8x8xf32>
    %cst_14 = arith.constant dense<0xFF800000> : vector<4x8xf32>
    %22 = vector.multi_reduction <maximumf>, %21, %cst_14 [2] : vector<4x8x8xf32> to vector<4x8xf32>
    %23 = vector.shape_cast %22 : vector<4x8xf32> to vector<4x8x1xf32>
    %24 = vector.broadcast %23 : vector<4x8x1xf32> to vector<4x8x8xf32>
    %25 = arith.subf %21, %24 : vector<4x8x8xf32>
    %26 = math.exp %25 : vector<4x8x8xf32>
    %cst_15 = arith.constant dense<0.000000e+00> : vector<4x8xf32>
    %27 = vector.multi_reduction <add>, %26, %cst_15 [2] : vector<4x8x8xf32> to vector<4x8xf32>
    %28 = vector.shape_cast %27 : vector<4x8xf32> to vector<4x8x1xf32>
    %29 = vector.broadcast %28 : vector<4x8x1xf32> to vector<4x8x8xf32>
    %30 = arith.divf %26, %29 : vector<4x8x8xf32>
    %c0_16 = arith.constant 0 : index
    %c0_17 = arith.constant 0 : index
    %c0_18 = arith.constant 0 : index
    %c0_19 = arith.constant 0 : index
    %31 = vector.load %arg16[%c0_16, %c0_17, %c0_18, %c0_19] : memref<4x4x8x8xf32, #tpu.memory_space<vmem>>, vector<4x1x8x8xf32>
    %32 = vector.shape_cast %31 : vector<4x1x8x8xf32> to vector<4x8x8xf32>
    %33 = vector.shape_cast %30 : vector<4x8x8xf32> to vector<4x1x8x8xf32>
    tpu.vector_store %arg16[%c0_16, %c0_17, %c0_18, %c0_19], %33 {strides = array<i32>} : memref<4x4x8x8xf32, #tpu.memory_space<vmem>>, vector<4x1x8x8xf32>,
    "tpu.trace_start"() <{level = 10 : i32, message = "bqk,bkd->bqd"}> : () -> ()
    %cst_20 = arith.constant dense<0.000000e+00> : vector<4x8x8xf32>
    %34 = tpu.matmul %30, %16, %cst_20 {dimension_numbers = #tpu.dot_dimension_numbers<[2], [1], [1], [2], [0, 0, 0, 1, 1, 2], [0], [0]>} : vector<4x8x8xf32>, vector<4x8x8xf32>, vector<4x8x8xf32> -> vector<4x8x8xf32>
    "tpu.trace_stop"() : () -> ()
    %c0_21 = arith.constant 0 : index
    %c0_22 = arith.constant 0 : index
    %35 = vector.load %arg5[%c0_21, %c0_22] : memref<32x32xf32, #tpu.memory_space<vmem>>, vector<8x32xf32>
    %36 = vector.shape_cast %34 : vector<4x8x8xf32> to vector<32x8xf32>
    %cst_23 = arith.constant dense<0.000000e+00> : vector<32x32xf32>
    %37 = tpu.matmul %36, %35, %cst_23 {dimension_numbers = #tpu.dot_dimension_numbers<[1], [0], [0], [1], [0, 0, 1, 1], [], []>} : vector<32x8xf32>, vector<8x32xf32>, vector<32x32xf32> -> vector<32x32xf32>
    %38 = arith.addf %10, %37 : vector<32x32xf32>
    %39 = vector.extract_strided_slice %6 {offsets = [0, 8], sizes = [32, 8], strides = [1, 1]} : vector<32x96xf32> to vector<32x8xf32>
    %40 = vector.shape_cast %39 : vector<32x8xf32> to vector<4x8x8xf32>
    %41 = vector.extract_strided_slice %6 {offsets = [0, 40], sizes = [32, 8], strides = [1, 1]} : vector<32x96xf32> to vector<32x8xf32>
    %42 = vector.shape_cast %41 : vector<32x8xf32> to vector<4x8x8xf32>
    %43 = vector.extract_strided_slice %6 {offsets = [0, 72], sizes = [32, 8], strides = [1, 1]} : vector<32x96xf32> to vector<32x8xf32>
    %44 = vector.shape_cast %43 : vector<32x8xf32> to vector<4x8x8xf32>
    "tpu.trace_start"() <{level = 10 : i32, message = "bqd,bkd->bqk"}> : () -> ()
    %cst_24 = arith.constant dense<0.000000e+00> : vector<4x8x8xf32>
    %45 = tpu.matmul %40, %42, %cst_24 {dimension_numbers = #tpu.dot_dimension_numbers<[2], [2], [1], [1], [0, 0, 0, 1, 1, 1], [0], [0]>} : vector<4x8x8xf32>, vector<4x8x8xf32>, vector<4x8x8xf32> -> vector<4x8x8xf32>
    "tpu.trace_stop"() : () -> ()
    %cst_25 = arith.constant 0.353553385 : f32
    %46 = vector.broadcast %cst_25 : f32 to vector<4x8x8xf32>
    %47 = arith.mulf %45, %46 : vector<4x8x8xf32>
    %cst_26 = arith.constant -1.000000e+09 : f32
    %48 = vector.broadcast %cst_26 : f32 to vector<4x8x8xf32>
    %49 = arith.select %9, %48, %47 : vector<4x8x8xi1>, vector<4x8x8xf32>
    %cst_27 = arith.constant dense<0xFF800000> : vector<4x8xf32>
    %50 = vector.multi_reduction <maximumf>, %49, %cst_27 [2] : vector<4x8x8xf32> to vector<4x8xf32>
    %51 = vector.shape_cast %50 : vector<4x8xf32> to vector<4x8x1xf32>
    %52 = vector.broadcast %51 : vector<4x8x1xf32> to vector<4x8x8xf32>
    %53 = arith.subf %49, %52 : vector<4x8x8xf32>
    %54 = math.exp %53 : vector<4x8x8xf32>
    %cst_28 = arith.constant dense<0.000000e+00> : vector<4x8xf32>
    %55 = vector.multi_reduction <add>, %54, %cst_28 [2] : vector<4x8x8xf32> to vector<4x8xf32>
    %56 = vector.shape_cast %55 : vector<4x8xf32> to vector<4x8x1xf32>
    %57 = vector.broadcast %56 : vector<4x8x1xf32> to vector<4x8x8xf32>
    %58 = arith.divf %54, %57 : vector<4x8x8xf32>
    %c0_29 = arith.constant 0 : index
    %c1 = arith.constant 1 : index
    %c0_30 = arith.constant 0 : index
    %c0_31 = arith.constant 0 : index
    %59 = vector.load %arg16[%c0_29, %c1, %c0_30, %c0_31] : memref<4x4x8x8xf32, #tpu.memory_space<vmem>>, vector<4x1x8x8xf32>
    %60 = vector.shape_cast %59 : vector<4x1x8x8xf32> to vector<4x8x8xf32>
    %61 = vector.shape_cast %58 : vector<4x8x8xf32> to vector<4x1x8x8xf32>
    tpu.vector_store %arg16[%c0_29, %c1, %c0_30, %c0_31], %61 {strides = array<i32>} : memref<4x4x8x8xf32, #tpu.memory_space<vmem>>, vector<4x1x8x8xf32>,
    "tpu.trace_start"() <{level = 10 : i32, message = "bqk,bkd->bqd"}> : () -> ()
    %cst_32 = arith.constant dense<0.000000e+00> : vector<4x8x8xf32>
    %62 = tpu.matmul %58, %44, %cst_32 {dimension_numbers = #tpu.dot_dimension_numbers<[2], [1], [1], [2], [0, 0, 0, 1, 1, 2], [0], [0]>} : vector<4x8x8xf32>, vector<4x8x8xf32>, vector<4x8x8xf32> -> vector<4x8x8xf32>
    "tpu.trace_stop"() : () -> ()
    %c8 = arith.constant 8 : index
    %c0_33 = arith.constant 0 : index
    %63 = vector.load %arg5[%c8, %c0_33] : memref<32x32xf32, #tpu.memory_space<vmem>>, vector<8x32xf32>
    %64 = vector.shape_cast %62 : vector<4x8x8xf32> to vector<32x8xf32>
    %cst_34 = arith.constant dense<0.000000e+00> : vector<32x32xf32>
    %65 = tpu.matmul %64, %63, %cst_34 {dimension_numbers = #tpu.dot_dimension_numbers<[1], [0], [0], [1], [0, 0, 1, 1], [], []>} : vector<32x8xf32>, vector<8x32xf32>, vector<32x32xf32> -> vector<32x32xf32>
    %66 = arith.addf %38, %65 : vector<32x32xf32>
    %67 = vector.extract_strided_slice %6 {offsets = [0, 16], sizes = [32, 8], strides = [1, 1]} : vector<32x96xf32> to vector<32x8xf32>
    %68 = vector.shape_cast %67 : vector<32x8xf32> to vector<4x8x8xf32>
    %69 = vector.extract_strided_slice %6 {offsets = [0, 48], sizes = [32, 8], strides = [1, 1]} : vector<32x96xf32> to vector<32x8xf32>
    %70 = vector.shape_cast %69 : vector<32x8xf32> to vector<4x8x8xf32>
    %71 = vector.extract_strided_slice %6 {offsets = [0, 80], sizes = [32, 8], strides = [1, 1]} : vector<32x96xf32> to vector<32x8xf32>
    %72 = vector.shape_cast %71 : vector<32x8xf32> to vector<4x8x8xf32>
    "tpu.trace_start"() <{level = 10 : i32, message = "bqd,bkd->bqk"}> : () -> ()
    %cst_35 = arith.constant dense<0.000000e+00> : vector<4x8x8xf32>
    %73 = tpu.matmul %68, %70, %cst_35 {dimension_numbers = #tpu.dot_dimension_numbers<[2], [2], [1], [1], [0, 0, 0, 1, 1, 1], [0], [0]>} : vector<4x8x8xf32>, vector<4x8x8xf32>, vector<4x8x8xf32> -> vector<4x8x8xf32>
    "tpu.trace_stop"() : () -> ()
    %cst_36 = arith.constant 0.353553385 : f32
    %74 = vector.broadcast %cst_36 : f32 to vector<4x8x8xf32>
    %75 = arith.mulf %73, %74 : vector<4x8x8xf32>
    %cst_37 = arith.constant -1.000000e+09 : f32
    %76 = vector.broadcast %cst_37 : f32 to vector<4x8x8xf32>
    %77 = arith.select %9, %76, %75 : vector<4x8x8xi1>, vector<4x8x8xf32>
    %cst_38 = arith.constant dense<0xFF800000> : vector<4x8xf32>
    %78 = vector.multi_reduction <maximumf>, %77, %cst_38 [2] : vector<4x8x8xf32> to vector<4x8xf32>
    %79 = vector.shape_cast %78 : vector<4x8xf32> to vector<4x8x1xf32>
    %80 = vector.broadcast %79 : vector<4x8x1xf32> to vector<4x8x8xf32>
    %81 = arith.subf %77, %80 : vector<4x8x8xf32>
    %82 = math.exp %81 : vector<4x8x8xf32>
    %cst_39 = arith.constant dense<0.000000e+00> : vector<4x8xf32>
    %83 = vector.multi_reduction <add>, %82, %cst_39 [2] : vector<4x8x8xf32> to vector<4x8xf32>
    %84 = vector.shape_cast %83 : vector<4x8xf32> to vector<4x8x1xf32>
    %85 = vector.broadcast %84 : vector<4x8x1xf32> to vector<4x8x8xf32>
    %86 = arith.divf %82, %85 : vector<4x8x8xf32>
    %c0_40 = arith.constant 0 : index
    %c2 = arith.constant 2 : index
    %c0_41 = arith.constant 0 : index
    %c0_42 = arith.constant 0 : index
    %87 = vector.load %arg16[%c0_40, %c2, %c0_41, %c0_42] : memref<4x4x8x8xf32, #tpu.memory_space<vmem>>, vector<4x1x8x8xf32>
    %88 = vector.shape_cast %87 : vector<4x1x8x8xf32> to vector<4x8x8xf32>
    %89 = vector.shape_cast %86 : vector<4x8x8xf32> to vector<4x1x8x8xf32>
    tpu.vector_store %arg16[%c0_40, %c2, %c0_41, %c0_42], %89 {strides = array<i32>} : memref<4x4x8x8xf32, #tpu.memory_space<vmem>>, vector<4x1x8x8xf32>,
    "tpu.trace_start"() <{level = 10 : i32, message = "bqk,bkd->bqd"}> : () -> ()
    %cst_43 = arith.constant dense<0.000000e+00> : vector<4x8x8xf32>
    %90 = tpu.matmul %86, %72, %cst_43 {dimension_numbers = #tpu.dot_dimension_numbers<[2], [1], [1], [2], [0, 0, 0, 1, 1, 2], [0], [0]>} : vector<4x8x8xf32>, vector<4x8x8xf32>, vector<4x8x8xf32> -> vector<4x8x8xf32>
    "tpu.trace_stop"() : () -> ()
    %c16 = arith.constant 16 : index
    %c0_44 = arith.constant 0 : index
    %91 = vector.load %arg5[%c16, %c0_44] : memref<32x32xf32, #tpu.memory_space<vmem>>, vector<8x32xf32>
    %92 = vector.shape_cast %90 : vector<4x8x8xf32> to vector<32x8xf32>
    %cst_45 = arith.constant dense<0.000000e+00> : vector<32x32xf32>
    %93 = tpu.matmul %92, %91, %cst_45 {dimension_numbers = #tpu.dot_dimension_numbers<[1], [0], [0], [1], [0, 0, 1, 1], [], []>} : vector<32x8xf32>, vector<8x32xf32>, vector<32x32xf32> -> vector<32x32xf32>
    %94 = arith.addf %66, %93 : vector<32x32xf32>
    %95 = vector.extract_strided_slice %6 {offsets = [0, 24], sizes = [32, 8], strides = [1, 1]} : vector<32x96xf32> to vector<32x8xf32>
    %96 = vector.shape_cast %95 : vector<32x8xf32> to vector<4x8x8xf32>
    %97 = vector.extract_strided_slice %6 {offsets = [0, 56], sizes = [32, 8], strides = [1, 1]} : vector<32x96xf32> to vector<32x8xf32>
    %98 = vector.shape_cast %97 : vector<32x8xf32> to vector<4x8x8xf32>
    %99 = vector.extract_strided_slice %6 {offsets = [0, 88], sizes = [32, 8], strides = [1, 1]} : vector<32x96xf32> to vector<32x8xf32>
    %100 = vector.shape_cast %99 : vector<32x8xf32> to vector<4x8x8xf32>
    "tpu.trace_start"() <{level = 10 : i32, message = "bqd,bkd->bqk"}> : () -> ()
    %cst_46 = arith.constant dense<0.000000e+00> : vector<4x8x8xf32>
    %101 = tpu.matmul %96, %98, %cst_46 {dimension_numbers = #tpu.dot_dimension_numbers<[2], [2], [1], [1], [0, 0, 0, 1, 1, 1], [0], [0]>} : vector<4x8x8xf32>, vector<4x8x8xf32>, vector<4x8x8xf32> -> vector<4x8x8xf32>
    "tpu.trace_stop"() : () -> ()
    %cst_47 = arith.constant 0.353553385 : f32
    %102 = vector.broadcast %cst_47 : f32 to vector<4x8x8xf32>
    %103 = arith.mulf %101, %102 : vector<4x8x8xf32>
    %cst_48 = arith.constant -1.000000e+09 : f32
    %104 = vector.broadcast %cst_48 : f32 to vector<4x8x8xf32>
    %105 = arith.select %9, %104, %103 : vector<4x8x8xi1>, vector<4x8x8xf32>
    %cst_49 = arith.constant dense<0xFF800000> : vector<4x8xf32>
    %106 = vector.multi_reduction <maximumf>, %105, %cst_49 [2] : vector<4x8x8xf32> to vector<4x8xf32>
    %107 = vector.shape_cast %106 : vector<4x8xf32> to vector<4x8x1xf32>
    %108 = vector.broadcast %107 : vector<4x8x1xf32> to vector<4x8x8xf32>
    %109 = arith.subf %105, %108 : vector<4x8x8xf32>
    %110 = math.exp %109 : vector<4x8x8xf32>
    %cst_50 = arith.constant dense<0.000000e+00> : vector<4x8xf32>
    %111 = vector.multi_reduction <add>, %110, %cst_50 [2] : vector<4x8x8xf32> to vector<4x8xf32>
    %112 = vector.shape_cast %111 : vector<4x8xf32> to vector<4x8x1xf32>
    %113 = vector.broadcast %112 : vector<4x8x1xf32> to vector<4x8x8xf32>
    %114 = arith.divf %110, %113 : vector<4x8x8xf32>
    %c0_51 = arith.constant 0 : index
    %c3 = arith.constant 3 : index
    %c0_52 = arith.constant 0 : index
    %c0_53 = arith.constant 0 : index
    %115 = vector.load %arg16[%c0_51, %c3, %c0_52, %c0_53] : memref<4x4x8x8xf32, #tpu.memory_space<vmem>>, vector<4x1x8x8xf32>
    %116 = vector.shape_cast %115 : vector<4x1x8x8xf32> to vector<4x8x8xf32>
    %117 = vector.shape_cast %114 : vector<4x8x8xf32> to vector<4x1x8x8xf32>
    tpu.vector_store %arg16[%c0_51, %c3, %c0_52, %c0_53], %117 {strides = array<i32>} : memref<4x4x8x8xf32, #tpu.memory_space<vmem>>, vector<4x1x8x8xf32>,
    "tpu.trace_start"() <{level = 10 : i32, message = "bqk,bkd->bqd"}> : () -> ()
    %cst_54 = arith.constant dense<0.000000e+00> : vector<4x8x8xf32>
    %118 = tpu.matmul %114, %100, %cst_54 {dimension_numbers = #tpu.dot_dimension_numbers<[2], [1], [1], [2], [0, 0, 0, 1, 1, 2], [0], [0]>} : vector<4x8x8xf32>, vector<4x8x8xf32>, vector<4x8x8xf32> -> vector<4x8x8xf32>
    "tpu.trace_stop"() : () -> ()
    %c24 = arith.constant 24 : index
    %c0_55 = arith.constant 0 : index
    %119 = vector.load %arg5[%c24, %c0_55] : memref<32x32xf32, #tpu.memory_space<vmem>>, vector<8x32xf32>
    %120 = vector.shape_cast %118 : vector<4x8x8xf32> to vector<32x8xf32>
    %cst_56 = arith.constant dense<0.000000e+00> : vector<32x32xf32>
    %121 = tpu.matmul %120, %119, %cst_56 {dimension_numbers = #tpu.dot_dimension_numbers<[1], [0], [0], [1], [0, 0, 1, 1], [], []>} : vector<32x8xf32>, vector<8x32xf32>, vector<32x32xf32> -> vector<32x32xf32>
    %122 = arith.addf %94, %121 : vector<32x32xf32>
    %c0_57 = arith.constant 0 : index
    %c0_58 = arith.constant 0 : index
    %123 = vector.load %arg6[%c0_57, %c0_58] : memref<1x32xf32, #tpu.memory_space<vmem>>, vector<1x32xf32>
    %124 = vector.broadcast %123 : vector<1x32xf32> to vector<32x32xf32>
    %125 = arith.addf %122, %124 : vector<32x32xf32>
    %126 = arith.addf %125, %1 : vector<32x32xf32>
    %cst_59 = arith.constant dense<0.000000e+00> : vector<32xf32>
    %127 = vector.multi_reduction <add>, %126, %cst_59 [1] : vector<32x32xf32> to vector<32xf32>
    %128 = vector.shape_cast %127 : vector<32xf32> to vector<32x1xf32>
    %cst_60 = arith.constant 3.200000e+01 : f32
    %129 = vector.broadcast %cst_60 : f32 to vector<32x1xf32>
    %130 = arith.divf %128, %129 : vector<32x1xf32>
    %131 = vector.broadcast %130 : vector<32x1xf32> to vector<32x32xf32>
    %132 = arith.subf %126, %131 : vector<32x32xf32>
    %133 = arith.mulf %132, %132 : vector<32x32xf32>
    %cst_61 = arith.constant dense<0.000000e+00> : vector<32xf32>
    %134 = vector.multi_reduction <add>, %133, %cst_61 [1] : vector<32x32xf32> to vector<32xf32>
    %135 = vector.shape_cast %134 : vector<32xf32> to vector<32x1xf32>
    %cst_62 = arith.constant 3.200000e+01 : f32
    %136 = vector.broadcast %cst_62 : f32 to vector<32x1xf32>
    %137 = arith.divf %135, %136 : vector<32x1xf32>
    %138 = vector.broadcast %130 : vector<32x1xf32> to vector<32x32xf32>
    %139 = arith.subf %126, %138 : vector<32x32xf32>
    %cst_63 = arith.constant 9.99999974E-6 : f32
    %140 = vector.broadcast %cst_63 : f32 to vector<32x1xf32>
    %141 = arith.addf %137, %140 : vector<32x1xf32>
    %142 = math.rsqrt %141 : vector<32x1xf32>
    %143 = vector.broadcast %142 : vector<32x1xf32> to vector<32x32xf32>
    %144 = arith.mulf %139, %143 : vector<32x32xf32>
    %c0_64 = arith.constant 0 : index
    %c0_65 = arith.constant 0 : index
    %145 = vector.load %arg7[%c0_64, %c0_65] : memref<1x32xf32, #tpu.memory_space<vmem>>, vector<1x32xf32>
    %146 = vector.broadcast %145 : vector<1x32xf32> to vector<32x32xf32>
    %147 = arith.mulf %144, %146 : vector<32x32xf32>
    %c0_66 = arith.constant 0 : index
    %c0_67 = arith.constant 0 : index
    %148 = vector.load %arg8[%c0_66, %c0_67] : memref<1x32xf32, #tpu.memory_space<vmem>>, vector<1x32xf32>
    %149 = vector.broadcast %148 : vector<1x32xf32> to vector<32x32xf32>
    %150 = arith.addf %147, %149 : vector<32x32xf32>
    %c0_68 = arith.constant 0 : index
    %c0_69 = arith.constant 0 : index
    %151 = vector.load %arg9[%c0_68, %c0_69] : memref<32x64xf32, #tpu.memory_space<vmem>>, vector<32x64xf32>
    %cst_70 = arith.constant dense<0.000000e+00> : vector<32x64xf32>
    %152 = tpu.matmul %150, %151, %cst_70 {dimension_numbers = #tpu.dot_dimension_numbers<[1], [0], [0], [1], [0, 0, 1, 1], [], []>} : vector<32x32xf32>, vector<32x64xf32>, vector<32x64xf32> -> vector<32x64xf32>
    %c0_71 = arith.constant 0 : index
    %c0_72 = arith.constant 0 : index
    %153 = vector.load %arg10[%c0_71, %c0_72] : memref<1x64xf32, #tpu.memory_space<vmem>>, vector<1x64xf32>
    %154 = vector.broadcast %153 : vector<1x64xf32> to vector<32x64xf32>
    %155 = arith.addf %152, %154 : vector<32x64xf32>
    %cst_73 = arith.constant 0.000000e+00 : f32
    %156 = vector.broadcast %cst_73 : f32 to vector<32x64xf32>
    %157 = arith.maximumf %155, %156 : vector<32x64xf32>
    %c0_74 = arith.constant 0 : index
    %c0_75 = arith.constant 0 : index
    %158 = vector.load %arg11[%c0_74, %c0_75] : memref<64x32xf32, #tpu.memory_space<vmem>>, vector<64x32xf32>
    %cst_76 = arith.constant dense<0.000000e+00> : vector<32x32xf32>
    %159 = tpu.matmul %157, %158, %cst_76 {dimension_numbers = #tpu.dot_dimension_numbers<[1], [0], [0], [1], [0, 0, 1, 1], [], []>} : vector<32x64xf32>, vector<64x32xf32>, vector<32x32xf32> -> vector<32x32xf32>
    %c0_77 = arith.constant 0 : index
    %c0_78 = arith.constant 0 : index
    %160 = vector.load %arg12[%c0_77, %c0_78] : memref<1x32xf32, #tpu.memory_space<vmem>>, vector<1x32xf32>
    %161 = vector.broadcast %160 : vector<1x32xf32> to vector<32x32xf32>
    %162 = arith.addf %159, %161 : vector<32x32xf32>
    %163 = arith.addf %162, %150 : vector<32x32xf32>
    %cst_79 = arith.constant dense<0.000000e+00> : vector<32xf32>
    %164 = vector.multi_reduction <add>, %163, %cst_79 [1] : vector<32x32xf32> to vector<32xf32>
    %165 = vector.shape_cast %164 : vector<32xf32> to vector<32x1xf32>
    %cst_80 = arith.constant 3.200000e+01 : f32
    %166 = vector.broadcast %cst_80 : f32 to vector<32x1xf32>
    %167 = arith.divf %165, %166 : vector<32x1xf32>
    %168 = vector.broadcast %167 : vector<32x1xf32> to vector<32x32xf32>
    %169 = arith.subf %163, %168 : vector<32x32xf32>
    %170 = arith.mulf %169, %169 : vector<32x32xf32>
    %cst_81 = arith.constant dense<0.000000e+00> : vector<32xf32>
    %171 = vector.multi_reduction <add>, %170, %cst_81 [1] : vector<32x32xf32> to vector<32xf32>
    %172 = vector.shape_cast %171 : vector<32xf32> to vector<32x1xf32>
    %cst_82 = arith.constant 3.200000e+01 : f32
    %173 = vector.broadcast %cst_82 : f32 to vector<32x1xf32>
    %174 = arith.divf %172, %173 : vector<32x1xf32>
    %175 = vector.broadcast %167 : vector<32x1xf32> to vector<32x32xf32>
    %176 = arith.subf %163, %175 : vector<32x32xf32>
    %cst_83 = arith.constant 9.99999974E-6 : f32
    %177 = vector.broadcast %cst_83 : f32 to vector<32x1xf32>
    %178 = arith.addf %174, %177 : vector<32x1xf32>
    %179 = math.rsqrt %178 : vector<32x1xf32>
    %180 = vector.broadcast %179 : vector<32x1xf32> to vector<32x32xf32>
    %181 = arith.mulf %176, %180 : vector<32x32xf32>
    %c0_84 = arith.constant 0 : index
    %c0_85 = arith.constant 0 : index
    %182 = vector.load %arg13[%c0_84, %c0_85] : memref<1x32xf32, #tpu.memory_space<vmem>>, vector<1x32xf32>
    %183 = vector.broadcast %182 : vector<1x32xf32> to vector<32x32xf32>
    %184 = arith.mulf %181, %183 : vector<32x32xf32>
    %c0_86 = arith.constant 0 : index
    %c0_87 = arith.constant 0 : index
    %185 = vector.load %arg14[%c0_86, %c0_87] : memref<1x32xf32, #tpu.memory_space<vmem>>, vector<1x32xf32>
    %186 = vector.broadcast %185 : vector<1x32xf32> to vector<32x32xf32>
    %187 = arith.addf %184, %186 : vector<32x32xf32>
    %188 = vector.shape_cast %187 : vector<32x32xf32> to vector<4x8x32xf32>
    %c0_88 = arith.constant 0 : index
    %c0_89 = arith.constant 0 : index
    %c0_90 = arith.constant 0 : index
    %189 = vector.load %arg15[%c0_88, %c0_89, %c0_90] : memref<4x8x32xf32, #tpu.memory_space<vmem>>, vector<4x8x32xf32>
    tpu.vector_store %arg15[%c0_88, %c0_89, %c0_90], %188 {strides = array<i32>} : memref<4x8x32xf32, #tpu.memory_space<vmem>>, vector<4x8x32xf32>,
    return
  }
  func.func @transform_0(%arg0: i32) -> (i32, i32, i32) {
    %c0_i32 = arith.constant 0 : i32
    %c0_i32_0 = arith.constant 0 : i32
    %c0_i32_1 = arith.constant 0 : i32
    return %arg0, %c0_i32, %c0_i32_0 : i32, i32, i32
  }
  func.func @transform_1(%arg0: i32) -> (i32, i32, i32) {
    %c0_i32 = arith.constant 0 : i32
    %c0_i32_0 = arith.constant 0 : i32
    %c0_i32_1 = arith.constant 0 : i32
    return %arg0, %c0_i32, %c0_i32_0 : i32, i32, i32
  }
  func.func @transform_2(%arg0: i32) -> (i32, i32) {
    %c0_i32 = arith.constant 0 : i32
    %c0_i32_0 = arith.constant 0 : i32
    %c0_i32_1 = arith.constant 0 : i32
    return %c0_i32, %c0_i32_0 : i32, i32
  }
  func.func @transform_3(%arg0: i32) -> (i32, i32) {
    %c0_i32 = arith.constant 0 : i32
    %c0_i32_0 = arith.constant 0 : i32
    %c0_i32_1 = arith.constant 0 : i32
    return %c0_i32, %c0_i32_0 : i32, i32
  }
  func.func @transform_4(%arg0: i32) -> (i32, i32) {
    %c0_i32 = arith.constant 0 : i32
    %c0_i32_0 = arith.constant 0 : i32
    %c0_i32_1 = arith.constant 0 : i32
    return %c0_i32, %c0_i32_0 : i32, i32
  }
  func.func @transform_5(%arg0: i32) -> (i32, i32) {
    %c0_i32 = arith.constant 0 : i32
    %c0_i32_0 = arith.constant 0 : i32
    %c0_i32_1 = arith.constant 0 : i32
    return %c0_i32, %c0_i32_0 : i32, i32
  }
  func.func @transform_6(%arg0: i32) -> (i32, i32) {
    %c0_i32 = arith.constant 0 : i32
    %c0_i32_0 = arith.constant 0 : i32
    %c0_i32_1 = arith.constant 0 : i32
    return %c0_i32, %c0_i32_0 : i32, i32
  }
  func.func @transform_7(%arg0: i32) -> (i32, i32) {
    %c0_i32 = arith.constant 0 : i32
    %c0_i32_0 = arith.constant 0 : i32
    %c0_i32_1 = arith.constant 0 : i32
    return %c0_i32, %c0_i32_0 : i32, i32
  }
  func.func @transform_8(%arg0: i32) -> (i32, i32) {
    %c0_i32 = arith.constant 0 : i32
    %c0_i32_0 = arith.constant 0 : i32
    %c0_i32_1 = arith.constant 0 : i32
    return %c0_i32, %c0_i32_0 : i32, i32
  }
  func.func @transform_9(%arg0: i32) -> (i32, i32) {
    %c0_i32 = arith.constant 0 : i32
    %c0_i32_0 = arith.constant 0 : i32
    %c0_i32_1 = arith.constant 0 : i32
    return %c0_i32, %c0_i32_0 : i32, i32
  }
  func.func @transform_10(%arg0: i32) -> (i32, i32) {
    %c0_i32 = arith.constant 0 : i32
    %c0_i32_0 = arith.constant 0 : i32
    %c0_i32_1 = arith.constant 0 : i32
    return %c0_i32, %c0_i32_0 : i32, i32
  }
  func.func @transform_11(%arg0: i32) -> (i32, i32) {
    %c0_i32 = arith.constant 0 : i32
    %c0_i32_0 = arith.constant 0 : i32
    %c0_i32_1 = arith.constant 0 : i32
    return %c0_i32, %c0_i32_0 : i32, i32
  }
  func.func @transform_12(%arg0: i32) -> (i32, i32) {
    %c0_i32 = arith.constant 0 : i32
    %c0_i32_0 = arith.constant 0 : i32
    %c0_i32_1 = arith.constant 0 : i32
    return %c0_i32, %c0_i32_0 : i32, i32
  }
  func.func @transform_13(%arg0: i32) -> (i32, i32) {
    %c0_i32 = arith.constant 0 : i32
    %c0_i32_0 = arith.constant 0 : i32
    %c0_i32_1 = arith.constant 0 : i32
    return %c0_i32, %c0_i32_0 : i32, i32
  }
  func.func @transform_14(%arg0: i32) -> (i32, i32, i32) {
    %c0_i32 = arith.constant 0 : i32
    %c0_i32_0 = arith.constant 0 : i32
    %c0_i32_1 = arith.constant 0 : i32
    return %arg0, %c0_i32, %c0_i32_0 : i32, i32, i32
  }
  func.func @transform_15(%arg0: i32) -> (i32, i32, i32, i32) {
    %c0_i32 = arith.constant 0 : i32
    %c0_i32_0 = arith.constant 0 : i32
    %c0_i32_1 = arith.constant 0 : i32
    %c0_i32_2 = arith.constant 0 : i32
    return %arg0, %c0_i32, %c0_i32_0, %c0_i32_1 : i32, i32, i32, i32
  }
}

</mosaic_0001>

<llo_original>
// kernel: tpu_custom_call.1
$region0: #{tpu_custom_call.1}
  #allocation0 [shape = 'u32[]', space=smem, size = 0x4, offset = 0x4, fixed_abs, tag = 'smem constant byte address 0x4 - core index']
  #allocation1 [shape = 'u32[144,128]{1,0:T(1,128)}', space=vmem, size = 0x12000, scoped, tag = 'internal scratch']
  %s0 = inlined_call_operand.vmem [shape: f32[8,8,32], index: 0, kind: input, shape index: {}]
  %s1 = inlined_call_operand.hbm [shape: f32[8,8,8], index: 1, kind: input, shape index: {}]
  %s2 = inlined_call_operand.vmem [shape: f32[32,96], index: 2, kind: input, shape index: {}]
  %s3 = inlined_call_operand.vmem [shape: f32[1,96], index: 3, kind: input, shape index: {}]
  %s4 = inlined_call_operand.hbm [shape: f32[32,32], index: 4, kind: input, shape index: {}]
  %s5 = inlined_call_operand.vmem [shape: f32[1,32], index: 5, kind: input, shape index: {}]
  %s6 = inlined_call_operand.vmem [shape: f32[1,32], index: 6, kind: input, shape index: {}]
  %s7 = inlined_call_operand.vmem [shape: f32[1,32], index: 7, kind: input, shape index: {}]
  %s8 = inlined_call_operand.hbm [shape: f32[32,64], index: 8, kind: input, shape index: {}]
  %s9 = inlined_call_operand.vmem [shape: f32[1,64], index: 9, kind: input, shape index: {}]
  %s10 = inlined_call_operand.vmem [shape: f32[64,32], index: 10, kind: input, shape index: {}]
  %s11 = inlined_call_operand.vmem [shape: f32[1,32], index: 11, kind: input, shape index: {}]
  %s12 = inlined_call_operand.vmem [shape: f32[1,32], index: 12, kind: input, shape index: {}]
  %s13 = inlined_call_operand.vmem [shape: f32[1,32], index: 13, kind: input, shape index: {}]
  %s14 = inlined_call_operand.hbm [shape: f32[8,8,32], index: 14, kind: output, shape index: {0}]
  %s15 = inlined_call_operand.hbm [shape: f32[8,4,8,8], index: 15, kind: output, shape index: {1}]
  %16 = xla_tuple %s14, %s15
  %s17 = sld [smem:[#allocation0]]
  $region109: #{tpu_custom_call.1} parent=0
    _
  %s19 = ssub.s32 1, %s17
  %s20 = scalar_select 0, %s19, %s17
  $region1: #{tpu_custom_call.1} parent=0
    #allocation2 [shape = 'u8[32768]{0}', space=vmem, size = 0x8000, scoped, tag = 'input window, operand 1']
    #allocation3 [shape = 's32[2]{0}', space=sflag, size = 0x8, scoped, tag = 'scoped memory for tpu_custom_call.1']
    #allocation4 [shape = 's32[2]{0}', space=sflag, size = 0x8, scoped, tag = 'scoped memory for tpu_custom_call.1']
    #allocation5 [shape = 'u8[16384]{0}', space=vmem, size = 0x4000, scoped, tag = 'input window, operand 4, single buffered']
    #allocation6 [shape = 's32[1]{0}', space=sflag, size = 0x4, scoped, tag = 'scoped memory for tpu_custom_call.1']
    #allocation7 [shape = 'u8[16384]{0}', space=vmem, size = 0x4000, scoped, tag = 'input window, operand 8, single buffered']
    #allocation8 [shape = 'u8[32768]{0}', space=vmem, size = 0x8000, scoped, tag = 'output window, operand 0']
    #allocation9 [shape = 'u8[131072]{0}', space=vmem, size = 0x20000, scoped, tag = 'output window, operand 1']
    #allocation10 [shape = 's32[2]{0}', space=sflag, size = 0x8, scoped, tag = 'scoped memory for tpu_custom_call.1']
    %21 = vsyncpa [#allocation3], 0
    %s22 = scalar_lea.sflag [#allocation3], 1
    %23 = vsyncpa %s22, 0
    %24 = vsyncpa [#allocation6], 0
    %25 = vsyncpa [#allocation4], 0
    %s26 = scalar_lea.sflag [#allocation4], 1
    %27 = vsyncpa %s26, 0
    %28 = vsyncpa [#allocation10], 0
    %s29 = scalar_lea.sflag [#allocation10], 1
    %30 = vsyncpa %s29, 0
    loop: start=0, step=1, limit=4
    $region2: #{tpu_custom_call.1} parent=1 // loop_pre_header
      _
    $region3: #{tpu_custom_call.1} parent=1 // loop_header
      %s32 = sphi 0, %s36
      %p33 = scmp.ge.s32.totalorder %s32, 4
      %s42 = sphi 0, %s44
      %s45 = sphi 0, %s42
      %s46 = sphi 0, %s45
      %s62 = sphi 0, %s46
      %s68 = sphi 0, %s70
      %s71 = sphi 0, %s68
      %s72 = sphi 0, %s71
      %s88 = sphi 0, %s72
      %s92 = sphi 0, %s92
      %s94 = sphi 0, %s92
      %s95 = sphi 0, %s94
      %s109 = sphi 0, %s95
      %s113 = sphi 0, %s113
      %s115 = sphi 0, %s113
      %s116 = sphi 0, %s115
      %s130 = sphi 0, %s116
      %s134 = sphi 0, %s134
      %s136 = sphi 0, %s134
      %s137 = sphi 0, %s136
      %s151 = sphi 0, %s137
      %s155 = sphi 0, %s155
      %s157 = sphi 0, %s155
      %s158 = sphi 0, %s157
      %s172 = sphi 0, %s158
      %s176 = sphi 0, %s176
      %s178 = sphi 0, %s176
      %s179 = sphi 0, %s178
      %s193 = sphi 0, %s179
      %s197 = sphi 0, %s197
      %s199 = sphi 0, %s197
      %s200 = sphi 0, %s199
      %s214 = sphi 0, %s200
      %s218 = sphi 0, %s218
      %s220 = sphi 0, %s218
      %s221 = sphi 0, %s220
      %s235 = sphi 0, %s221
      %s239 = sphi 0, %s239
      %s241 = sphi 0, %s239
      %s242 = sphi 0, %s241
      %s256 = sphi 0, %s242
      %s260 = sphi 0, %s260
      %s262 = sphi 0, %s260
      %s263 = sphi 0, %s262
      %s277 = sphi 0, %s263
      %s281 = sphi 0, %s281
      %s283 = sphi 0, %s281
      %s284 = sphi 0, %s283
      %s298 = sphi 0, %s284
      %s302 = sphi 0, %s302
      %s304 = sphi 0, %s302
      %s305 = sphi 0, %s304
      %s319 = sphi 0, %s305
      %s323 = sphi 0, %s323
      %s325 = sphi 0, %s323
      %s326 = sphi 0, %s325
      %s340 = sphi 0, %s326
      %s346 = sphi 0, %s348
      %s349 = sphi 0, %s346
      %s350 = sphi 0, %s349
      %s366 = sphi 0, %s350
      %s372 = sphi 0, %s374
      %s375 = sphi 0, %s372
      %s376 = sphi 0, %s375
      %s392 = sphi 0, %s376
    $region4: #{tpu_custom_call.1} parent=1 // loop_header_branch
      %35 = sbr.rel (%p33) target = $region8
    $region5: #{tpu_custom_call.1} parent=1 // loop_body
      %s37 = ssub.s32 %s32, 1
      %s38 = ssub.s32 %s32, 2
      %s39 = sadd.s32 %s32, 1
      %s40 = ssub.s32 %s32, %s39
      %p41 = scmp.eq.s32.totalorder %s40, 0
      %s43 = sadd.s32 %s42, 1
      %s44 = scalar_select %p41, %s42, %s43
      %p47 = pneg %p41
      %p48 = scmp.eq.s32.totalorder %s32, 1
      %p49 = por %p47, %p48
      %p50 = scmp.ne.s32.totalorder %s42, %s45
      %p51 = scmp.eq.s32.totalorder %s32, 0
      %p52 = por %p50, %p51
      %p53 = scmp.ne.s32.totalorder %s42, %s45
      %p54 = scmp.eq.s32.totalorder %s37, 1
      %p55 = por %p53, %p54
      %p56 = scmp.ne.s32.totalorder %s45, %s46
      %p57 = scmp.eq.s32.totalorder %s37, 0
      %p58 = por %p56, %p57
      %p59 = scmp.ne.s32.totalorder %s45, %s46
      %p60 = scmp.eq.s32.totalorder %s38, 1
      %p61 = por %p59, %p60
      %p63 = scmp.ne.s32.totalorder %s46, %s62
      %p64 = scmp.eq.s32.totalorder %s38, 0
      %p65 = por %p63, %p64
      %s66 = ssub.s32 %s32, %s39
      %p67 = scmp.eq.s32.totalorder %s66, 0
      %s69 = sadd.s32 %s68, 1
      %s70 = scalar_select %p67, %s68, %s69
      %p73 = pneg %p67
      %p74 = scmp.eq.s32.totalorder %s32, 1
      %p75 = por %p73, %p74
      %p76 = scmp.ne.s32.totalorder %s68, %s71
      %p77 = scmp.eq.s32.totalorder %s32, 0
      %p78 = por %p76, %p77
      %p79 = scmp.ne.s32.totalorder %s68, %s71
      %p80 = scmp.eq.s32.totalorder %s37, 1
      %p81 = por %p79, %p80
      %p82 = scmp.ne.s32.totalorder %s71, %s72
      %p83 = scmp.eq.s32.totalorder %s37, 0
      %p84 = por %p82, %p83
      %p85 = scmp.ne.s32.totalorder %s71, %s72
      %p86 = scmp.eq.s32.totalorder %s38, 1
      %p87 = por %p85, %p86
      %p89 = scmp.ne.s32.totalorder %s72, %s88
      %p90 = scmp.eq.s32.totalorder %s38, 0
      %p91 = por %p89, %p90
      %s93 = sadd.s32 %s92, 1
      %p96 = scmp.eq.s32.totalorder %s32, 1
      %p97 = scmp.ne.s32.totalorder %s92, %s94
      %p98 = scmp.eq.s32.totalorder %s32, 0
      %p99 = por %p97, %p98
      %p100 = scmp.ne.s32.totalorder %s92, %s94
      %p101 = scmp.eq.s32.totalorder %s37, 1
      %p102 = por %p100, %p101
      %p103 = scmp.ne.s32.totalorder %s94, %s95
      %p104 = scmp.eq.s32.totalorder %s37, 0
      %p105 = por %p103, %p104
      %p106 = scmp.ne.s32.totalorder %s94, %s95
      %p107 = scmp.eq.s32.totalorder %s38, 1
      %p108 = por %p106, %p107
      %p110 = scmp.ne.s32.totalorder %s95, %s109
      %p111 = scmp.eq.s32.totalorder %s38, 0
      %p112 = por %p110, %p111
      %s114 = sadd.s32 %s113, 1
      %p117 = scmp.eq.s32.totalorder %s32, 1
      %p118 = scmp.ne.s32.totalorder %s113, %s115
      %p119 = scmp.eq.s32.totalorder %s32, 0
      %p120 = por %p118, %p119
      %p121 = scmp.ne.s32.totalorder %s113, %s115
      %p122 = scmp.eq.s32.totalorder %s37, 1
      %p123 = por %p121, %p122
      %p124 = scmp.ne.s32.totalorder %s115, %s116
      %p125 = scmp.eq.s32.totalorder %s37, 0
      %p126 = por %p124, %p125
      %p127 = scmp.ne.s32.totalorder %s115, %s116
      %p128 = scmp.eq.s32.totalorder %s38, 1
      %p129 = por %p127, %p128
      %p131 = scmp.ne.s32.totalorder %s116, %s130
      %p132 = scmp.eq.s32.totalorder %s38, 0
      %p133 = por %p131, %p132
      %s135 = sadd.s32 %s134, 1
      %p138 = scmp.eq.s32.totalorder %s32, 1
      %p139 = scmp.ne.s32.totalorder %s134, %s136
      %p140 = scmp.eq.s32.totalorder %s32, 0
      %p141 = por %p139, %p140
      %p142 = scmp.ne.s32.totalorder %s134, %s136
      %p143 = scmp.eq.s32.totalorder %s37, 1
      %p144 = por %p142, %p143
      %p145 = scmp.ne.s32.totalorder %s136, %s137
      %p146 = scmp.eq.s32.totalorder %s37, 0
      %p147 = por %p145, %p146
      %p148 = scmp.ne.s32.totalorder %s136, %s137
      %p149 = scmp.eq.s32.totalorder %s38, 1
      %p150 = por %p148, %p149
      %p152 = scmp.ne.s32.totalorder %s137, %s151
      %p153 = scmp.eq.s32.totalorder %s38, 0
      %p154 = por %p152, %p153
      %s156 = sadd.s32 %s155, 1
      %p159 = scmp.eq.s32.totalorder %s32, 1
      %p160 = scmp.ne.s32.totalorder %s155, %s157
      %p161 = scmp.eq.s32.totalorder %s32, 0
      %p162 = por %p160, %p161
      %p163 = scmp.ne.s32.totalorder %s155, %s157
      %p164 = scmp.eq.s32.totalorder %s37, 1
      %p165 = por %p163, %p164
      %p166 = scmp.ne.s32.totalorder %s157, %s158
      %p167 = scmp.eq.s32.totalorder %s37, 0
      %p168 = por %p166, %p167
      %p169 = scmp.ne.s32.totalorder %s157, %s158
      %p170 = scmp.eq.s32.totalorder %s38, 1
      %p171 = por %p169, %p170
      %p173 = scmp.ne.s32.totalorder %s158, %s172
      %p174 = scmp.eq.s32.totalorder %s38, 0
      %p175 = por %p173, %p174
      %s177 = sadd.s32 %s176, 1
      %p180 = scmp.eq.s32.totalorder %s32, 1
      %p181 = scmp.ne.s32.totalorder %s176, %s178
      %p182 = scmp.eq.s32.totalorder %s32, 0
      %p183 = por %p181, %p182
      %p184 = scmp.ne.s32.totalorder %s176, %s178
      %p185 = scmp.eq.s32.totalorder %s37, 1
      %p186 = por %p184, %p185
      %p187 = scmp.ne.s32.totalorder %s178, %s179
      %p188 = scmp.eq.s32.totalorder %s37, 0
      %p189 = por %p187, %p188
      %p190 = scmp.ne.s32.totalorder %s178, %s179
      %p191 = scmp.eq.s32.totalorder %s38, 1
      %p192 = por %p190, %p191
      %p194 = scmp.ne.s32.totalorder %s179, %s193
      %p195 = scmp.eq.s32.totalorder %s38, 0
      %p196 = por %p194, %p195
      %s198 = sadd.s32 %s197, 1
      %p201 = scmp.eq.s32.totalorder %s32, 1
      %p202 = scmp.ne.s32.totalorder %s197, %s199
      %p203 = scmp.eq.s32.totalorder %s32, 0
      %p204 = por %p202, %p203
      %p205 = scmp.ne.s32.totalorder %s197, %s199
      %p206 = scmp.eq.s32.totalorder %s37, 1
      %p207 = por %p205, %p206
      %p208 = scmp.ne.s32.totalorder %s199, %s200
      %p209 = scmp.eq.s32.totalorder %s37, 0
      %p210 = por %p208, %p209
      %p211 = scmp.ne.s32.totalorder %s199, %s200
      %p212 = scmp.eq.s32.totalorder %s38, 1
      %p213 = por %p211, %p212
      %p215 = scmp.ne.s32.totalorder %s200, %s214
      %p216 = scmp.eq.s32.totalorder %s38, 0
      %p217 = por %p215, %p216
      %s219 = sadd.s32 %s218, 1
      %p222 = scmp.eq.s32.totalorder %s32, 1
      %p223 = scmp.ne.s32.totalorder %s218, %s220
      %p224 = scmp.eq.s32.totalorder %s32, 0
      %p225 = por %p223, %p224
      %p226 = scmp.ne.s32.totalorder %s218, %s220
      %p227 = scmp.eq.s32.totalorder %s37, 1
      %p228 = por %p226, %p227
      %p229 = scmp.ne.s32.totalorder %s220, %s221
      %p230 = scmp.eq.s32.totalorder %s37, 0
      %p231 = por %p229, %p230
      %p232 = scmp.ne.s32.totalorder %s220, %s221
      %p233 = scmp.eq.s32.totalorder %s38, 1
      %p234 = por %p232, %p233
      %p236 = scmp.ne.s32.totalorder %s221, %s235
      %p237 = scmp.eq.s32.totalorder %s38, 0
      %p238 = por %p236, %p237
      %s240 = sadd.s32 %s239, 1
      %p243 = scmp.eq.s32.totalorder %s32, 1
      %p244 = scmp.ne.s32.totalorder %s239, %s241
      %p245 = scmp.eq.s32.totalorder %s32, 0
      %p246 = por %p244, %p245
      %p247 = scmp.ne.s32.totalorder %s239, %s241
      %p248 = scmp.eq.s32.totalorder %s37, 1
      %p249 = por %p247, %p248
      %p250 = scmp.ne.s32.totalorder %s241, %s242
      %p251 = scmp.eq.s32.totalorder %s37, 0
      %p252 = por %p250, %p251
      %p253 = scmp.ne.s32.totalorder %s241, %s242
      %p254 = scmp.eq.s32.totalorder %s38, 1
      %p255 = por %p253, %p254
      %p257 = scmp.ne.s32.totalorder %s242, %s256
      %p258 = scmp.eq.s32.totalorder %s38, 0
      %p259 = por %p257, %p258
      %s261 = sadd.s32 %s260, 1
      %p264 = scmp.eq.s32.totalorder %s32, 1
      %p265 = scmp.ne.s32.totalorder %s260, %s262
      %p266 = scmp.eq.s32.totalorder %s32, 0
      %p267 = por %p265, %p266
      %p268 = scmp.ne.s32.totalorder %s260, %s262
      %p269 = scmp.eq.s32.totalorder %s37, 1
      %p270 = por %p268, %p269
      %p271 = scmp.ne.s32.totalorder %s262, %s263
      %p272 = scmp.eq.s32.totalorder %s37, 0
      %p273 = por %p271, %p272
      %p274 = scmp.ne.s32.totalorder %s262, %s263
      %p275 = scmp.eq.s32.totalorder %s38, 1
      %p276 = por %p274, %p275
      %p278 = scmp.ne.s32.totalorder %s263, %s277
      %p279 = scmp.eq.s32.totalorder %s38, 0
      %p280 = por %p278, %p279
      %s282 = sadd.s32 %s281, 1
      %p285 = scmp.eq.s32.totalorder %s32, 1
      %p286 = scmp.ne.s32.totalorder %s281, %s283
      %p287 = scmp.eq.s32.totalorder %s32, 0
      %p288 = por %p286, %p287
      %p289 = scmp.ne.s32.totalorder %s281, %s283
      %p290 = scmp.eq.s32.totalorder %s37, 1
      %p291 = por %p289, %p290
      %p292 = scmp.ne.s32.totalorder %s283, %s284
      %p293 = scmp.eq.s32.totalorder %s37, 0
      %p294 = por %p292, %p293
      %p295 = scmp.ne.s32.totalorder %s283, %s284
      %p296 = scmp.eq.s32.totalorder %s38, 1
      %p297 = por %p295, %p296
      %p299 = scmp.ne.s32.totalorder %s284, %s298
      %p300 = scmp.eq.s32.totalorder %s38, 0
      %p301 = por %p299, %p300
      %s303 = sadd.s32 %s302, 1
      %p306 = scmp.eq.s32.totalorder %s32, 1
      %p307 = scmp.ne.s32.totalorder %s302, %s304
      %p308 = scmp.eq.s32.totalorder %s32, 0
      %p309 = por %p307, %p308
      %p310 = scmp.ne.s32.totalorder %s302, %s304
      %p311 = scmp.eq.s32.totalorder %s37, 1
      %p312 = por %p310, %p311
      %p313 = scmp.ne.s32.totalorder %s304, %s305
      %p314 = scmp.eq.s32.totalorder %s37, 0
      %p315 = por %p313, %p314
      %p316 = scmp.ne.s32.totalorder %s304, %s305
      %p317 = scmp.eq.s32.totalorder %s38, 1
      %p318 = por %p316, %p317
      %p320 = scmp.ne.s32.totalorder %s305, %s319
      %p321 = scmp.eq.s32.totalorder %s38, 0
      %p322 = por %p320, %p321
      %s324 = sadd.s32 %s323, 1
      %p327 = scmp.eq.s32.totalorder %s32, 1
      %p328 = scmp.ne.s32.totalorder %s323, %s325
      %p329 = scmp.eq.s32.totalorder %s32, 0
      %p330 = por %p328, %p329
      %p331 = scmp.ne.s32.totalorder %s323, %s325
      %p332 = scmp.eq.s32.totalorder %s37, 1
      %p333 = por %p331, %p332
      %p334 = scmp.ne.s32.totalorder %s325, %s326
      %p335 = scmp.eq.s32.totalorder %s37, 0
      %p336 = por %p334, %p335
      %p337 = scmp.ne.s32.totalorder %s325, %s326
      %p338 = scmp.eq.s32.totalorder %s38, 1
      %p339 = por %p337, %p338
      %p341 = scmp.ne.s32.totalorder %s326, %s340
      %p342 = scmp.eq.s32.totalorder %s38, 0
      %p343 = por %p341, %p342
      %s344 = ssub.s32 %s32, %s39
      %p345 = scmp.eq.s32.totalorder %s344, 0
      %s347 = sadd.s32 %s346, 1
      %s348 = scalar_select %p345, %s346, %s347
      %p351 = pneg %p345
      %p352 = scmp.eq.s32.totalorder %s32, 1
      %p353 = por %p351, %p352
      %p354 = scmp.ne.s32.totalorder %s346, %s349
      %p355 = scmp.eq.s32.totalorder %s32, 0
      %p356 = por %p354, %p355
      %p357 = scmp.ne.s32.totalorder %s346, %s349
      %p358 = scmp.eq.s32.totalorder %s37, 1
      %p359 = por %p357, %p358
      %p360 = scmp.ne.s32.totalorder %s349, %s350
      %p361 = scmp.eq.s32.totalorder %s37, 0
      %p362 = por %p360, %p361
      %p363 = scmp.ne.s32.totalorder %s349, %s350
      %p364 = scmp.eq.s32.totalorder %s38, 1
      %p365 = por %p363, %p364
      %p367 = scmp.ne.s32.totalorder %s350, %s366
      %p368 = scmp.eq.s32.totalorder %s38, 0
      %p369 = por %p367, %p368
      %s370 = ssub.s32 %s32, %s39
      %p371 = scmp.eq.s32.totalorder %s370, 0
      %s373 = sadd.s32 %s372, 1
      %s374 = scalar_select %p371, %s372, %s373
      %p377 = pneg %p371
      %p378 = scmp.eq.s32.totalorder %s32, 1
      %p379 = por %p377, %p378
      %p380 = scmp.ne.s32.totalorder %s372, %s375
      %p381 = scmp.eq.s32.totalorder %s32, 0
      %p382 = por %p380, %p381
      %p383 = scmp.ne.s32.totalorder %s372, %s375
      %p384 = scmp.eq.s32.totalorder %s37, 1
      %p385 = por %p383, %p384
      %p386 = scmp.ne.s32.totalorder %s375, %s376
      %p387 = scmp.eq.s32.totalorder %s37, 0
      %p388 = por %p386, %p387
      %p389 = scmp.ne.s32.totalorder %s375, %s376
      %p390 = scmp.eq.s32.totalorder %s38, 1
      %p391 = por %p389, %p390
      %p393 = scmp.ne.s32.totalorder %s376, %s392
      %p394 = scmp.eq.s32.totalorder %s38, 0
      %p395 = por %p393, %p394
      %p396 = scmp.le.s32.totalorder 1, %s32
      %p397 = scmp.lt.s32.totalorder %s32, 3
      %p398 = pnand %p396, %p397
      %p399 = pneg %p398
      // Predicated region
      $region9: #{tpu_custom_call.1} parent=5 // pred_check
        _
      $region10: #{tpu_custom_call.1} parent=5 // pred_check_branch
        %401 = sbr.rel (%p398) target = $region12
      $region11: #{tpu_custom_call.1} parent=5 // pred_region
        %s402 = ssub.s32 %s32, 1
        // Predicated region
        $region13: #{tpu_custom_call.1} parent=11 // pred_check
          %p403 = pneg %p105
        $region14: #{tpu_custom_call.1} parent=11 // pred_check_branch
          %405 = sbr.rel (%p403) target = $region16
        $region15: #{tpu_custom_call.1} parent=11 // pred_region
          _
        $region16: #{tpu_custom_call.1} parent=11 // pred_fallthru
          _
        // Predicated region
        $region17: #{tpu_custom_call.1} parent=11 // pred_check
          %p406 = pneg %p126
        $region18: #{tpu_custom_call.1} parent=11 // pred_check_branch
          %408 = sbr.rel (%p406) target = $region20
        $region19: #{tpu_custom_call.1} parent=11 // pred_region
          _
        $region20: #{tpu_custom_call.1} parent=11 // pred_fallthru
          _
        // Predicated region
        $region21: #{tpu_custom_call.1} parent=11 // pred_check
          %p409 = pneg %p147
        $region22: #{tpu_custom_call.1} parent=11 // pred_check_branch
          %411 = sbr.rel (%p409) target = $region24
        $region23: #{tpu_custom_call.1} parent=11 // pred_region
          %s413 = ssub.s32 512, 512
          %414 = vsyncadd [#allocation6], %s413
          %s415 = sshll.u32 [#allocation5], 4
          %s416 = int_to_ptr.vmem [resolvable:$true] %s415
          %421 = dma.hbm_to_vmem [thread:$0]  %s4, 512, %s416, [#allocation6], 128, 128, 8
        $region24: #{tpu_custom_call.1} parent=11 // pred_fallthru
          _
        // Predicated region
        $region25: #{tpu_custom_call.1} parent=11 // pred_check
          %p422 = pneg %p168
        $region26: #{tpu_custom_call.1} parent=11 // pred_check_branch
          %424 = sbr.rel (%p422) target = $region28
        $region27: #{tpu_custom_call.1} parent=11 // pred_region
          _
        $region28: #{tpu_custom_call.1} parent=11 // pred_fallthru
          _
        // Predicated region
        $region29: #{tpu_custom_call.1} parent=11 // pred_check
          %p425 = pneg %p189
        $region30: #{tpu_custom_call.1} parent=11 // pred_check_branch
          %427 = sbr.rel (%p425) target = $region32
        $region31: #{tpu_custom_call.1} parent=11 // pred_region
          _
        $region32: #{tpu_custom_call.1} parent=11 // pred_fallthru
          _
        // Predicated region
        $region33: #{tpu_custom_call.1} parent=11 // pred_check
          %p428 = pneg %p210
        $region34: #{tpu_custom_call.1} parent=11 // pred_check_branch
          %430 = sbr.rel (%p428) target = $region36
        $region35: #{tpu_custom_call.1} parent=11 // pred_region
          _
        $region36: #{tpu_custom_call.1} parent=11 // pred_fallthru
          _
        // Predicated region
        $region37: #{tpu_custom_call.1} parent=11 // pred_check
          %p431 = pneg %p231
        $region38: #{tpu_custom_call.1} parent=11 // pred_check_branch
          %433 = sbr.rel (%p431) target = $region40
        $region39: #{tpu_custom_call.1} parent=11 // pred_region
          %s435 = ssub.s32 512, 512
          %436 = vsyncadd [#allocation6], %s435
          %s437 = sshll.u32 [#allocation7], 4
          %s438 = int_to_ptr.vmem [resolvable:$true] %s437
          %443 = dma.hbm_to_vmem [thread:$0]  %s8, 512, %s438, [#allocation6], 128, 128, 8
        $region40: #{tpu_custom_call.1} parent=11 // pred_fallthru
          _
        // Predicated region
        $region41: #{tpu_custom_call.1} parent=11 // pred_check
          %p444 = pneg %p252
        $region42: #{tpu_custom_call.1} parent=11 // pred_check_branch
          %446 = sbr.rel (%p444) target = $region44
        $region43: #{tpu_custom_call.1} parent=11 // pred_region
          _
        $region44: #{tpu_custom_call.1} parent=11 // pred_fallthru
          _
        // Predicated region
        $region45: #{tpu_custom_call.1} parent=11 // pred_check
          %p447 = pneg %p273
        $region46: #{tpu_custom_call.1} parent=11 // pred_check_branch
          %449 = sbr.rel (%p447) target = $region48
        $region47: #{tpu_custom_call.1} parent=11 // pred_region
          _
        $region48: #{tpu_custom_call.1} parent=11 // pred_fallthru
          _
        // Predicated region
        $region49: #{tpu_custom_call.1} parent=11 // pred_check
          %p450 = pneg %p294
        $region50: #{tpu_custom_call.1} parent=11 // pred_check_branch
          %452 = sbr.rel (%p450) target = $region52
        $region51: #{tpu_custom_call.1} parent=11 // pred_region
          _
        $region52: #{tpu_custom_call.1} parent=11 // pred_fallthru
          _
        // Predicated region
        $region53: #{tpu_custom_call.1} parent=11 // pred_check
          %p453 = pneg %p315
        $region54: #{tpu_custom_call.1} parent=11 // pred_check_branch
          %455 = sbr.rel (%p453) target = $region56
        $region55: #{tpu_custom_call.1} parent=11 // pred_region
          _
        $region56: #{tpu_custom_call.1} parent=11 // pred_fallthru
          _
        // Predicated region
        $region57: #{tpu_custom_call.1} parent=11 // pred_check
          %p456 = pneg %p336
        $region58: #{tpu_custom_call.1} parent=11 // pred_check_branch
          %458 = sbr.rel (%p456) target = $region60
        $region59: #{tpu_custom_call.1} parent=11 // pred_region
          _
        $region60: #{tpu_custom_call.1} parent=11 // pred_fallthru
          _
      $region12: #{tpu_custom_call.1} parent=5 // pred_fallthru
        _
      %p459 = scmp.lt.s32.totalorder %s32, 2
      // Predicated region
      $region61: #{tpu_custom_call.1} parent=5 // pred_check
        %p460 = pneg %p459
      $region62: #{tpu_custom_call.1} parent=5 // pred_check_branch
        %462 = sbr.rel (%p460) target = $region64
      $region63: #{tpu_custom_call.1} parent=5 // pred_region
        // Predicated region
        $region65: #{tpu_custom_call.1} parent=63 // pred_check
          %p463 = pneg %p52
        $region66: #{tpu_custom_call.1} parent=63 // pred_check_branch
          %465 = sbr.rel (%p463) target = $region68
        $region67: #{tpu_custom_call.1} parent=63 // pred_region
          %s466 = smul.u32 4, %s32
          %p467 = scmp.lt.s32.totalorder %s466, 7
          %s468 = scalar_select %p467, %s466, 7
          %s469 = smul.addr %s468, 8
          %s470 = scalar_lea.vmem %s0, %s469
          %s471 = smul.u32 4, %s32
        $region68: #{tpu_custom_call.1} parent=63 // pred_fallthru
          _
        // Predicated region
        $region69: #{tpu_custom_call.1} parent=63 // pred_check
          %p472 = pneg %p78
        $region70: #{tpu_custom_call.1} parent=63 // pred_check_branch
          %474 = sbr.rel (%p472) target = $region72
        $region71: #{tpu_custom_call.1} parent=63 // pred_region
          %s475 = sand.u32 %s68, 1
          %s476 = scalar_lea.sflag [#allocation3], %s475
          %s477 = sand.u32 %s68, 1
          %s478 = smul.addr %s477, 32
          %s479 = scalar_lea.vmem [#allocation2], %s478
          %s480 = smul.u32 4, %s32
          %s482 = ssub.s32 512, 512
          %483 = vsyncadd %s476, %s482
          %s484 = smul.addr %s480, 128
          %s485 = scalar_lea.hbm %s1, %s484
          %s486 = sshll.u32 %s479, 4
          %s487 = int_to_ptr.vmem [resolvable:$true] %s486
          %492 = dma.hbm_to_vmem [thread:$0]  %s485, 512, %s487, %s476, 128, 128, 8
        $region72: #{tpu_custom_call.1} parent=63 // pred_fallthru
          _
      $region64: #{tpu_custom_call.1} parent=5 // pred_fallthru
        _
      %p493 = scmp.le.s32.totalorder 1, %s32
      %p494 = scmp.lt.s32.totalorder %s32, 3
      %p495 = pnand %p493, %p494
      %p496 = pneg %p495
      // Predicated region
      $region73: #{tpu_custom_call.1} parent=5 // pred_check
        _
      $region74: #{tpu_custom_call.1} parent=5 // pred_check_branch
        %498 = sbr.rel (%p495) target = $region76
      $region75: #{tpu_custom_call.1} parent=5 // pred_region
        %s499 = ssub.s32 %s32, 1
        %s500 = sand.u32 %s71, 1
        %s501 = scalar_lea.sflag [#allocation3], %s500
        %s502 = sand.u32 %s71, 1
        %s503 = smul.addr %s502, 32
        %s504 = scalar_lea.vmem [#allocation2], %s503
        // Predicated region
        $region77: #{tpu_custom_call.1} parent=75 // pred_check
          %p505 = pneg %p84
        $region78: #{tpu_custom_call.1} parent=75 // pred_check_branch
          %507 = sbr.rel (%p505) target = $region80
        $region79: #{tpu_custom_call.1} parent=75 // pred_region
          %508 = dma.done %s501, 512
        $region80: #{tpu_custom_call.1} parent=75 // pred_fallthru
          _
        // Predicated region
        $region81: #{tpu_custom_call.1} parent=75 // pred_check
          %p509 = pneg %p147
        $region82: #{tpu_custom_call.1} parent=75 // pred_check_branch
          %511 = sbr.rel (%p509) target = $region84
        $region83: #{tpu_custom_call.1} parent=75 // pred_region
          %512 = dma.done [#allocation6], 512
        $region84: #{tpu_custom_call.1} parent=75 // pred_fallthru
          _
        // Predicated region
        $region85: #{tpu_custom_call.1} parent=75 // pred_check
          %p513 = pneg %p231
        $region86: #{tpu_custom_call.1} parent=75 // pred_check_branch
          %515 = sbr.rel (%p513) target = $region88
        $region87: #{tpu_custom_call.1} parent=75 // pred_region
          %516 = dma.done [#allocation6], 512
        $region88: #{tpu_custom_call.1} parent=75 // pred_fallthru
          _
        %s517 = smul.u32 4, %s37
        %p518 = scmp.lt.s32.totalorder %s517, 7
        %s519 = scalar_select %p518, %s517, 7
        %s520 = smul.addr %s519, 8
        %s521 = scalar_lea.vmem %s0, %s520
        %p522 = pneg %p58
        %p523 = pneg %p55
        %s524 = sand.u32 %s71, 1
        %s525 = scalar_lea.sflag [#allocation3], %s524
        %s526 = sand.u32 %s71, 1
        %s527 = smul.addr %s526, 32
        %s528 = scalar_lea.vmem [#allocation2], %s527
        %p529 = pneg %p84
        %p530 = pneg %p81
        %p531 = pneg %p105
        %p532 = pneg %p102
        %p533 = pneg %p126
        %p534 = pneg %p123
        %p535 = pneg %p147
        %p536 = pneg %p144
        %p537 = pneg %p168
        %p538 = pneg %p165
        %p539 = pneg %p189
        %p540 = pneg %p186
        %p541 = pneg %p210
        %p542 = pneg %p207
        %p543 = pneg %p231
        %p544 = pneg %p228
        %p545 = pneg %p252
        %p546 = pneg %p249
        %p547 = pneg %p273
        %p548 = pneg %p270
        %p549 = pneg %p294
        %p550 = pneg %p291
        %p551 = pneg %p315
        %p552 = pneg %p312
        %p553 = pneg %p336
        %p554 = pneg %p333
        %p555 = pneg %p362
        %p556 = pneg %p359
        %s557 = sand.u32 %s349, 1
        %s558 = scalar_lea.sflag [#allocation4], %s557
        %s559 = sand.u32 %s349, 1
        %s560 = smul.addr %s559, 32
        %s561 = scalar_lea.vmem [#allocation8], %s560
        %p562 = pneg %p388
        %p563 = pneg %p385
        %s564 = sand.u32 %s375, 1
        %s565 = scalar_lea.sflag [#allocation10], %s564
        %s566 = sand.u32 %s375, 1
        %s567 = smul.addr %s566, 128
        %s568 = scalar_lea.vmem [#allocation9], %s567
        %s569 = smul.u32 4, %s37
        %p570 = scmp.lt.s32.totalorder %s569, 7
        %s571 = scalar_select %p570, %s569, 7
        %s572 = smul.addr %s571, 8
        %s573 = scalar_lea.vmem %s0, %s572
        %s574 = smul.u32 4, %s37
        %s575 = smul.u32 4, %s37
        %s576 = smul.u32 4, %s37
        %s577 = smul.u32 4, %s37
        %v578 = vld [vmem:[%s573] sm:$0xff]
        %v579 = vld [vmem:[%s573 + $0x8] sm:$0xff]
        %v580 = vld [vmem:[%s573 + $0x10] sm:$0xff]
        %v581 = vld [vmem:[%s573 + $0x18] sm:$0xff]
        %v582 = vld [vmem:[%s2] sm:$0xff]
        %v583 = vld [vmem:[%s2 + $0x8] sm:$0xff]
        %v584 = vld [vmem:[%s2 + $0x10] sm:$0xff]
        %v585 = vld [vmem:[%s2 + $0x18] sm:$0xff]
        %v586 = vld [vmem:[%s3] sm:$0x1]
        %v588 = vlaneseq
        %v589 = vshrl.u32 %v588, 7
        %v590 = vsub.s32 0, %v589
        %v591 = vrot.slane %v586, %v590
        %vm593 = vcmask 261120
        %v595 = vsel %vm593, %v578, 0
        %v598 = vsel %vm593, %v579, 0
        %v601 = vsel %vm593, %v580, 0
        %v604 = vsel %vm593, %v581, 0
        %606 = vmatprep.subr.mxu0 0.0
        %607 = vmatpush1.msra.mxu0 %v582
        %608 = vmatprep.subr.mxu0 0.0
        %609 = vmatpush1.msra.mxu0 %v583
        %610 = vmatprep.subr.mxu0 0.0
        %611 = vmatpush1.msra.mxu0 %v584
        %612 = vmatprep.subr.mxu0 0.0
        %613 = vmatpush1.msra.mxu0 %v585
        %614 = vmatprep.subr.mxu0 0.0
        %615 = vmatpush1.msra.mxu0 0.0
        %616 = vmatprep.subr.mxu0 0.0
        %617 = vmatpush1.msra.mxu0 0.0
        %618 = vmatprep.subr.mxu0 0.0
        %619 = vmatpush1.msra.mxu0 0.0
        %620 = vmatprep.subr.mxu0 0.0
        %621 = vmatpush1.msra.mxu0 0.0
        %622 = vmatprep.subr.mxu0 0.0
        %623 = vmatpush1.msra.mxu0 0.0
        %624 = vmatprep.subr.mxu0 0.0
        %625 = vmatpush1.msra.mxu0 0.0
        %626 = vmatprep.subr.mxu0 0.0
        %627 = vmatpush1.msra.mxu0 0.0
        %628 = vmatprep.subr.mxu0 0.0
        %629 = vmatpush1.msra.mxu0 0.0
        %630 = vmatprep.subr.mxu0 0.0
        %631 = vmatpush1.msra.mxu0 0.0
        %632 = vmatprep.subr.mxu0 0.0
        %633 = vmatpush1.msra.mxu0 0.0
        %634 = vmatprep.subr.mxu0 0.0
        %635 = vmatpush1.msra.mxu0 0.0
        %636 = vmatprep.subr.mxu0 0.0
        %637 = vmatpush1.msra.mxu0 0.0
        %638 = vmatprep.subr.mxu0 0.0
        %639 = vmatpush1.msra.mxu0 0.0
        %640 = vmatprep.subr.mxu0 0.0
        %641 = vmatpush1.msra.mxu0 0.0
        %642 = vmatprep.subr.mxu0 0.0
        %643 = vmatpush1.msra.mxu0 0.0
        %644 = vmatprep.subr.mxu0 0.0
        %645 = vmatpush1.msra.mxu0 0.0
        %646 = vmatprep.subr.mxu0 0.0
        %647 = vmatpush1.msra.mxu0 0.0
        %648 = vmatprep.subr.mxu0 0.0
        %649 = vmatpush1.msra.mxu0 0.0
        %650 = vmatprep.subr.mxu0 0.0
        %651 = vmatpush1.msra.mxu0 0.0
        %652 = vmatprep.subr.mxu0 0.0
        %653 = vmatpush1.msra.mxu0 0.0
        %654 = vmatprep.subr.mxu0 0.0
        %655 = vmatpush1.msra.mxu0 0.0
        %656 = vmatprep.subr.mxu0 0.0
        %657 = vmatpush1.msra.mxu0 0.0
        %658 = vmatprep.subr.mxu0 0.0
        %659 = vmatpush1.msra.mxu0 0.0
        %660 = vmatprep.subr.mxu0 0.0
        %661 = vmatpush1.msra.mxu0 0.0
        %662 = vmatprep.subr.mxu0 0.0
        %663 = vmatpush1.msra.mxu0 0.0
        %664 = vmatprep.subr.mxu0 0.0
        %665 = vmatpush1.msra.mxu0 0.0
        %666 = vmatprep.subr.mxu0 0.0
        %667 = vmatpush1.msra.mxu0 0.0
        %668 = vmatprep.subr.mxu0 0.0
        %669 = vmatpush1.msra.mxu0 0.0
        %670 = vmatprep.mubr.f32.mxu0 0.0
        %671 = vmatmul.mubr.f32.gmra.mrb[0].mxu0 %v595
        %v672 = vpop.f32.mrb[0].mxu0
        %v673 = vadd.f32 %v591, %v672
        %v674 = vpop.f32.mrb[0].mxu0
        %675 = vmatprep.mubr.f32.mxu0 0.0
        %676 = vmatmul.mubr.f32.gmra.mrb[0].mxu0 %v598
        %v677 = vpop.f32.mrb[0].mxu0
        %v678 = vadd.f32 %v591, %v677
        %v679 = vpop.f32.mrb[0].mxu0
        %680 = vmatprep.mubr.f32.mxu0 0.0
        %681 = vmatmul.mubr.f32.gmra.mrb[0].mxu0 %v601
        %v682 = vpop.f32.mrb[0].mxu0
        %v683 = vadd.f32 %v591, %v682
        %v684 = vpop.f32.mrb[0].mxu0
        %685 = vmatprep.mubr.f32.mxu0 0.0
        %686 = vmatmul.mubr.f32.gmra.mrb[0].mxu0 %v604
        %v687 = vpop.f32.mrb[0].mxu0
        %v688 = vadd.f32 %v591, %v687
        %v689 = vpop.f32.mrb[0].mxu0
        %690 = vdwg.mxu0
        %v691 = vld [vmem:[%s504] sm:$0xff]
        %v692 = vld [vmem:[%s504 + $0x8] sm:$0xff]
        %v693 = vld [vmem:[%s504 + $0x10] sm:$0xff]
        %v694 = vld [vmem:[%s504 + $0x18] sm:$0xff]
        %vm695 = vcmp.gt.f32.partialorder %v691, 0.0
        %vm696 = vcmp.gt.f32.partialorder %v692, 0.0
        %vm697 = vcmp.gt.f32.partialorder %v693, 0.0
        %vm698 = vcmp.gt.f32.partialorder %v694, 0.0
        %700 = vrot.lane.b32.xlu0 %v673, 96
        %v701 = vpop.permute.xlu0 %700
        %vm702 = vcmask 64512
        %v703 = vsel %vm702, %v673, 0
        %v705 = vsel %vm702, %v701, 0
        %707 = vmatprep.subr.mxu0 0.0
        %708 = vmatpush1.xpose.msra.mxu0 %v705
        %709 = vmatprep.subr.mxu0 0.0
        %710 = vmatpush1.xpose.msra.mxu0 0.0
        %711 = vmatprep.subr.mxu0 0.0
        %712 = vmatpush1.xpose.msra.mxu0 0.0
        %713 = vmatprep.subr.mxu0 0.0
        %714 = vmatpush1.xpose.msra.mxu0 0.0
        %715 = vmatprep.subr.mxu0 0.0
        %716 = vmatpush1.xpose.msra.mxu0 0.0
        %717 = vmatprep.subr.mxu0 0.0
        %718 = vmatpush1.xpose.msra.mxu0 0.0
        %719 = vmatprep.subr.mxu0 0.0
        %720 = vmatpush1.xpose.msra.mxu0 0.0
        %721 = vmatprep.subr.mxu0 0.0
        %722 = vmatpush1.xpose.msra.mxu0 0.0
        %723 = vmatprep.subr.mxu0 0.0
        %724 = vmatpush1.xpose.msra.mxu0 0.0
        %725 = vmatprep.subr.mxu0 0.0
        %726 = vmatpush1.xpose.msra.mxu0 0.0
        %727 = vmatprep.subr.mxu0 0.0
        %728 = vmatpush1.xpose.msra.mxu0 0.0
        %729 = vmatprep.subr.mxu0 0.0
        %730 = vmatpush1.xpose.msra.mxu0 0.0
        %731 = vmatprep.subr.mxu0 0.0
        %732 = vmatpush1.xpose.msra.mxu0 0.0
        %733 = vmatprep.subr.mxu0 0.0
        %734 = vmatpush1.xpose.msra.mxu0 0.0
        %735 = vmatprep.subr.mxu0 0.0
        %736 = vmatpush1.xpose.msra.mxu0 0.0
        %737 = vmatprep.subr.mxu0 0.0
        %738 = vmatpush1.xpose.msra.mxu0 0.0
        %739 = vmatprep.subr.mxu0 0.0
        %740 = vmatpush1.xpose.msra.mxu0 0.0
        %741 = vmatprep.subr.mxu0 0.0
        %742 = vmatpush1.xpose.msra.mxu0 0.0
        %743 = vmatprep.subr.mxu0 0.0
        %744 = vmatpush1.xpose.msra.mxu0 0.0
        %745 = vmatprep.subr.mxu0 0.0
        %746 = vmatpush1.xpose.msra.mxu0 0.0
        %747 = vmatprep.subr.mxu0 0.0
        %748 = vmatpush1.xpose.msra.mxu0 0.0
        %749 = vmatprep.subr.mxu0 0.0
        %750 = vmatpush1.xpose.msra.mxu0 0.0
        %751 = vmatprep.subr.mxu0 0.0
        %752 = vmatpush1.xpose.msra.mxu0 0.0
        %753 = vmatprep.subr.mxu0 0.0
        %754 = vmatpush1.xpose.msra.mxu0 0.0
        %755 = vmatprep.subr.mxu0 0.0
        %756 = vmatpush1.xpose.msra.mxu0 0.0
        %757 = vmatprep.subr.mxu0 0.0
        %758 = vmatpush1.xpose.msra.mxu0 0.0
        %759 = vmatprep.subr.mxu0 0.0
        %760 = vmatpush1.xpose.msra.mxu0 0.0
        %761 = vmatprep.subr.mxu0 0.0
        %762 = vmatpush1.xpose.msra.mxu0 0.0
        %763 = vmatprep.subr.mxu0 0.0
        %764 = vmatpush1.xpose.msra.mxu0 0.0
        %765 = vmatprep.subr.mxu0 0.0
        %766 = vmatpush1.xpose.msra.mxu0 0.0
        %767 = vmatprep.subr.mxu0 0.0
        %768 = vmatpush1.xpose.msra.mxu0 0.0
        %769 = vmatprep.subr.mxu0 0.0
        %770 = vmatpush1.xpose.msra.mxu0 0.0
        %771 = vmatprep.mubr.f32.mxu0 0.0
        %772 = vmatmul.mubr.f32.gmra.mrb[0].mxu0 %v703
        %v773 = vpop.f32.mrb[0].mxu0
        %v774 = vadd.f32 0.0, %v773
        %v775 = vpop.f32.mrb[0].mxu0
        %776 = vdwg.mxu0
        %778 = vrot.lane.b32.xlu0 %v678, 96
        %v779 = vpop.permute.xlu0 %778
        %v780 = vsel %vm702, %v678, 0
        %v782 = vsel %vm702, %v779, 0
        %784 = vmatprep.subr.mxu0 0.0
        %785 = vmatpush1.xpose.msra.mxu0 %v782
        %786 = vmatprep.subr.mxu0 0.0
        %787 = vmatpush1.xpose.msra.mxu0 0.0
        %788 = vmatprep.subr.mxu0 0.0
        %789 = vmatpush1.xpose.msra.mxu0 0.0
        %790 = vmatprep.subr.mxu0 0.0
        %791 = vmatpush1.xpose.msra.mxu0 0.0
        %792 = vmatprep.subr.mxu0 0.0
        %793 = vmatpush1.xpose.msra.mxu0 0.0
        %794 = vmatprep.subr.mxu0 0.0
        %795 = vmatpush1.xpose.msra.mxu0 0.0
        %796 = vmatprep.subr.mxu0 0.0
        %797 = vmatpush1.xpose.msra.mxu0 0.0
        %798 = vmatprep.subr.mxu0 0.0
        %799 = vmatpush1.xpose.msra.mxu0 0.0
        %800 = vmatprep.subr.mxu0 0.0
        %801 = vmatpush1.xpose.msra.mxu0 0.0
        %802 = vmatprep.subr.mxu0 0.0
        %803 = vmatpush1.xpose.msra.mxu0 0.0
        %804 = vmatprep.subr.mxu0 0.0
        %805 = vmatpush1.xpose.msra.mxu0 0.0
        %806 = vmatprep.subr.mxu0 0.0
        %807 = vmatpush1.xpose.msra.mxu0 0.0
        %808 = vmatprep.subr.mxu0 0.0
        %809 = vmatpush1.xpose.msra.mxu0 0.0
        %810 = vmatprep.subr.mxu0 0.0
        %811 = vmatpush1.xpose.msra.mxu0 0.0
        %812 = vmatprep.subr.mxu0 0.0
        %813 = vmatpush1.xpose.msra.mxu0 0.0
        %814 = vmatprep.subr.mxu0 0.0
        %815 = vmatpush1.xpose.msra.mxu0 0.0
        %816 = vmatprep.subr.mxu0 0.0
        %817 = vmatpush1.xpose.msra.mxu0 0.0
        %818 = vmatprep.subr.mxu0 0.0
        %819 = vmatpush1.xpose.msra.mxu0 0.0
        %820 = vmatprep.subr.mxu0 0.0
        %821 = vmatpush1.xpose.msra.mxu0 0.0
        %822 = vmatprep.subr.mxu0 0.0
        %823 = vmatpush1.xpose.msra.mxu0 0.0
        %824 = vmatprep.subr.mxu0 0.0
        %825 = vmatpush1.xpose.msra.mxu0 0.0
        %826 = vmatprep.subr.mxu0 0.0
        %827 = vmatpush1.xpose.msra.mxu0 0.0
        %828 = vmatprep.subr.mxu0 0.0
        %829 = vmatpush1.xpose.msra.mxu0 0.0
        %830 = vmatprep.subr.mxu0 0.0
        %831 = vmatpush1.xpose.msra.mxu0 0.0
        %832 = vmatprep.subr.mxu0 0.0
        %833 = vmatpush1.xpose.msra.mxu0 0.0
        %834 = vmatprep.subr.mxu0 0.0
        %835 = vmatpush1.xpose.msra.mxu0 0.0
        %836 = vmatprep.subr.mxu0 0.0
        %837 = vmatpush1.xpose.msra.mxu0 0.0
        %838 = vmatprep.subr.mxu0 0.0
        %839 = vmatpush1.xpose.msra.mxu0 0.0
        %840 = vmatprep.subr.mxu0 0.0
        %841 = vmatpush1.xpose.msra.mxu0 0.0
        %842 = vmatprep.subr.mxu0 0.0
        %843 = vmatpush1.xpose.msra.mxu0 0.0
        %844 = vmatprep.subr.mxu0 0.0
        %845 = vmatpush1.xpose.msra.mxu0 0.0
        %846 = vmatprep.subr.mxu0 0.0
        %847 = vmatpush1.xpose.msra.mxu0 0.0
        %848 = vmatprep.mubr.f32.mxu0 0.0
        %849 = vmatmul.mubr.f32.gmra.mrb[0].mxu0 %v780
        %v850 = vpop.f32.mrb[0].mxu0
        %v851 = vadd.f32 0.0, %v850
        %v852 = vpop.f32.mrb[0].mxu0
        %853 = vdwg.mxu0
        %855 = vrot.lane.b32.xlu0 %v683, 96
        %v856 = vpop.permute.xlu0 %855
        %v857 = vsel %vm702, %v683, 0
        %v859 = vsel %vm702, %v856, 0
        %861 = vmatprep.subr.mxu0 0.0
        %862 = vmatpush1.xpose.msra.mxu0 %v859
        %863 = vmatprep.subr.mxu0 0.0
        %864 = vmatpush1.xpose.msra.mxu0 0.0
        %865 = vmatprep.subr.mxu0 0.0
        %866 = vmatpush1.xpose.msra.mxu0 0.0
        %867 = vmatprep.subr.mxu0 0.0
        %868 = vmatpush1.xpose.msra.mxu0 0.0
        %869 = vmatprep.subr.mxu0 0.0
        %870 = vmatpush1.xpose.msra.mxu0 0.0
        %871 = vmatprep.subr.mxu0 0.0
        %872 = vmatpush1.xpose.msra.mxu0 0.0
        %873 = vmatprep.subr.mxu0 0.0
        %874 = vmatpush1.xpose.msra.mxu0 0.0
        %875 = vmatprep.subr.mxu0 0.0
        %876 = vmatpush1.xpose.msra.mxu0 0.0
        %877 = vmatprep.subr.mxu0 0.0
        %878 = vmatpush1.xpose.msra.mxu0 0.0
        %879 = vmatprep.subr.mxu0 0.0
        %880 = vmatpush1.xpose.msra.mxu0 0.0
        %881 = vmatprep.subr.mxu0 0.0
        %882 = vmatpush1.xpose.msra.mxu0 0.0
        %883 = vmatprep.subr.mxu0 0.0
        %884 = vmatpush1.xpose.msra.mxu0 0.0
        %885 = vmatprep.subr.mxu0 0.0
        %886 = vmatpush1.xpose.msra.mxu0 0.0
        %887 = vmatprep.subr.mxu0 0.0
        %888 = vmatpush1.xpose.msra.mxu0 0.0
        %889 = vmatprep.subr.mxu0 0.0
        %890 = vmatpush1.xpose.msra.mxu0 0.0
        %891 = vmatprep.subr.mxu0 0.0
        %892 = vmatpush1.xpose.msra.mxu0 0.0
        %893 = vmatprep.subr.mxu0 0.0
        %894 = vmatpush1.xpose.msra.mxu0 0.0
        %895 = vmatprep.subr.mxu0 0.0
        %896 = vmatpush1.xpose.msra.mxu0 0.0
        %897 = vmatprep.subr.mxu0 0.0
        %898 = vmatpush1.xpose.msra.mxu0 0.0
        %899 = vmatprep.subr.mxu0 0.0
        %900 = vmatpush1.xpose.msra.mxu0 0.0
        %901 = vmatprep.subr.mxu0 0.0
        %902 = vmatpush1.xpose.msra.mxu0 0.0
        %903 = vmatprep.subr.mxu0 0.0
        %904 = vmatpush1.xpose.msra.mxu0 0.0
        %905 = vmatprep.subr.mxu0 0.0
        %906 = vmatpush1.xpose.msra.mxu0 0.0
        %907 = vmatprep.subr.mxu0 0.0
        %908 = vmatpush1.xpose.msra.mxu0 0.0
        %909 = vmatprep.subr.mxu0 0.0
        %910 = vmatpush1.xpose.msra.mxu0 0.0
        %911 = vmatprep.subr.mxu0 0.0
        %912 = vmatpush1.xpose.msra.mxu0 0.0
        %913 = vmatprep.subr.mxu0 0.0
        %914 = vmatpush1.xpose.msra.mxu0 0.0
        %915 = vmatprep.subr.mxu0 0.0
        %916 = vmatpush1.xpose.msra.mxu0 0.0
        %917 = vmatprep.subr.mxu0 0.0
        %918 = vmatpush1.xpose.msra.mxu0 0.0
        %919 = vmatprep.subr.mxu0 0.0
        %920 = vmatpush1.xpose.msra.mxu0 0.0
        %921 = vmatprep.subr.mxu0 0.0
        %922 = vmatpush1.xpose.msra.mxu0 0.0
        %923 = vmatprep.subr.mxu0 0.0
        %924 = vmatpush1.xpose.msra.mxu0 0.0
        %925 = vmatprep.mubr.f32.mxu0 0.0
        %926 = vmatmul.mubr.f32.gmra.mrb[0].mxu0 %v857
        %v927 = vpop.f32.mrb[0].mxu0
        %v928 = vadd.f32 0.0, %v927
        %v929 = vpop.f32.mrb[0].mxu0
        %930 = vdwg.mxu0
        %932 = vrot.lane.b32.xlu0 %v688, 96
        %v933 = vpop.permute.xlu0 %932
        %v934 = vsel %vm702, %v688, 0
        %v936 = vsel %vm702, %v933, 0
        %938 = vmatprep.subr.mxu0 0.0
        %939 = vmatpush1.xpose.msra.mxu0 %v936
        %940 = vmatprep.subr.mxu0 0.0
        %941 = vmatpush1.xpose.msra.mxu0 0.0
        %942 = vmatprep.subr.mxu0 0.0
        %943 = vmatpush1.xpose.msra.mxu0 0.0
        %944 = vmatprep.subr.mxu0 0.0
        %945 = vmatpush1.xpose.msra.mxu0 0.0
        %946 = vmatprep.subr.mxu0 0.0
        %947 = vmatpush1.xpose.msra.mxu0 0.0
        %948 = vmatprep.subr.mxu0 0.0
        %949 = vmatpush1.xpose.msra.mxu0 0.0
        %950 = vmatprep.subr.mxu0 0.0
        %951 = vmatpush1.xpose.msra.mxu0 0.0
        %952 = vmatprep.subr.mxu0 0.0
        %953 = vmatpush1.xpose.msra.mxu0 0.0
        %954 = vmatprep.subr.mxu0 0.0
        %955 = vmatpush1.xpose.msra.mxu0 0.0
        %956 = vmatprep.subr.mxu0 0.0
        %957 = vmatpush1.xpose.msra.mxu0 0.0
        %958 = vmatprep.subr.mxu0 0.0
        %959 = vmatpush1.xpose.msra.mxu0 0.0
        %960 = vmatprep.subr.mxu0 0.0
        %961 = vmatpush1.xpose.msra.mxu0 0.0
        %962 = vmatprep.subr.mxu0 0.0
        %963 = vmatpush1.xpose.msra.mxu0 0.0
        %964 = vmatprep.subr.mxu0 0.0
        %965 = vmatpush1.xpose.msra.mxu0 0.0
        %966 = vmatprep.subr.mxu0 0.0
        %967 = vmatpush1.xpose.msra.mxu0 0.0
        %968 = vmatprep.subr.mxu0 0.0
        %969 = vmatpush1.xpose.msra.mxu0 0.0
        %970 = vmatprep.subr.mxu0 0.0
        %971 = vmatpush1.xpose.msra.mxu0 0.0
        %972 = vmatprep.subr.mxu0 0.0
        %973 = vmatpush1.xpose.msra.mxu0 0.0
        %974 = vmatprep.subr.mxu0 0.0
        %975 = vmatpush1.xpose.msra.mxu0 0.0
        %976 = vmatprep.subr.mxu0 0.0
        %977 = vmatpush1.xpose.msra.mxu0 0.0
        %978 = vmatprep.subr.mxu0 0.0
        %979 = vmatpush1.xpose.msra.mxu0 0.0
        %980 = vmatprep.subr.mxu0 0.0
        %981 = vmatpush1.xpose.msra.mxu0 0.0
        %982 = vmatprep.subr.mxu0 0.0
        %983 = vmatpush1.xpose.msra.mxu0 0.0
        %984 = vmatprep.subr.mxu0 0.0
        %985 = vmatpush1.xpose.msra.mxu0 0.0
        %986 = vmatprep.subr.mxu0 0.0
        %987 = vmatpush1.xpose.msra.mxu0 0.0
        %988 = vmatprep.subr.mxu0 0.0
        %989 = vmatpush1.xpose.msra.mxu0 0.0
        %990 = vmatprep.subr.mxu0 0.0
        %991 = vmatpush1.xpose.msra.mxu0 0.0
        %992 = vmatprep.subr.mxu0 0.0
        %993 = vmatpush1.xpose.msra.mxu0 0.0
        %994 = vmatprep.subr.mxu0 0.0
        %995 = vmatpush1.xpose.msra.mxu0 0.0
        %996 = vmatprep.subr.mxu0 0.0
        %997 = vmatpush1.xpose.msra.mxu0 0.0
        %998 = vmatprep.subr.mxu0 0.0
        %999 = vmatpush1.xpose.msra.mxu0 0.0
        %1000 = vmatprep.subr.mxu0 0.0
        %1001 = vmatpush1.xpose.msra.mxu0 0.0
        %1002 = vmatprep.mubr.f32.mxu0 0.0
        %1003 = vmatmul.mubr.f32.gmra.mrb[0].mxu0 %v934
        %v1004 = vpop.f32.mrb[0].mxu0
        %v1005 = vadd.f32 0.0, %v1004
        %v1006 = vpop.f32.mrb[0].mxu0
        %1007 = vdwg.mxu0
        %v1008 = vmul.f32 %v774, 0.35355338
        %v1009 = vmul.f32 %v851, 0.35355338
        %v1010 = vmul.f32 %v928, 0.35355338
        %v1011 = vmul.f32 %v1005, 0.35355338
        %v1012 = vsel %vm695, -1e+09, %v1008
        %v1013 = vsel %vm696, -1e+09, %v1009
        %v1014 = vsel %vm697, -1e+09, %v1010
        %v1015 = vsel %vm698, -1e+09, %v1011
        %v1016 = vsel %vm702, %v1012, -inf
        %1017 = vmax.xlane.f32.xlu0 %v1016
        %v1018 = vpop.xlane.xlu0 %1017
        %v1019 = vsel %vm702, %v1013, -inf
        %1020 = vmax.xlane.f32.xlu0 %v1019
        %v1021 = vpop.xlane.xlu0 %1020
        %v1022 = vsel %vm702, %v1014, -inf
        %1023 = vmax.xlane.f32.xlu0 %v1022
        %v1024 = vpop.xlane.xlu0 %1023
        %v1025 = vsel %vm702, %v1015, -inf
        %1026 = vmax.xlane.f32.xlu0 %v1025
        %v1027 = vpop.xlane.xlu0 %1026
        %v1028 = vsub.f32 %v1012, %v1018
        %v1029 = vsub.f32 %v1013, %v1021
        %v1030 = vsub.f32 %v1014, %v1024
        %v1031 = vsub.f32 %v1015, %v1027
        %v1032 = vmul.f32 %v1028, 1.442695
        %v1033 = vpow.pop %v1032
        %v1034 = vmul.f32 %v1029, 1.442695
        %v1035 = vpow.pop %v1034
        %v1036 = vmul.f32 %v1030, 1.442695
        %v1037 = vpow.pop %v1036
        %v1038 = vmul.f32 %v1031, 1.442695
        %v1039 = vpow.pop %v1038
        %v1040 = vsel %vm702, %v1033, 0.0
        %1041 = vadd.xlane.f32.xlu0 %v1040
        %v1042 = vpop.xlane.xlu0 %1041
        %v1043 = vsel %vm702, %v1035, 0.0
        %1044 = vadd.xlane.f32.xlu0 %v1043
        %v1045 = vpop.xlane.xlu0 %1044
        %v1046 = vsel %vm702, %v1037, 0.0
        %1047 = vadd.xlane.f32.xlu0 %v1046
        %v1048 = vpop.xlane.xlu0 %1047
        %v1049 = vsel %vm702, %v1039, 0.0
        %1050 = vadd.xlane.f32.xlu0 %v1049
        %v1051 = vpop.xlane.xlu0 %1050
        %v1052 = vrcp.pop %v1042
        %v1053 = vmul.f32 %v1033, %v1052
        %v1054 = vrcp.pop %v1045
        %v1055 = vmul.f32 %v1035, %v1054
        %v1056 = vrcp.pop %v1048
        %v1057 = vmul.f32 %v1037, %v1056
        %v1058 = vrcp.pop %v1051
        %v1059 = vmul.f32 %v1039, %v1058
        %1060 = vst.msk [vmem:[%s568] sm:$0xff] %vm702, %v1053
        %1061 = vst.msk [vmem:[%s568 + $0x20] sm:$0xff] %vm702, %v1055
        %1062 = vst.msk [vmem:[%s568 + $0x40] sm:$0xff] %vm702, %v1057
        %1063 = vst.msk [vmem:[%s568 + $0x60] sm:$0xff] %vm702, %v1059
        %1064 = vrot.lane.b32.xlu0 %v673, 64
        %v1065 = vpop.permute.xlu0 %1064
        %v1068 = vsel %vm702, %v1053, 0
        %1070 = vmatprep.subr.mxu0 0.0
        %1071 = vmatpush1.msra.mxu0 %v1065
        %1072 = vmatprep.subr.mxu0 0.0
        %1073 = vmatpush1.msra.mxu0 0.0
        %1074 = vmatprep.subr.mxu0 0.0
        %1075 = vmatpush1.msra.mxu0 0.0
        %1076 = vmatprep.subr.mxu0 0.0
        %1077 = vmatpush1.msra.mxu0 0.0
        %1078 = vmatprep.subr.mxu0 0.0
        %1079 = vmatpush1.msra.mxu0 0.0
        %1080 = vmatprep.subr.mxu0 0.0
        %1081 = vmatpush1.msra.mxu0 0.0
        %1082 = vmatprep.subr.mxu0 0.0
        %1083 = vmatpush1.msra.mxu0 0.0
        %1084 = vmatprep.subr.mxu0 0.0
        %1085 = vmatpush1.msra.mxu0 0.0
        %1086 = vmatprep.subr.mxu0 0.0
        %1087 = vmatpush1.msra.mxu0 0.0
        %1088 = vmatprep.subr.mxu0 0.0
        %1089 = vmatpush1.msra.mxu0 0.0
        %1090 = vmatprep.subr.mxu0 0.0
        %1091 = vmatpush1.msra.mxu0 0.0
        %1092 = vmatprep.subr.mxu0 0.0
        %1093 = vmatpush1.msra.mxu0 0.0
        %1094 = vmatprep.subr.mxu0 0.0
        %1095 = vmatpush1.msra.mxu0 0.0
        %1096 = vmatprep.subr.mxu0 0.0
        %1097 = vmatpush1.msra.mxu0 0.0
        %1098 = vmatprep.subr.mxu0 0.0
        %1099 = vmatpush1.msra.mxu0 0.0
        %1100 = vmatprep.subr.mxu0 0.0
        %1101 = vmatpush1.msra.mxu0 0.0
        %1102 = vmatprep.subr.mxu0 0.0
        %1103 = vmatpush1.msra.mxu0 0.0
        %1104 = vmatprep.subr.mxu0 0.0
        %1105 = vmatpush1.msra.mxu0 0.0
        %1106 = vmatprep.subr.mxu0 0.0
        %1107 = vmatpush1.msra.mxu0 0.0
        %1108 = vmatprep.subr.mxu0 0.0
        %1109 = vmatpush1.msra.mxu0 0.0
        %1110 = vmatprep.subr.mxu0 0.0
        %1111 = vmatpush1.msra.mxu0 0.0
        %1112 = vmatprep.subr.mxu0 0.0
        %1113 = vmatpush1.msra.mxu0 0.0
        %1114 = vmatprep.subr.mxu0 0.0
        %1115 = vmatpush1.msra.mxu0 0.0
        %1116 = vmatprep.subr.mxu0 0.0
        %1117 = vmatpush1.msra.mxu0 0.0
        %1118 = vmatprep.subr.mxu0 0.0
        %1119 = vmatpush1.msra.mxu0 0.0
        %1120 = vmatprep.subr.mxu0 0.0
        %1121 = vmatpush1.msra.mxu0 0.0
        %1122 = vmatprep.subr.mxu0 0.0
        %1123 = vmatpush1.msra.mxu0 0.0
        %1124 = vmatprep.subr.mxu0 0.0
        %1125 = vmatpush1.msra.mxu0 0.0
        %1126 = vmatprep.subr.mxu0 0.0
        %1127 = vmatpush1.msra.mxu0 0.0
        %1128 = vmatprep.subr.mxu0 0.0
        %1129 = vmatpush1.msra.mxu0 0.0
        %1130 = vmatprep.subr.mxu0 0.0
        %1131 = vmatpush1.msra.mxu0 0.0
        %1132 = vmatprep.subr.mxu0 0.0
        %1133 = vmatpush1.msra.mxu0 0.0
        %1134 = vmatprep.mubr.f32.mxu0 0.0
        %1135 = vmatmul.mubr.f32.gmra.mrb[0].mxu0 %v1068
        %v1136 = vpop.f32.mrb[0].mxu0
        %v1137 = vadd.f32 0.0, %v1136
        %v1138 = vpop.f32.mrb[0].mxu0
        %1139 = vdwg.mxu0
        %1140 = vrot.lane.b32.xlu0 %v678, 64
        %v1141 = vpop.permute.xlu0 %1140
        %v1144 = vsel %vm702, %v1055, 0
        %1146 = vmatprep.subr.mxu0 0.0
        %1147 = vmatpush1.msra.mxu0 %v1141
        %1148 = vmatprep.subr.mxu0 0.0
        %1149 = vmatpush1.msra.mxu0 0.0
        %1150 = vmatprep.subr.mxu0 0.0
        %1151 = vmatpush1.msra.mxu0 0.0
        %1152 = vmatprep.subr.mxu0 0.0
        %1153 = vmatpush1.msra.mxu0 0.0
        %1154 = vmatprep.subr.mxu0 0.0
        %1155 = vmatpush1.msra.mxu0 0.0
        %1156 = vmatprep.subr.mxu0 0.0
        %1157 = vmatpush1.msra.mxu0 0.0
        %1158 = vmatprep.subr.mxu0 0.0
        %1159 = vmatpush1.msra.mxu0 0.0
        %1160 = vmatprep.subr.mxu0 0.0
        %1161 = vmatpush1.msra.mxu0 0.0
        %1162 = vmatprep.subr.mxu0 0.0
        %1163 = vmatpush1.msra.mxu0 0.0
        %1164 = vmatprep.subr.mxu0 0.0
        %1165 = vmatpush1.msra.mxu0 0.0
        %1166 = vmatprep.subr.mxu0 0.0
        %1167 = vmatpush1.msra.mxu0 0.0
        %1168 = vmatprep.subr.mxu0 0.0
        %1169 = vmatpush1.msra.mxu0 0.0
        %1170 = vmatprep.subr.mxu0 0.0
        %1171 = vmatpush1.msra.mxu0 0.0
        %1172 = vmatprep.subr.mxu0 0.0
        %1173 = vmatpush1.msra.mxu0 0.0
        %1174 = vmatprep.subr.mxu0 0.0
        %1175 = vmatpush1.msra.mxu0 0.0
        %1176 = vmatprep.subr.mxu0 0.0
        %1177 = vmatpush1.msra.mxu0 0.0
        %1178 = vmatprep.subr.mxu0 0.0
        %1179 = vmatpush1.msra.mxu0 0.0
        %1180 = vmatprep.subr.mxu0 0.0
        %1181 = vmatpush1.msra.mxu0 0.0
        %1182 = vmatprep.subr.mxu0 0.0
        %1183 = vmatpush1.msra.mxu0 0.0
        %1184 = vmatprep.subr.mxu0 0.0
        %1185 = vmatpush1.msra.mxu0 0.0
        %1186 = vmatprep.subr.mxu0 0.0
        %1187 = vmatpush1.msra.mxu0 0.0
        %1188 = vmatprep.subr.mxu0 0.0
        %1189 = vmatpush1.msra.mxu0 0.0
        %1190 = vmatprep.subr.mxu0 0.0
        %1191 = vmatpush1.msra.mxu0 0.0
        %1192 = vmatprep.subr.mxu0 0.0
        %1193 = vmatpush1.msra.mxu0 0.0
        %1194 = vmatprep.subr.mxu0 0.0
        %1195 = vmatpush1.msra.mxu0 0.0
        %1196 = vmatprep.subr.mxu0 0.0
        %1197 = vmatpush1.msra.mxu0 0.0
        %1198 = vmatprep.subr.mxu0 0.0
        %1199 = vmatpush1.msra.mxu0 0.0
        %1200 = vmatprep.subr.mxu0 0.0
        %1201 = vmatpush1.msra.mxu0 0.0
        %1202 = vmatprep.subr.mxu0 0.0
        %1203 = vmatpush1.msra.mxu0 0.0
        %1204 = vmatprep.subr.mxu0 0.0
        %1205 = vmatpush1.msra.mxu0 0.0
        %1206 = vmatprep.subr.mxu0 0.0
        %1207 = vmatpush1.msra.mxu0 0.0
        %1208 = vmatprep.subr.mxu0 0.0
        %1209 = vmatpush1.msra.mxu0 0.0
        %1210 = vmatprep.mubr.f32.mxu0 0.0
        %1211 = vmatmul.mubr.f32.gmra.mrb[0].mxu0 %v1144
        %v1212 = vpop.f32.mrb[0].mxu0
        %v1213 = vadd.f32 0.0, %v1212
        %v1214 = vpop.f32.mrb[0].mxu0
        %1215 = vdwg.mxu0
        %1216 = vrot.lane.b32.xlu0 %v683, 64
        %v1217 = vpop.permute.xlu0 %1216
        %v1220 = vsel %vm702, %v1057, 0
        %1222 = vmatprep.subr.mxu0 0.0
        %1223 = vmatpush1.msra.mxu0 %v1217
        %1224 = vmatprep.subr.mxu0 0.0
        %1225 = vmatpush1.msra.mxu0 0.0
        %1226 = vmatprep.subr.mxu0 0.0
        %1227 = vmatpush1.msra.mxu0 0.0
        %1228 = vmatprep.subr.mxu0 0.0
        %1229 = vmatpush1.msra.mxu0 0.0
        %1230 = vmatprep.subr.mxu0 0.0
        %1231 = vmatpush1.msra.mxu0 0.0
        %1232 = vmatprep.subr.mxu0 0.0
        %1233 = vmatpush1.msra.mxu0 0.0
        %1234 = vmatprep.subr.mxu0 0.0
        %1235 = vmatpush1.msra.mxu0 0.0
        %1236 = vmatprep.subr.mxu0 0.0
        %1237 = vmatpush1.msra.mxu0 0.0
        %1238 = vmatprep.subr.mxu0 0.0
        %1239 = vmatpush1.msra.mxu0 0.0
        %1240 = vmatprep.subr.mxu0 0.0
        %1241 = vmatpush1.msra.mxu0 0.0
        %1242 = vmatprep.subr.mxu0 0.0
        %1243 = vmatpush1.msra.mxu0 0.0
        %1244 = vmatprep.subr.mxu0 0.0
        %1245 = vmatpush1.msra.mxu0 0.0
        %1246 = vmatprep.subr.mxu0 0.0
        %1247 = vmatpush1.msra.mxu0 0.0
        %1248 = vmatprep.subr.mxu0 0.0
        %1249 = vmatpush1.msra.mxu0 0.0
        %1250 = vmatprep.subr.mxu0 0.0
        %1251 = vmatpush1.msra.mxu0 0.0
        %1252 = vmatprep.subr.mxu0 0.0
        %1253 = vmatpush1.msra.mxu0 0.0
        %1254 = vmatprep.subr.mxu0 0.0
        %1255 = vmatpush1.msra.mxu0 0.0
        %1256 = vmatprep.subr.mxu0 0.0
        %1257 = vmatpush1.msra.mxu0 0.0
        %1258 = vmatprep.subr.mxu0 0.0
        %1259 = vmatpush1.msra.mxu0 0.0
        %1260 = vmatprep.subr.mxu0 0.0
        %1261 = vmatpush1.msra.mxu0 0.0
        %1262 = vmatprep.subr.mxu0 0.0
        %1263 = vmatpush1.msra.mxu0 0.0
        %1264 = vmatprep.subr.mxu0 0.0
        %1265 = vmatpush1.msra.mxu0 0.0
        %1266 = vmatprep.subr.mxu0 0.0
        %1267 = vmatpush1.msra.mxu0 0.0
        %1268 = vmatprep.subr.mxu0 0.0
        %1269 = vmatpush1.msra.mxu0 0.0
        %1270 = vmatprep.subr.mxu0 0.0
        %1271 = vmatpush1.msra.mxu0 0.0
        %1272 = vmatprep.subr.mxu0 0.0
        %1273 = vmatpush1.msra.mxu0 0.0
        %1274 = vmatprep.subr.mxu0 0.0
        %1275 = vmatpush1.msra.mxu0 0.0
        %1276 = vmatprep.subr.mxu0 0.0
        %1277 = vmatpush1.msra.mxu0 0.0
        %1278 = vmatprep.subr.mxu0 0.0
        %1279 = vmatpush1.msra.mxu0 0.0
        %1280 = vmatprep.subr.mxu0 0.0
        %1281 = vmatpush1.msra.mxu0 0.0
        %1282 = vmatprep.subr.mxu0 0.0
        %1283 = vmatpush1.msra.mxu0 0.0
        %1284 = vmatprep.subr.mxu0 0.0
        %1285 = vmatpush1.msra.mxu0 0.0
        %1286 = vmatprep.mubr.f32.mxu0 0.0
        %1287 = vmatmul.mubr.f32.gmra.mrb[0].mxu0 %v1220
        %v1288 = vpop.f32.mrb[0].mxu0
        %v1289 = vadd.f32 0.0, %v1288
        %v1290 = vpop.f32.mrb[0].mxu0
        %1291 = vdwg.mxu0
        %1292 = vrot.lane.b32.xlu0 %v688, 64
        %v1293 = vpop.permute.xlu0 %1292
        %v1296 = vsel %vm702, %v1059, 0
        %1298 = vmatprep.subr.mxu0 0.0
        %1299 = vmatpush1.msra.mxu0 %v1293
        %1300 = vmatprep.subr.mxu0 0.0
        %1301 = vmatpush1.msra.mxu0 0.0
        %1302 = vmatprep.subr.mxu0 0.0
        %1303 = vmatpush1.msra.mxu0 0.0
        %1304 = vmatprep.subr.mxu0 0.0
        %1305 = vmatpush1.msra.mxu0 0.0
        %1306 = vmatprep.subr.mxu0 0.0
        %1307 = vmatpush1.msra.mxu0 0.0
        %1308 = vmatprep.subr.mxu0 0.0
        %1309 = vmatpush1.msra.mxu0 0.0
        %1310 = vmatprep.subr.mxu0 0.0
        %1311 = vmatpush1.msra.mxu0 0.0
        %1312 = vmatprep.subr.mxu0 0.0
        %1313 = vmatpush1.msra.mxu0 0.0
        %1314 = vmatprep.subr.mxu0 0.0
        %1315 = vmatpush1.msra.mxu0 0.0
        %1316 = vmatprep.subr.mxu0 0.0
        %1317 = vmatpush1.msra.mxu0 0.0
        %1318 = vmatprep.subr.mxu0 0.0
        %1319 = vmatpush1.msra.mxu0 0.0
        %1320 = vmatprep.subr.mxu0 0.0
        %1321 = vmatpush1.msra.mxu0 0.0
        %1322 = vmatprep.subr.mxu0 0.0
        %1323 = vmatpush1.msra.mxu0 0.0
        %1324 = vmatprep.subr.mxu0 0.0
        %1325 = vmatpush1.msra.mxu0 0.0
        %1326 = vmatprep.subr.mxu0 0.0
        %1327 = vmatpush1.msra.mxu0 0.0
        %1328 = vmatprep.subr.mxu0 0.0
        %1329 = vmatpush1.msra.mxu0 0.0
        %1330 = vmatprep.subr.mxu0 0.0
        %1331 = vmatpush1.msra.mxu0 0.0
        %1332 = vmatprep.subr.mxu0 0.0
        %1333 = vmatpush1.msra.mxu0 0.0
        %1334 = vmatprep.subr.mxu0 0.0
        %1335 = vmatpush1.msra.mxu0 0.0
        %1336 = vmatprep.subr.mxu0 0.0
        %1337 = vmatpush1.msra.mxu0 0.0
        %1338 = vmatprep.subr.mxu0 0.0
        %1339 = vmatpush1.msra.mxu0 0.0
        %1340 = vmatprep.subr.mxu0 0.0
        %1341 = vmatpush1.msra.mxu0 0.0
        %1342 = vmatprep.subr.mxu0 0.0
        %1343 = vmatpush1.msra.mxu0 0.0
        %1344 = vmatprep.subr.mxu0 0.0
        %1345 = vmatpush1.msra.mxu0 0.0
        %1346 = vmatprep.subr.mxu0 0.0
        %1347 = vmatpush1.msra.mxu0 0.0
        %1348 = vmatprep.subr.mxu0 0.0
        %1349 = vmatpush1.msra.mxu0 0.0
        %1350 = vmatprep.subr.mxu0 0.0
        %1351 = vmatpush1.msra.mxu0 0.0
        %1352 = vmatprep.subr.mxu0 0.0
        %1353 = vmatpush1.msra.mxu0 0.0
        %1354 = vmatprep.subr.mxu0 0.0
        %1355 = vmatpush1.msra.mxu0 0.0
        %1356 = vmatprep.subr.mxu0 0.0
        %1357 = vmatpush1.msra.mxu0 0.0
        %1358 = vmatprep.subr.mxu0 0.0
        %1359 = vmatpush1.msra.mxu0 0.0
        %1360 = vmatprep.subr.mxu0 0.0
        %1361 = vmatpush1.msra.mxu0 0.0
        %1362 = vmatprep.mubr.f32.mxu0 0.0
        %1363 = vmatmul.mubr.f32.gmra.mrb[0].mxu0 %v1296
        %v1364 = vpop.f32.mrb[0].mxu0
        %v1365 = vadd.f32 0.0, %v1364
        %v1366 = vpop.f32.mrb[0].mxu0
        %1367 = vdwg.mxu0
        %v1368 = vld [vmem:[#allocation5] sm:$0xff]
        %1369 = vrot.lane.b32.xlu0 %v673, 120
        %v1370 = vpop.permute.xlu0 %1369
        %1371 = vrot.lane.b32.xlu0 %v673, 88
        %v1372 = vpop.permute.xlu0 %1371
        %v1373 = vsel %vm702, %v1370, 0
        %v1375 = vsel %vm702, %v1372, 0
        %1377 = vmatprep.subr.mxu0 0.0
        %1378 = vmatpush1.xpose.msra.mxu0 %v1375
        %1379 = vmatprep.subr.mxu0 0.0
        %1380 = vmatpush1.xpose.msra.mxu0 0.0
        %1381 = vmatprep.subr.mxu0 0.0
        %1382 = vmatpush1.xpose.msra.mxu0 0.0
        %1383 = vmatprep.subr.mxu0 0.0
        %1384 = vmatpush1.xpose.msra.mxu0 0.0
        %1385 = vmatprep.subr.mxu0 0.0
        %1386 = vmatpush1.xpose.msra.mxu0 0.0
        %1387 = vmatprep.subr.mxu0 0.0
        %1388 = vmatpush1.xpose.msra.mxu0 0.0
        %1389 = vmatprep.subr.mxu0 0.0
        %1390 = vmatpush1.xpose.msra.mxu0 0.0
        %1391 = vmatprep.subr.mxu0 0.0
        %1392 = vmatpush1.xpose.msra.mxu0 0.0
        %1393 = vmatprep.subr.mxu0 0.0
        %1394 = vmatpush1.xpose.msra.mxu0 0.0
        %1395 = vmatprep.subr.mxu0 0.0
        %1396 = vmatpush1.xpose.msra.mxu0 0.0
        %1397 = vmatprep.subr.mxu0 0.0
        %1398 = vmatpush1.xpose.msra.mxu0 0.0
        %1399 = vmatprep.subr.mxu0 0.0
        %1400 = vmatpush1.xpose.msra.mxu0 0.0
        %1401 = vmatprep.subr.mxu0 0.0
        %1402 = vmatpush1.xpose.msra.mxu0 0.0
        %1403 = vmatprep.subr.mxu0 0.0
        %1404 = vmatpush1.xpose.msra.mxu0 0.0
        %1405 = vmatprep.subr.mxu0 0.0
        %1406 = vmatpush1.xpose.msra.mxu0 0.0
        %1407 = vmatprep.subr.mxu0 0.0
        %1408 = vmatpush1.xpose.msra.mxu0 0.0
        %1409 = vmatprep.subr.mxu0 0.0
        %1410 = vmatpush1.xpose.msra.mxu0 0.0
        %1411 = vmatprep.subr.mxu0 0.0
        %1412 = vmatpush1.xpose.msra.mxu0 0.0
        %1413 = vmatprep.subr.mxu0 0.0
        %1414 = vmatpush1.xpose.msra.mxu0 0.0
        %1415 = vmatprep.subr.mxu0 0.0
        %1416 = vmatpush1.xpose.msra.mxu0 0.0
        %1417 = vmatprep.subr.mxu0 0.0
        %1418 = vmatpush1.xpose.msra.mxu0 0.0
        %1419 = vmatprep.subr.mxu0 0.0
        %1420 = vmatpush1.xpose.msra.mxu0 0.0
        %1421 = vmatprep.subr.mxu0 0.0
        %1422 = vmatpush1.xpose.msra.mxu0 0.0
        %1423 = vmatprep.subr.mxu0 0.0
        %1424 = vmatpush1.xpose.msra.mxu0 0.0
        %1425 = vmatprep.subr.mxu0 0.0
        %1426 = vmatpush1.xpose.msra.mxu0 0.0
        %1427 = vmatprep.subr.mxu0 0.0
        %1428 = vmatpush1.xpose.msra.mxu0 0.0
        %1429 = vmatprep.subr.mxu0 0.0
        %1430 = vmatpush1.xpose.msra.mxu0 0.0
        %1431 = vmatprep.subr.mxu0 0.0
        %1432 = vmatpush1.xpose.msra.mxu0 0.0
        %1433 = vmatprep.subr.mxu0 0.0
        %1434 = vmatpush1.xpose.msra.mxu0 0.0
        %1435 = vmatprep.subr.mxu0 0.0
        %1436 = vmatpush1.xpose.msra.mxu0 0.0
        %1437 = vmatprep.subr.mxu0 0.0
        %1438 = vmatpush1.xpose.msra.mxu0 0.0
        %1439 = vmatprep.subr.mxu0 0.0
        %1440 = vmatpush1.xpose.msra.mxu0 0.0
        %1441 = vmatprep.mubr.f32.mxu0 0.0
        %1442 = vmatmul.mubr.f32.gmra.mrb[0].mxu0 %v1373
        %v1443 = vpop.f32.mrb[0].mxu0
        %v1444 = vadd.f32 0.0, %v1443
        %v1445 = vpop.f32.mrb[0].mxu0
        %1446 = vdwg.mxu0
        %1447 = vrot.lane.b32.xlu0 %v678, 120
        %v1448 = vpop.permute.xlu0 %1447
        %1449 = vrot.lane.b32.xlu0 %v678, 88
        %v1450 = vpop.permute.xlu0 %1449
        %v1451 = vsel %vm702, %v1448, 0
        %v1453 = vsel %vm702, %v1450, 0
        %1455 = vmatprep.subr.mxu0 0.0
        %1456 = vmatpush1.xpose.msra.mxu0 %v1453
        %1457 = vmatprep.subr.mxu0 0.0
        %1458 = vmatpush1.xpose.msra.mxu0 0.0
        %1459 = vmatprep.subr.mxu0 0.0
        %1460 = vmatpush1.xpose.msra.mxu0 0.0
        %1461 = vmatprep.subr.mxu0 0.0
        %1462 = vmatpush1.xpose.msra.mxu0 0.0
        %1463 = vmatprep.subr.mxu0 0.0
        %1464 = vmatpush1.xpose.msra.mxu0 0.0
        %1465 = vmatprep.subr.mxu0 0.0
        %1466 = vmatpush1.xpose.msra.mxu0 0.0
        %1467 = vmatprep.subr.mxu0 0.0
        %1468 = vmatpush1.xpose.msra.mxu0 0.0
        %1469 = vmatprep.subr.mxu0 0.0
        %1470 = vmatpush1.xpose.msra.mxu0 0.0
        %1471 = vmatprep.subr.mxu0 0.0
        %1472 = vmatpush1.xpose.msra.mxu0 0.0
        %1473 = vmatprep.subr.mxu0 0.0
        %1474 = vmatpush1.xpose.msra.mxu0 0.0
        %1475 = vmatprep.subr.mxu0 0.0
        %1476 = vmatpush1.xpose.msra.mxu0 0.0
        %1477 = vmatprep.subr.mxu0 0.0
        %1478 = vmatpush1.xpose.msra.mxu0 0.0
        %1479 = vmatprep.subr.mxu0 0.0
        %1480 = vmatpush1.xpose.msra.mxu0 0.0
        %1481 = vmatprep.subr.mxu0 0.0
        %1482 = vmatpush1.xpose.msra.mxu0 0.0
        %1483 = vmatprep.subr.mxu0 0.0
        %1484 = vmatpush1.xpose.msra.mxu0 0.0
        %1485 = vmatprep.subr.mxu0 0.0
        %1486 = vmatpush1.xpose.msra.mxu0 0.0
        %1487 = vmatprep.subr.mxu0 0.0
        %1488 = vmatpush1.xpose.msra.mxu0 0.0
        %1489 = vmatprep.subr.mxu0 0.0
        %1490 = vmatpush1.xpose.msra.mxu0 0.0
        %1491 = vmatprep.subr.mxu0 0.0
        %1492 = vmatpush1.xpose.msra.mxu0 0.0
        %1493 = vmatprep.subr.mxu0 0.0
        %1494 = vmatpush1.xpose.msra.mxu0 0.0
        %1495 = vmatprep.subr.mxu0 0.0
        %1496 = vmatpush1.xpose.msra.mxu0 0.0
        %1497 = vmatprep.subr.mxu0 0.0
        %1498 = vmatpush1.xpose.msra.mxu0 0.0
        %1499 = vmatprep.subr.mxu0 0.0
        %1500 = vmatpush1.xpose.msra.mxu0 0.0
        %1501 = vmatprep.subr.mxu0 0.0
        %1502 = vmatpush1.xpose.msra.mxu0 0.0
        %1503 = vmatprep.subr.mxu0 0.0
        %1504 = vmatpush1.xpose.msra.mxu0 0.0
        %1505 = vmatprep.subr.mxu0 0.0
        %1506 = vmatpush1.xpose.msra.mxu0 0.0
        %1507 = vmatprep.subr.mxu0 0.0
        %1508 = vmatpush1.xpose.msra.mxu0 0.0
        %1509 = vmatprep.subr.mxu0 0.0
        %1510 = vmatpush1.xpose.msra.mxu0 0.0
        %1511 = vmatprep.subr.mxu0 0.0
        %1512 = vmatpush1.xpose.msra.mxu0 0.0
        %1513 = vmatprep.subr.mxu0 0.0
        %1514 = vmatpush1.xpose.msra.mxu0 0.0
        %1515 = vmatprep.subr.mxu0 0.0
        %1516 = vmatpush1.xpose.msra.mxu0 0.0
        %1517 = vmatprep.subr.mxu0 0.0
        %1518 = vmatpush1.xpose.msra.mxu0 0.0
        %1519 = vmatprep.mubr.f32.mxu0 0.0
        %1520 = vmatmul.mubr.f32.gmra.mrb[0].mxu0 %v1451
        %v1521 = vpop.f32.mrb[0].mxu0
        %v1522 = vadd.f32 0.0, %v1521
        %v1523 = vpop.f32.mrb[0].mxu0
        %1524 = vdwg.mxu0
        %1525 = vrot.lane.b32.xlu0 %v683, 120
        %v1526 = vpop.permute.xlu0 %1525
        %1527 = vrot.lane.b32.xlu0 %v683, 88
        %v1528 = vpop.permute.xlu0 %1527
        %v1529 = vsel %vm702, %v1526, 0
        %v1531 = vsel %vm702, %v1528, 0
        %1533 = vmatprep.subr.mxu0 0.0
        %1534 = vmatpush1.xpose.msra.mxu0 %v1531
        %1535 = vmatprep.subr.mxu0 0.0
        %1536 = vmatpush1.xpose.msra.mxu0 0.0
        %1537 = vmatprep.subr.mxu0 0.0
        %1538 = vmatpush1.xpose.msra.mxu0 0.0
        %1539 = vmatprep.subr.mxu0 0.0
        %1540 = vmatpush1.xpose.msra.mxu0 0.0
        %1541 = vmatprep.subr.mxu0 0.0
        %1542 = vmatpush1.xpose.msra.mxu0 0.0
        %1543 = vmatprep.subr.mxu0 0.0
        %1544 = vmatpush1.xpose.msra.mxu0 0.0
        %1545 = vmatprep.subr.mxu0 0.0
        %1546 = vmatpush1.xpose.msra.mxu0 0.0
        %1547 = vmatprep.subr.mxu0 0.0
        %1548 = vmatpush1.xpose.msra.mxu0 0.0
        %1549 = vmatprep.subr.mxu0 0.0
        %1550 = vmatpush1.xpose.msra.mxu0 0.0
        %1551 = vmatprep.subr.mxu0 0.0
        %1552 = vmatpush1.xpose.msra.mxu0 0.0
        %1553 = vmatprep.subr.mxu0 0.0
        %1554 = vmatpush1.xpose.msra.mxu0 0.0
        %1555 = vmatprep.subr.mxu0 0.0
        %1556 = vmatpush1.xpose.msra.mxu0 0.0
        %1557 = vmatprep.subr.mxu0 0.0
        %1558 = vmatpush1.xpose.msra.mxu0 0.0
        %1559 = vmatprep.subr.mxu0 0.0
        %1560 = vmatpush1.xpose.msra.mxu0 0.0
        %1561 = vmatprep.subr.mxu0 0.0
        %1562 = vmatpush1.xpose.msra.mxu0 0.0
        %1563 = vmatprep.subr.mxu0 0.0
        %1564 = vmatpush1.xpose.msra.mxu0 0.0
        %1565 = vmatprep.subr.mxu0 0.0
        %1566 = vmatpush1.xpose.msra.mxu0 0.0
        %1567 = vmatprep.subr.mxu0 0.0
        %1568 = vmatpush1.xpose.msra.mxu0 0.0
        %1569 = vmatprep.subr.mxu0 0.0
        %1570 = vmatpush1.xpose.msra.mxu0 0.0
        %1571 = vmatprep.subr.mxu0 0.0
        %1572 = vmatpush1.xpose.msra.mxu0 0.0
        %1573 = vmatprep.subr.mxu0 0.0
        %1574 = vmatpush1.xpose.msra.mxu0 0.0
        %1575 = vmatprep.subr.mxu0 0.0
        %1576 = vmatpush1.xpose.msra.mxu0 0.0
        %1577 = vmatprep.subr.mxu0 0.0
        %1578 = vmatpush1.xpose.msra.mxu0 0.0
        %1579 = vmatprep.subr.mxu0 0.0
        %1580 = vmatpush1.xpose.msra.mxu0 0.0
        %1581 = vmatprep.subr.mxu0 0.0
        %1582 = vmatpush1.xpose.msra.mxu0 0.0
        %1583 = vmatprep.subr.mxu0 0.0
        %1584 = vmatpush1.xpose.msra.mxu0 0.0
        %1585 = vmatprep.subr.mxu0 0.0
        %1586 = vmatpush1.xpose.msra.mxu0 0.0
        %1587 = vmatprep.subr.mxu0 0.0
        %1588 = vmatpush1.xpose.msra.mxu0 0.0
        %1589 = vmatprep.subr.mxu0 0.0
        %1590 = vmatpush1.xpose.msra.mxu0 0.0
        %1591 = vmatprep.subr.mxu0 0.0
        %1592 = vmatpush1.xpose.msra.mxu0 0.0
        %1593 = vmatprep.subr.mxu0 0.0
        %1594 = vmatpush1.xpose.msra.mxu0 0.0
        %1595 = vmatprep.subr.mxu0 0.0
        %1596 = vmatpush1.xpose.msra.mxu0 0.0
        %1597 = vmatprep.mubr.f32.mxu0 0.0
        %1598 = vmatmul.mubr.f32.gmra.mrb[0].mxu0 %v1529
        %v1599 = vpop.f32.mrb[0].mxu0
        %v1600 = vadd.f32 0.0, %v1599
        %v1601 = vpop.f32.mrb[0].mxu0
        %1602 = vdwg.mxu0
        %1603 = vrot.lane.b32.xlu0 %v688, 120
        %v1604 = vpop.permute.xlu0 %1603
        %1605 = vrot.lane.b32.xlu0 %v688, 88
        %v1606 = vpop.permute.xlu0 %1605
        %v1607 = vsel %vm702, %v1604, 0
        %v1609 = vsel %vm702, %v1606, 0
        %1611 = vmatprep.subr.mxu0 0.0
        %1612 = vmatpush1.xpose.msra.mxu0 %v1609
        %1613 = vmatprep.subr.mxu0 0.0
        %1614 = vmatpush1.xpose.msra.mxu0 0.0
        %1615 = vmatprep.subr.mxu0 0.0
        %1616 = vmatpush1.xpose.msra.mxu0 0.0
        %1617 = vmatprep.subr.mxu0 0.0
        %1618 = vmatpush1.xpose.msra.mxu0 0.0
        %1619 = vmatprep.subr.mxu0 0.0
        %1620 = vmatpush1.xpose.msra.mxu0 0.0
        %1621 = vmatprep.subr.mxu0 0.0
        %1622 = vmatpush1.xpose.msra.mxu0 0.0
        %1623 = vmatprep.subr.mxu0 0.0
        %1624 = vmatpush1.xpose.msra.mxu0 0.0
        %1625 = vmatprep.subr.mxu0 0.0
        %1626 = vmatpush1.xpose.msra.mxu0 0.0
        %1627 = vmatprep.subr.mxu0 0.0
        %1628 = vmatpush1.xpose.msra.mxu0 0.0
        %1629 = vmatprep.subr.mxu0 0.0
        %1630 = vmatpush1.xpose.msra.mxu0 0.0
        %1631 = vmatprep.subr.mxu0 0.0
        %1632 = vmatpush1.xpose.msra.mxu0 0.0
        %1633 = vmatprep.subr.mxu0 0.0
        %1634 = vmatpush1.xpose.msra.mxu0 0.0
        %1635 = vmatprep.subr.mxu0 0.0
        %1636 = vmatpush1.xpose.msra.mxu0 0.0
        %1637 = vmatprep.subr.mxu0 0.0
        %1638 = vmatpush1.xpose.msra.mxu0 0.0
        %1639 = vmatprep.subr.mxu0 0.0
        %1640 = vmatpush1.xpose.msra.mxu0 0.0
        %1641 = vmatprep.subr.mxu0 0.0
        %1642 = vmatpush1.xpose.msra.mxu0 0.0
        %1643 = vmatprep.subr.mxu0 0.0
        %1644 = vmatpush1.xpose.msra.mxu0 0.0
        %1645 = vmatprep.subr.mxu0 0.0
        %1646 = vmatpush1.xpose.msra.mxu0 0.0
        %1647 = vmatprep.subr.mxu0 0.0
        %1648 = vmatpush1.xpose.msra.mxu0 0.0
        %1649 = vmatprep.subr.mxu0 0.0
        %1650 = vmatpush1.xpose.msra.mxu0 0.0
        %1651 = vmatprep.subr.mxu0 0.0
        %1652 = vmatpush1.xpose.msra.mxu0 0.0
        %1653 = vmatprep.subr.mxu0 0.0
        %1654 = vmatpush1.xpose.msra.mxu0 0.0
        %1655 = vmatprep.subr.mxu0 0.0
        %1656 = vmatpush1.xpose.msra.mxu0 0.0
        %1657 = vmatprep.subr.mxu0 0.0
        %1658 = vmatpush1.xpose.msra.mxu0 0.0
        %1659 = vmatprep.subr.mxu0 0.0
        %1660 = vmatpush1.xpose.msra.mxu0 0.0
        %1661 = vmatprep.subr.mxu0 0.0
        %1662 = vmatpush1.xpose.msra.mxu0 0.0
        %1663 = vmatprep.subr.mxu0 0.0
        %1664 = vmatpush1.xpose.msra.mxu0 0.0
        %1665 = vmatprep.subr.mxu0 0.0
        %1666 = vmatpush1.xpose.msra.mxu0 0.0
        %1667 = vmatprep.subr.mxu0 0.0
        %1668 = vmatpush1.xpose.msra.mxu0 0.0
        %1669 = vmatprep.subr.mxu0 0.0
        %1670 = vmatpush1.xpose.msra.mxu0 0.0
        %1671 = vmatprep.subr.mxu0 0.0
        %1672 = vmatpush1.xpose.msra.mxu0 0.0
        %1673 = vmatprep.subr.mxu0 0.0
        %1674 = vmatpush1.xpose.msra.mxu0 0.0
        %1675 = vmatprep.mubr.f32.mxu0 0.0
        %1676 = vmatmul.mubr.f32.gmra.mrb[0].mxu0 %v1607
        %v1677 = vpop.f32.mrb[0].mxu0
        %v1678 = vadd.f32 0.0, %v1677
        %v1679 = vpop.f32.mrb[0].mxu0
        %1680 = vdwg.mxu0
        %v1681 = vmul.f32 %v1444, 0.35355338
        %v1682 = vmul.f32 %v1522, 0.35355338
        %v1683 = vmul.f32 %v1600, 0.35355338
        %v1684 = vmul.f32 %v1678, 0.35355338
        %v1685 = vsel %vm695, -1e+09, %v1681
        %v1686 = vsel %vm696, -1e+09, %v1682
        %v1687 = vsel %vm697, -1e+09, %v1683
        %v1688 = vsel %vm698, -1e+09, %v1684
        %v1689 = vsel %vm702, %v1685, -inf
        %1690 = vmax.xlane.f32.xlu0 %v1689
        %v1691 = vpop.xlane.xlu0 %1690
        %v1692 = vsel %vm702, %v1686, -inf
        %1693 = vmax.xlane.f32.xlu0 %v1692
        %v1694 = vpop.xlane.xlu0 %1693
        %v1695 = vsel %vm702, %v1687, -inf
        %1696 = vmax.xlane.f32.xlu0 %v1695
        %v1697 = vpop.xlane.xlu0 %1696
        %v1698 = vsel %vm702, %v1688, -inf
        %1699 = vmax.xlane.f32.xlu0 %v1698
        %v1700 = vpop.xlane.xlu0 %1699
        %v1701 = vsub.f32 %v1685, %v1691
        %v1702 = vsub.f32 %v1686, %v1694
        %v1703 = vsub.f32 %v1687, %v1697
        %v1704 = vsub.f32 %v1688, %v1700
        %v1705 = vmul.f32 %v1701, 1.442695
        %v1706 = vpow.pop %v1705
        %v1707 = vmul.f32 %v1702, 1.442695
        %v1708 = vpow.pop %v1707
        %v1709 = vmul.f32 %v1703, 1.442695
        %v1710 = vpow.pop %v1709
        %v1711 = vmul.f32 %v1704, 1.442695
        %v1712 = vpow.pop %v1711
        %v1713 = vsel %vm702, %v1706, 0.0
        %1714 = vadd.xlane.f32.xlu0 %v1713
        %v1715 = vpop.xlane.xlu0 %1714
        %v1716 = vsel %vm702, %v1708, 0.0
        %1717 = vadd.xlane.f32.xlu0 %v1716
        %v1718 = vpop.xlane.xlu0 %1717
        %v1719 = vsel %vm702, %v1710, 0.0
        %1720 = vadd.xlane.f32.xlu0 %v1719
        %v1721 = vpop.xlane.xlu0 %1720
        %v1722 = vsel %vm702, %v1712, 0.0
        %1723 = vadd.xlane.f32.xlu0 %v1722
        %v1724 = vpop.xlane.xlu0 %1723
        %v1725 = vrcp.pop %v1715
        %v1726 = vmul.f32 %v1706, %v1725
        %v1727 = vrcp.pop %v1718
        %v1728 = vmul.f32 %v1708, %v1727
        %v1729 = vrcp.pop %v1721
        %v1730 = vmul.f32 %v1710, %v1729
        %v1731 = vrcp.pop %v1724
        %v1732 = vmul.f32 %v1712, %v1731
        %s1733 = scalar_lea.vmem %s568, 8 [#allocation9]
        %1734 = vst.msk [vmem:[%s1733] sm:$0xff] %vm702, %v1726
        %1735 = vst.msk [vmem:[%s1733 + $0x20] sm:$0xff] %vm702, %v1728
        %1736 = vst.msk [vmem:[%s1733 + $0x40] sm:$0xff] %vm702, %v1730
        %1737 = vst.msk [vmem:[%s1733 + $0x60] sm:$0xff] %vm702, %v1732
        %1738 = vrot.lane.b32.xlu0 %v673, 56
        %v1739 = vpop.permute.xlu0 %1738
        %v1742 = vsel %vm702, %v1726, 0
        %1744 = vmatprep.subr.mxu0 0.0
        %1745 = vmatpush1.msra.mxu0 %v1739
        %1746 = vmatprep.subr.mxu0 0.0
        %1747 = vmatpush1.msra.mxu0 0.0
        %1748 = vmatprep.subr.mxu0 0.0
        %1749 = vmatpush1.msra.mxu0 0.0
        %1750 = vmatprep.subr.mxu0 0.0
        %1751 = vmatpush1.msra.mxu0 0.0
        %1752 = vmatprep.subr.mxu0 0.0
        %1753 = vmatpush1.msra.mxu0 0.0
        %1754 = vmatprep.subr.mxu0 0.0
        %1755 = vmatpush1.msra.mxu0 0.0
        %1756 = vmatprep.subr.mxu0 0.0
        %1757 = vmatpush1.msra.mxu0 0.0
        %1758 = vmatprep.subr.mxu0 0.0
        %1759 = vmatpush1.msra.mxu0 0.0
        %1760 = vmatprep.subr.mxu0 0.0
        %1761 = vmatpush1.msra.mxu0 0.0
        %1762 = vmatprep.subr.mxu0 0.0
        %1763 = vmatpush1.msra.mxu0 0.0
        %1764 = vmatprep.subr.mxu0 0.0
        %1765 = vmatpush1.msra.mxu0 0.0
        %1766 = vmatprep.subr.mxu0 0.0
        %1767 = vmatpush1.msra.mxu0 0.0
        %1768 = vmatprep.subr.mxu0 0.0
        %1769 = vmatpush1.msra.mxu0 0.0
        %1770 = vmatprep.subr.mxu0 0.0
        %1771 = vmatpush1.msra.mxu0 0.0
        %1772 = vmatprep.subr.mxu0 0.0
        %1773 = vmatpush1.msra.mxu0 0.0
        %1774 = vmatprep.subr.mxu0 0.0
        %1775 = vmatpush1.msra.mxu0 0.0
        %1776 = vmatprep.subr.mxu0 0.0
        %1777 = vmatpush1.msra.mxu0 0.0
        %1778 = vmatprep.subr.mxu0 0.0
        %1779 = vmatpush1.msra.mxu0 0.0
        %1780 = vmatprep.subr.mxu0 0.0
        %1781 = vmatpush1.msra.mxu0 0.0
        %1782 = vmatprep.subr.mxu0 0.0
        %1783 = vmatpush1.msra.mxu0 0.0
        %1784 = vmatprep.subr.mxu0 0.0
        %1785 = vmatpush1.msra.mxu0 0.0
        %1786 = vmatprep.subr.mxu0 0.0
        %1787 = vmatpush1.msra.mxu0 0.0
        %1788 = vmatprep.subr.mxu0 0.0
        %1789 = vmatpush1.msra.mxu0 0.0
        %1790 = vmatprep.subr.mxu0 0.0
        %1791 = vmatpush1.msra.mxu0 0.0
        %1792 = vmatprep.subr.mxu0 0.0
        %1793 = vmatpush1.msra.mxu0 0.0
        %1794 = vmatprep.subr.mxu0 0.0
        %1795 = vmatpush1.msra.mxu0 0.0
        %1796 = vmatprep.subr.mxu0 0.0
        %1797 = vmatpush1.msra.mxu0 0.0
        %1798 = vmatprep.subr.mxu0 0.0
        %1799 = vmatpush1.msra.mxu0 0.0
        %1800 = vmatprep.subr.mxu0 0.0
        %1801 = vmatpush1.msra.mxu0 0.0
        %1802 = vmatprep.subr.mxu0 0.0
        %1803 = vmatpush1.msra.mxu0 0.0
        %1804 = vmatprep.subr.mxu0 0.0
        %1805 = vmatpush1.msra.mxu0 0.0
        %1806 = vmatprep.subr.mxu0 0.0
        %1807 = vmatpush1.msra.mxu0 0.0
        %1808 = vmatprep.mubr.f32.mxu0 0.0
        %1809 = vmatmul.mubr.f32.gmra.mrb[0].mxu0 %v1742
        %v1810 = vpop.f32.mrb[0].mxu0
        %v1811 = vadd.f32 0.0, %v1810
        %v1812 = vpop.f32.mrb[0].mxu0
        %1813 = vdwg.mxu0
        %1814 = vrot.lane.b32.xlu0 %v678, 56
        %v1815 = vpop.permute.xlu0 %1814
        %v1818 = vsel %vm702, %v1728, 0
        %1820 = vmatprep.subr.mxu0 0.0
        %1821 = vmatpush1.msra.mxu0 %v1815
        %1822 = vmatprep.subr.mxu0 0.0
        %1823 = vmatpush1.msra.mxu0 0.0
        %1824 = vmatprep.subr.mxu0 0.0
        %1825 = vmatpush1.msra.mxu0 0.0
        %1826 = vmatprep.subr.mxu0 0.0
        %1827 = vmatpush1.msra.mxu0 0.0
        %1828 = vmatprep.subr.mxu0 0.0
        %1829 = vmatpush1.msra.mxu0 0.0
        %1830 = vmatprep.subr.mxu0 0.0
        %1831 = vmatpush1.msra.mxu0 0.0
        %1832 = vmatprep.subr.mxu0 0.0
        %1833 = vmatpush1.msra.mxu0 0.0
        %1834 = vmatprep.subr.mxu0 0.0
        %1835 = vmatpush1.msra.mxu0 0.0
        %1836 = vmatprep.subr.mxu0 0.0
        %1837 = vmatpush1.msra.mxu0 0.0
        %1838 = vmatprep.subr.mxu0 0.0
        %1839 = vmatpush1.msra.mxu0 0.0
        %1840 = vmatprep.subr.mxu0 0.0
        %1841 = vmatpush1.msra.mxu0 0.0
        %1842 = vmatprep.subr.mxu0 0.0
        %1843 = vmatpush1.msra.mxu0 0.0
        %1844 = vmatprep.subr.mxu0 0.0
        %1845 = vmatpush1.msra.mxu0 0.0
        %1846 = vmatprep.subr.mxu0 0.0
        %1847 = vmatpush1.msra.mxu0 0.0
        %1848 = vmatprep.subr.mxu0 0.0
        %1849 = vmatpush1.msra.mxu0 0.0
        %1850 = vmatprep.subr.mxu0 0.0
        %1851 = vmatpush1.msra.mxu0 0.0
        %1852 = vmatprep.subr.mxu0 0.0
        %1853 = vmatpush1.msra.mxu0 0.0
        %1854 = vmatprep.subr.mxu0 0.0
        %1855 = vmatpush1.msra.mxu0 0.0
        %1856 = vmatprep.subr.mxu0 0.0
        %1857 = vmatpush1.msra.mxu0 0.0
        %1858 = vmatprep.subr.mxu0 0.0
        %1859 = vmatpush1.msra.mxu0 0.0
        %1860 = vmatprep.subr.mxu0 0.0
        %1861 = vmatpush1.msra.mxu0 0.0
        %1862 = vmatprep.subr.mxu0 0.0
        %1863 = vmatpush1.msra.mxu0 0.0
        %1864 = vmatprep.subr.mxu0 0.0
        %1865 = vmatpush1.msra.mxu0 0.0
        %1866 = vmatprep.subr.mxu0 0.0
        %1867 = vmatpush1.msra.mxu0 0.0
        %1868 = vmatprep.subr.mxu0 0.0
        %1869 = vmatpush1.msra.mxu0 0.0
        %1870 = vmatprep.subr.mxu0 0.0
        %1871 = vmatpush1.msra.mxu0 0.0
        %1872 = vmatprep.subr.mxu0 0.0
        %1873 = vmatpush1.msra.mxu0 0.0
        %1874 = vmatprep.subr.mxu0 0.0
        %1875 = vmatpush1.msra.mxu0 0.0
        %1876 = vmatprep.subr.mxu0 0.0
        %1877 = vmatpush1.msra.mxu0 0.0
        %1878 = vmatprep.subr.mxu0 0.0
        %1879 = vmatpush1.msra.mxu0 0.0
        %1880 = vmatprep.subr.mxu0 0.0
        %1881 = vmatpush1.msra.mxu0 0.0
        %1882 = vmatprep.subr.mxu0 0.0
        %1883 = vmatpush1.msra.mxu0 0.0
        %1884 = vmatprep.mubr.f32.mxu0 0.0
        %1885 = vmatmul.mubr.f32.gmra.mrb[0].mxu0 %v1818
        %v1886 = vpop.f32.mrb[0].mxu0
        %v1887 = vadd.f32 0.0, %v1886
        %v1888 = vpop.f32.mrb[0].mxu0
        %1889 = vdwg.mxu0
        %1890 = vrot.lane.b32.xlu0 %v683, 56
        %v1891 = vpop.permute.xlu0 %1890
        %v1894 = vsel %vm702, %v1730, 0
        %1896 = vmatprep.subr.mxu0 0.0
        %1897 = vmatpush1.msra.mxu0 %v1891
        %1898 = vmatprep.subr.mxu0 0.0
        %1899 = vmatpush1.msra.mxu0 0.0
        %1900 = vmatprep.subr.mxu0 0.0
        %1901 = vmatpush1.msra.mxu0 0.0
        %1902 = vmatprep.subr.mxu0 0.0
        %1903 = vmatpush1.msra.mxu0 0.0
        %1904 = vmatprep.subr.mxu0 0.0
        %1905 = vmatpush1.msra.mxu0 0.0
        %1906 = vmatprep.subr.mxu0 0.0
        %1907 = vmatpush1.msra.mxu0 0.0
        %1908 = vmatprep.subr.mxu0 0.0
        %1909 = vmatpush1.msra.mxu0 0.0
        %1910 = vmatprep.subr.mxu0 0.0
        %1911 = vmatpush1.msra.mxu0 0.0
        %1912 = vmatprep.subr.mxu0 0.0
        %1913 = vmatpush1.msra.mxu0 0.0
        %1914 = vmatprep.subr.mxu0 0.0
        %1915 = vmatpush1.msra.mxu0 0.0
        %1916 = vmatprep.subr.mxu0 0.0
        %1917 = vmatpush1.msra.mxu0 0.0
        %1918 = vmatprep.subr.mxu0 0.0
        %1919 = vmatpush1.msra.mxu0 0.0
        %1920 = vmatprep.subr.mxu0 0.0
        %1921 = vmatpush1.msra.mxu0 0.0
        %1922 = vmatprep.subr.mxu0 0.0
        %1923 = vmatpush1.msra.mxu0 0.0
        %1924 = vmatprep.subr.mxu0 0.0
        %1925 = vmatpush1.msra.mxu0 0.0
        %1926 = vmatprep.subr.mxu0 0.0
        %1927 = vmatpush1.msra.mxu0 0.0
        %1928 = vmatprep.subr.mxu0 0.0
        %1929 = vmatpush1.msra.mxu0 0.0
        %1930 = vmatprep.subr.mxu0 0.0
        %1931 = vmatpush1.msra.mxu0 0.0
        %1932 = vmatprep.subr.mxu0 0.0
        %1933 = vmatpush1.msra.mxu0 0.0
        %1934 = vmatprep.subr.mxu0 0.0
        %1935 = vmatpush1.msra.mxu0 0.0
        %1936 = vmatprep.subr.mxu0 0.0
        %1937 = vmatpush1.msra.mxu0 0.0
        %1938 = vmatprep.subr.mxu0 0.0
        %1939 = vmatpush1.msra.mxu0 0.0
        %1940 = vmatprep.subr.mxu0 0.0
        %1941 = vmatpush1.msra.mxu0 0.0
        %1942 = vmatprep.subr.mxu0 0.0
        %1943 = vmatpush1.msra.mxu0 0.0
        %1944 = vmatprep.subr.mxu0 0.0
        %1945 = vmatpush1.msra.mxu0 0.0
        %1946 = vmatprep.subr.mxu0 0.0
        %1947 = vmatpush1.msra.mxu0 0.0
        %1948 = vmatprep.subr.mxu0 0.0
        %1949 = vmatpush1.msra.mxu0 0.0
        %1950 = vmatprep.subr.mxu0 0.0
        %1951 = vmatpush1.msra.mxu0 0.0
        %1952 = vmatprep.subr.mxu0 0.0
        %1953 = vmatpush1.msra.mxu0 0.0
        %1954 = vmatprep.subr.mxu0 0.0
        %1955 = vmatpush1.msra.mxu0 0.0
        %1956 = vmatprep.subr.mxu0 0.0
        %1957 = vmatpush1.msra.mxu0 0.0
        %1958 = vmatprep.subr.mxu0 0.0
        %1959 = vmatpush1.msra.mxu0 0.0
        %1960 = vmatprep.mubr.f32.mxu0 0.0
        %1961 = vmatmul.mubr.f32.gmra.mrb[0].mxu0 %v1894
        %v1962 = vpop.f32.mrb[0].mxu0
        %v1963 = vadd.f32 0.0, %v1962
        %v1964 = vpop.f32.mrb[0].mxu0
        %1965 = vdwg.mxu0
        %1966 = vrot.lane.b32.xlu0 %v688, 56
        %v1967 = vpop.permute.xlu0 %1966
        %v1970 = vsel %vm702, %v1732, 0
        %1972 = vmatprep.subr.mxu0 0.0
        %1973 = vmatpush1.msra.mxu0 %v1967
        %1974 = vmatprep.subr.mxu0 0.0
        %1975 = vmatpush1.msra.mxu0 0.0
        %1976 = vmatprep.subr.mxu0 0.0
        %1977 = vmatpush1.msra.mxu0 0.0
        %1978 = vmatprep.subr.mxu0 0.0
        %1979 = vmatpush1.msra.mxu0 0.0
        %1980 = vmatprep.subr.mxu0 0.0
        %1981 = vmatpush1.msra.mxu0 0.0
        %1982 = vmatprep.subr.mxu0 0.0
        %1983 = vmatpush1.msra.mxu0 0.0
        %1984 = vmatprep.subr.mxu0 0.0
        %1985 = vmatpush1.msra.mxu0 0.0
        %1986 = vmatprep.subr.mxu0 0.0
        %1987 = vmatpush1.msra.mxu0 0.0
        %1988 = vmatprep.subr.mxu0 0.0
        %1989 = vmatpush1.msra.mxu0 0.0
        %1990 = vmatprep.subr.mxu0 0.0
        %1991 = vmatpush1.msra.mxu0 0.0
        %1992 = vmatprep.subr.mxu0 0.0
        %1993 = vmatpush1.msra.mxu0 0.0
        %1994 = vmatprep.subr.mxu0 0.0
        %1995 = vmatpush1.msra.mxu0 0.0
        %1996 = vmatprep.subr.mxu0 0.0
        %1997 = vmatpush1.msra.mxu0 0.0
        %1998 = vmatprep.subr.mxu0 0.0
        %1999 = vmatpush1.msra.mxu0 0.0
        %2000 = vmatprep.subr.mxu0 0.0
        %2001 = vmatpush1.msra.mxu0 0.0
        %2002 = vmatprep.subr.mxu0 0.0
        %2003 = vmatpush1.msra.mxu0 0.0
        %2004 = vmatprep.subr.mxu0 0.0
        %2005 = vmatpush1.msra.mxu0 0.0
        %2006 = vmatprep.subr.mxu0 0.0
        %2007 = vmatpush1.msra.mxu0 0.0
        %2008 = vmatprep.subr.mxu0 0.0
        %2009 = vmatpush1.msra.mxu0 0.0
        %2010 = vmatprep.subr.mxu0 0.0
        %2011 = vmatpush1.msra.mxu0 0.0
        %2012 = vmatprep.subr.mxu0 0.0
        %2013 = vmatpush1.msra.mxu0 0.0
        %2014 = vmatprep.subr.mxu0 0.0
        %2015 = vmatpush1.msra.mxu0 0.0
        %2016 = vmatprep.subr.mxu0 0.0
        %2017 = vmatpush1.msra.mxu0 0.0
        %2018 = vmatprep.subr.mxu0 0.0
        %2019 = vmatpush1.msra.mxu0 0.0
        %2020 = vmatprep.subr.mxu0 0.0
        %2021 = vmatpush1.msra.mxu0 0.0
        %2022 = vmatprep.subr.mxu0 0.0
        %2023 = vmatpush1.msra.mxu0 0.0
        %2024 = vmatprep.subr.mxu0 0.0
        %2025 = vmatpush1.msra.mxu0 0.0
        %2026 = vmatprep.subr.mxu0 0.0
        %2027 = vmatpush1.msra.mxu0 0.0
        %2028 = vmatprep.subr.mxu0 0.0
        %2029 = vmatpush1.msra.mxu0 0.0
        %2030 = vmatprep.subr.mxu0 0.0
        %2031 = vmatpush1.msra.mxu0 0.0
        %2032 = vmatprep.subr.mxu0 0.0
        %2033 = vmatpush1.msra.mxu0 0.0
        %2034 = vmatprep.subr.mxu0 0.0
        %2035 = vmatpush1.msra.mxu0 0.0
        %2036 = vmatprep.mubr.f32.mxu0 0.0
        %2037 = vmatmul.mubr.f32.gmra.mrb[0].mxu0 %v1970
        %v2038 = vpop.f32.mrb[0].mxu0
        %v2039 = vadd.f32 0.0, %v2038
        %v2040 = vpop.f32.mrb[0].mxu0
        %2041 = vdwg.mxu0
        %v2042 = vld [vmem:[#allocation5 + $0x8] sm:$0xff]
        %v2044 = vsel %vm702, %v1811, 0
        %v2047 = vsel %vm702, %v1887, 0
        %v2050 = vsel %vm702, %v1963, 0
        %v2053 = vsel %vm702, %v2039, 0
        %2055 = vmatprep.subr.mxu0 0.0
        %2056 = vmatpush1.msra.mxu0 %v2042
        %2057 = vmatprep.subr.mxu0 0.0
        %2058 = vmatpush1.msra.mxu0 0.0
        %2059 = vmatprep.subr.mxu0 0.0
        %2060 = vmatpush1.msra.mxu0 0.0
        %2061 = vmatprep.subr.mxu0 0.0
        %2062 = vmatpush1.msra.mxu0 0.0
        %2063 = vmatprep.subr.mxu0 0.0
        %2064 = vmatpush1.msra.mxu0 0.0
        %2065 = vmatprep.subr.mxu0 0.0
        %2066 = vmatpush1.msra.mxu0 0.0
        %2067 = vmatprep.subr.mxu0 0.0
        %2068 = vmatpush1.msra.mxu0 0.0
        %2069 = vmatprep.subr.mxu0 0.0
        %2070 = vmatpush1.msra.mxu0 0.0
        %2071 = vmatprep.subr.mxu0 0.0
        %2072 = vmatpush1.msra.mxu0 0.0
        %2073 = vmatprep.subr.mxu0 0.0
        %2074 = vmatpush1.msra.mxu0 0.0
        %2075 = vmatprep.subr.mxu0 0.0
        %2076 = vmatpush1.msra.mxu0 0.0
        %2077 = vmatprep.subr.mxu0 0.0
        %2078 = vmatpush1.msra.mxu0 0.0
        %2079 = vmatprep.subr.mxu0 0.0
        %2080 = vmatpush1.msra.mxu0 0.0
        %2081 = vmatprep.subr.mxu0 0.0
        %2082 = vmatpush1.msra.mxu0 0.0
        %2083 = vmatprep.subr.mxu0 0.0
        %2084 = vmatpush1.msra.mxu0 0.0
        %2085 = vmatprep.subr.mxu0 0.0
        %2086 = vmatpush1.msra.mxu0 0.0
        %2087 = vmatprep.subr.mxu0 0.0
        %2088 = vmatpush1.msra.mxu0 0.0
        %2089 = vmatprep.subr.mxu0 0.0
        %2090 = vmatpush1.msra.mxu0 0.0
        %2091 = vmatprep.subr.mxu0 0.0
        %2092 = vmatpush1.msra.mxu0 0.0
        %2093 = vmatprep.subr.mxu0 0.0
        %2094 = vmatpush1.msra.mxu0 0.0
        %2095 = vmatprep.subr.mxu0 0.0
        %2096 = vmatpush1.msra.mxu0 0.0
        %2097 = vmatprep.subr.mxu0 0.0
        %2098 = vmatpush1.msra.mxu0 0.0
        %2099 = vmatprep.subr.mxu0 0.0
        %2100 = vmatpush1.msra.mxu0 0.0
        %2101 = vmatprep.subr.mxu0 0.0
        %2102 = vmatpush1.msra.mxu0 0.0
        %2103 = vmatprep.subr.mxu0 0.0
        %2104 = vmatpush1.msra.mxu0 0.0
        %2105 = vmatprep.subr.mxu0 0.0
        %2106 = vmatpush1.msra.mxu0 0.0
        %2107 = vmatprep.subr.mxu0 0.0
        %2108 = vmatpush1.msra.mxu0 0.0
        %2109 = vmatprep.subr.mxu0 0.0
        %2110 = vmatpush1.msra.mxu0 0.0
        %2111 = vmatprep.subr.mxu0 0.0
        %2112 = vmatpush1.msra.mxu0 0.0
        %2113 = vmatprep.subr.mxu0 0.0
        %2114 = vmatpush1.msra.mxu0 0.0
        %2115 = vmatprep.subr.mxu0 0.0
        %2116 = vmatpush1.msra.mxu0 0.0
        %2117 = vmatprep.subr.mxu0 0.0
        %2118 = vmatpush1.msra.mxu0 0.0
        %2119 = vmatprep.mubr.f32.mxu0 0.0
        %2120 = vmatmul.mubr.f32.gmra.mrb[0].mxu0 %v2044
        %v2121 = vpop.f32.mrb[0].mxu0
        %v2122 = vadd.f32 0.0, %v2121
        %v2123 = vpop.f32.mrb[0].mxu0
        %2124 = vmatprep.mubr.f32.mxu0 0.0
        %2125 = vmatmul.mubr.f32.gmra.mrb[0].mxu0 %v2047
        %v2126 = vpop.f32.mrb[0].mxu0
        %v2127 = vadd.f32 0.0, %v2126
        %v2128 = vpop.f32.mrb[0].mxu0
        %2129 = vmatprep.mubr.f32.mxu0 0.0
        %2130 = vmatmul.mubr.f32.gmra.mrb[0].mxu0 %v2050
        %v2131 = vpop.f32.mrb[0].mxu0
        %v2132 = vadd.f32 0.0, %v2131
        %v2133 = vpop.f32.mrb[0].mxu0
        %2134 = vmatprep.mubr.f32.mxu0 0.0
        %2135 = vmatmul.mubr.f32.gmra.mrb[0].mxu0 %v2053
        %v2136 = vpop.f32.mrb[0].mxu0
        %v2137 = vadd.f32 0.0, %v2136
        %v2138 = vpop.f32.mrb[0].mxu0
        %2139 = vdwg.mxu0
        %v2141 = vsel %vm702, %v1137, 0
        %v2144 = vsel %vm702, %v1213, 0
        %v2147 = vsel %vm702, %v1289, 0
        %v2150 = vsel %vm702, %v1365, 0
        %2152 = vmatprep.subr.mxu0 0.0
        %2153 = vmatpush1.msra.mxu0 %v1368
        %2154 = vmatprep.subr.mxu0 0.0
        %2155 = vmatpush1.msra.mxu0 0.0
        %2156 = vmatprep.subr.mxu0 0.0
        %2157 = vmatpush1.msra.mxu0 0.0
        %2158 = vmatprep.subr.mxu0 0.0
        %2159 = vmatpush1.msra.mxu0 0.0
        %2160 = vmatprep.subr.mxu0 0.0
        %2161 = vmatpush1.msra.mxu0 0.0
        %2162 = vmatprep.subr.mxu0 0.0
        %2163 = vmatpush1.msra.mxu0 0.0
        %2164 = vmatprep.subr.mxu0 0.0
        %2165 = vmatpush1.msra.mxu0 0.0
        %2166 = vmatprep.subr.mxu0 0.0
        %2167 = vmatpush1.msra.mxu0 0.0
        %2168 = vmatprep.subr.mxu0 0.0
        %2169 = vmatpush1.msra.mxu0 0.0
        %2170 = vmatprep.subr.mxu0 0.0
        %2171 = vmatpush1.msra.mxu0 0.0
        %2172 = vmatprep.subr.mxu0 0.0
        %2173 = vmatpush1.msra.mxu0 0.0
        %2174 = vmatprep.subr.mxu0 0.0
        %2175 = vmatpush1.msra.mxu0 0.0
        %2176 = vmatprep.subr.mxu0 0.0
        %2177 = vmatpush1.msra.mxu0 0.0
        %2178 = vmatprep.subr.mxu0 0.0
        %2179 = vmatpush1.msra.mxu0 0.0
        %2180 = vmatprep.subr.mxu0 0.0
        %2181 = vmatpush1.msra.mxu0 0.0
        %2182 = vmatprep.subr.mxu0 0.0
        %2183 = vmatpush1.msra.mxu0 0.0
        %2184 = vmatprep.subr.mxu0 0.0
        %2185 = vmatpush1.msra.mxu0 0.0
        %2186 = vmatprep.subr.mxu0 0.0
        %2187 = vmatpush1.msra.mxu0 0.0
        %2188 = vmatprep.subr.mxu0 0.0
        %2189 = vmatpush1.msra.mxu0 0.0
        %2190 = vmatprep.subr.mxu0 0.0
        %2191 = vmatpush1.msra.mxu0 0.0
        %2192 = vmatprep.subr.mxu0 0.0
        %2193 = vmatpush1.msra.mxu0 0.0
        %2194 = vmatprep.subr.mxu0 0.0
        %2195 = vmatpush1.msra.mxu0 0.0
        %2196 = vmatprep.subr.mxu0 0.0
        %2197 = vmatpush1.msra.mxu0 0.0
        %2198 = vmatprep.subr.mxu0 0.0
        %2199 = vmatpush1.msra.mxu0 0.0
        %2200 = vmatprep.subr.mxu0 0.0
        %2201 = vmatpush1.msra.mxu0 0.0
        %2202 = vmatprep.subr.mxu0 0.0
        %2203 = vmatpush1.msra.mxu0 0.0
        %2204 = vmatprep.subr.mxu0 0.0
        %2205 = vmatpush1.msra.mxu0 0.0
        %2206 = vmatprep.subr.mxu0 0.0
        %2207 = vmatpush1.msra.mxu0 0.0
        %2208 = vmatprep.subr.mxu0 0.0
        %2209 = vmatpush1.msra.mxu0 0.0
        %2210 = vmatprep.subr.mxu0 0.0
        %2211 = vmatpush1.msra.mxu0 0.0
        %2212 = vmatprep.subr.mxu0 0.0
        %2213 = vmatpush1.msra.mxu0 0.0
        %2214 = vmatprep.subr.mxu0 0.0
        %2215 = vmatpush1.msra.mxu0 0.0
        %2216 = vmatprep.mubr.f32.mxu0 0.0
        %2217 = vmatmul.mubr.f32.gmra.mrb[0].mxu0 %v2141
        %v2218 = vpop.f32.mrb[0].mxu0
        %v2219 = vadd.f32 %v2122, %v2218
        %v2220 = vpop.f32.mrb[0].mxu0
        %2221 = vmatprep.mubr.f32.mxu0 0.0
        %2222 = vmatmul.mubr.f32.gmra.mrb[0].mxu0 %v2144
        %v2223 = vpop.f32.mrb[0].mxu0
        %v2224 = vadd.f32 %v2127, %v2223
        %v2225 = vpop.f32.mrb[0].mxu0
        %2226 = vmatprep.mubr.f32.mxu0 0.0
        %2227 = vmatmul.mubr.f32.gmra.mrb[0].mxu0 %v2147
        %v2228 = vpop.f32.mrb[0].mxu0
        %v2229 = vadd.f32 %v2132, %v2228
        %v2230 = vpop.f32.mrb[0].mxu0
        %2231 = vmatprep.mubr.f32.mxu0 0.0
        %2232 = vmatmul.mubr.f32.gmra.mrb[0].mxu0 %v2150
        %v2233 = vpop.f32.mrb[0].mxu0
        %v2234 = vadd.f32 %v2137, %v2233
        %v2235 = vpop.f32.mrb[0].mxu0
        %2236 = vdwg.mxu0
        %2237 = vrot.lane.b32.xlu0 %v673, 112
        %v2238 = vpop.permute.xlu0 %2237
        %2239 = vrot.lane.b32.xlu0 %v673, 80
        %v2240 = vpop.permute.xlu0 %2239
        %v2241 = vsel %vm702, %v2238, 0
        %v2243 = vsel %vm702, %v2240, 0
        %2245 = vmatprep.subr.mxu0 0.0
        %2246 = vmatpush1.xpose.msra.mxu0 %v2243
        %2247 = vmatprep.subr.mxu0 0.0
        %2248 = vmatpush1.xpose.msra.mxu0 0.0
        %2249 = vmatprep.subr.mxu0 0.0
        %2250 = vmatpush1.xpose.msra.mxu0 0.0
        %2251 = vmatprep.subr.mxu0 0.0
        %2252 = vmatpush1.xpose.msra.mxu0 0.0
        %2253 = vmatprep.subr.mxu0 0.0
        %2254 = vmatpush1.xpose.msra.mxu0 0.0
        %2255 = vmatprep.subr.mxu0 0.0
        %2256 = vmatpush1.xpose.msra.mxu0 0.0
        %2257 = vmatprep.subr.mxu0 0.0
        %2258 = vmatpush1.xpose.msra.mxu0 0.0
        %2259 = vmatprep.subr.mxu0 0.0
        %2260 = vmatpush1.xpose.msra.mxu0 0.0
        %2261 = vmatprep.subr.mxu0 0.0
        %2262 = vmatpush1.xpose.msra.mxu0 0.0
        %2263 = vmatprep.subr.mxu0 0.0
        %2264 = vmatpush1.xpose.msra.mxu0 0.0
        %2265 = vmatprep.subr.mxu0 0.0
        %2266 = vmatpush1.xpose.msra.mxu0 0.0
        %2267 = vmatprep.subr.mxu0 0.0
        %2268 = vmatpush1.xpose.msra.mxu0 0.0
        %2269 = vmatprep.subr.mxu0 0.0
        %2270 = vmatpush1.xpose.msra.mxu0 0.0
        %2271 = vmatprep.subr.mxu0 0.0
        %2272 = vmatpush1.xpose.msra.mxu0 0.0
        %2273 = vmatprep.subr.mxu0 0.0
        %2274 = vmatpush1.xpose.msra.mxu0 0.0
        %2275 = vmatprep.subr.mxu0 0.0
        %2276 = vmatpush1.xpose.msra.mxu0 0.0
        %2277 = vmatprep.subr.mxu0 0.0
        %2278 = vmatpush1.xpose.msra.mxu0 0.0
        %2279 = vmatprep.subr.mxu0 0.0
        %2280 = vmatpush1.xpose.msra.mxu0 0.0
        %2281 = vmatprep.subr.mxu0 0.0
        %2282 = vmatpush1.xpose.msra.mxu0 0.0
        %2283 = vmatprep.subr.mxu0 0.0
        %2284 = vmatpush1.xpose.msra.mxu0 0.0
        %2285 = vmatprep.subr.mxu0 0.0
        %2286 = vmatpush1.xpose.msra.mxu0 0.0
        %2287 = vmatprep.subr.mxu0 0.0
        %2288 = vmatpush1.xpose.msra.mxu0 0.0
        %2289 = vmatprep.subr.mxu0 0.0
        %2290 = vmatpush1.xpose.msra.mxu0 0.0
        %2291 = vmatprep.subr.mxu0 0.0
        %2292 = vmatpush1.xpose.msra.mxu0 0.0
        %2293 = vmatprep.subr.mxu0 0.0
        %2294 = vmatpush1.xpose.msra.mxu0 0.0
        %2295 = vmatprep.subr.mxu0 0.0
        %2296 = vmatpush1.xpose.msra.mxu0 0.0
        %2297 = vmatprep.subr.mxu0 0.0
        %2298 = vmatpush1.xpose.msra.mxu0 0.0
        %2299 = vmatprep.subr.mxu0 0.0
        %2300 = vmatpush1.xpose.msra.mxu0 0.0
        %2301 = vmatprep.subr.mxu0 0.0
        %2302 = vmatpush1.xpose.msra.mxu0 0.0
        %2303 = vmatprep.subr.mxu0 0.0
        %2304 = vmatpush1.xpose.msra.mxu0 0.0
        %2305 = vmatprep.subr.mxu0 0.0
        %2306 = vmatpush1.xpose.msra.mxu0 0.0
        %2307 = vmatprep.subr.mxu0 0.0
        %2308 = vmatpush1.xpose.msra.mxu0 0.0
        %2309 = vmatprep.mubr.f32.mxu0 0.0
        %2310 = vmatmul.mubr.f32.gmra.mrb[0].mxu0 %v2241
        %v2311 = vpop.f32.mrb[0].mxu0
        %v2312 = vadd.f32 0.0, %v2311
        %v2313 = vpop.f32.mrb[0].mxu0
        %2314 = vdwg.mxu0
        %2315 = vrot.lane.b32.xlu0 %v678, 112
        %v2316 = vpop.permute.xlu0 %2315
        %2317 = vrot.lane.b32.xlu0 %v678, 80
        %v2318 = vpop.permute.xlu0 %2317
        %v2319 = vsel %vm702, %v2316, 0
        %v2321 = vsel %vm702, %v2318, 0
        %2323 = vmatprep.subr.mxu0 0.0
        %2324 = vmatpush1.xpose.msra.mxu0 %v2321
        %2325 = vmatprep.subr.mxu0 0.0
        %2326 = vmatpush1.xpose.msra.mxu0 0.0
        %2327 = vmatprep.subr.mxu0 0.0
        %2328 = vmatpush1.xpose.msra.mxu0 0.0
        %2329 = vmatprep.subr.mxu0 0.0
        %2330 = vmatpush1.xpose.msra.mxu0 0.0
        %2331 = vmatprep.subr.mxu0 0.0
        %2332 = vmatpush1.xpose.msra.mxu0 0.0
        %2333 = vmatprep.subr.mxu0 0.0
        %2334 = vmatpush1.xpose.msra.mxu0 0.0
        %2335 = vmatprep.subr.mxu0 0.0
        %2336 = vmatpush1.xpose.msra.mxu0 0.0
        %2337 = vmatprep.subr.mxu0 0.0
        %2338 = vmatpush1.xpose.msra.mxu0 0.0
        %2339 = vmatprep.subr.mxu0 0.0
        %2340 = vmatpush1.xpose.msra.mxu0 0.0
        %2341 = vmatprep.subr.mxu0 0.0
        %2342 = vmatpush1.xpose.msra.mxu0 0.0
        %2343 = vmatprep.subr.mxu0 0.0
        %2344 = vmatpush1.xpose.msra.mxu0 0.0
        %2345 = vmatprep.subr.mxu0 0.0
        %2346 = vmatpush1.xpose.msra.mxu0 0.0
        %2347 = vmatprep.subr.mxu0 0.0
        %2348 = vmatpush1.xpose.msra.mxu0 0.0
        %2349 = vmatprep.subr.mxu0 0.0
        %2350 = vmatpush1.xpose.msra.mxu0 0.0
        %2351 = vmatprep.subr.mxu0 0.0
        %2352 = vmatpush1.xpose.msra.mxu0 0.0
        %2353 = vmatprep.subr.mxu0 0.0
        %2354 = vmatpush1.xpose.msra.mxu0 0.0
        %2355 = vmatprep.subr.mxu0 0.0
        %2356 = vmatpush1.xpose.msra.mxu0 0.0
        %2357 = vmatprep.subr.mxu0 0.0
        %2358 = vmatpush1.xpose.msra.mxu0 0.0
        %2359 = vmatprep.subr.mxu0 0.0
        %2360 = vmatpush1.xpose.msra.mxu0 0.0
        %2361 = vmatprep.subr.mxu0 0.0
        %2362 = vmatpush1.xpose.msra.mxu0 0.0
        %2363 = vmatprep.subr.mxu0 0.0
        %2364 = vmatpush1.xpose.msra.mxu0 0.0
        %2365 = vmatprep.subr.mxu0 0.0
        %2366 = vmatpush1.xpose.msra.mxu0 0.0
        %2367 = vmatprep.subr.mxu0 0.0
        %2368 = vmatpush1.xpose.msra.mxu0 0.0
        %2369 = vmatprep.subr.mxu0 0.0
        %2370 = vmatpush1.xpose.msra.mxu0 0.0
        %2371 = vmatprep.subr.mxu0 0.0
        %2372 = vmatpush1.xpose.msra.mxu0 0.0
        %2373 = vmatprep.subr.mxu0 0.0
        %2374 = vmatpush1.xpose.msra.mxu0 0.0
        %2375 = vmatprep.subr.mxu0 0.0
        %2376 = vmatpush1.xpose.msra.mxu0 0.0
        %2377 = vmatprep.subr.mxu0 0.0
        %2378 = vmatpush1.xpose.msra.mxu0 0.0
        %2379 = vmatprep.subr.mxu0 0.0
        %2380 = vmatpush1.xpose.msra.mxu0 0.0
        %2381 = vmatprep.subr.mxu0 0.0
        %2382 = vmatpush1.xpose.msra.mxu0 0.0
        %2383 = vmatprep.subr.mxu0 0.0
        %2384 = vmatpush1.xpose.msra.mxu0 0.0
        %2385 = vmatprep.subr.mxu0 0.0
        %2386 = vmatpush1.xpose.msra.mxu0 0.0
        %2387 = vmatprep.mubr.f32.mxu0 0.0
        %2388 = vmatmul.mubr.f32.gmra.mrb[0].mxu0 %v2319
        %v2389 = vpop.f32.mrb[0].mxu0
        %v2390 = vadd.f32 0.0, %v2389
        %v2391 = vpop.f32.mrb[0].mxu0
        %2392 = vdwg.mxu0
        %2393 = vrot.lane.b32.xlu0 %v683, 112
        %v2394 = vpop.permute.xlu0 %2393
        %2395 = vrot.lane.b32.xlu0 %v683, 80
        %v2396 = vpop.permute.xlu0 %2395
        %v2397 = vsel %vm702, %v2394, 0
        %v2399 = vsel %vm702, %v2396, 0
        %2401 = vmatprep.subr.mxu0 0.0
        %2402 = vmatpush1.xpose.msra.mxu0 %v2399
        %2403 = vmatprep.subr.mxu0 0.0
        %2404 = vmatpush1.xpose.msra.mxu0 0.0
        %2405 = vmatprep.subr.mxu0 0.0
        %2406 = vmatpush1.xpose.msra.mxu0 0.0
        %2407 = vmatprep.subr.mxu0 0.0
        %2408 = vmatpush1.xpose.msra.mxu0 0.0
        %2409 = vmatprep.subr.mxu0 0.0
        %2410 = vmatpush1.xpose.msra.mxu0 0.0
        %2411 = vmatprep.subr.mxu0 0.0
        %2412 = vmatpush1.xpose.msra.mxu0 0.0
        %2413 = vmatprep.subr.mxu0 0.0
        %2414 = vmatpush1.xpose.msra.mxu0 0.0
        %2415 = vmatprep.subr.mxu0 0.0
        %2416 = vmatpush1.xpose.msra.mxu0 0.0
        %2417 = vmatprep.subr.mxu0 0.0
        %2418 = vmatpush1.xpose.msra.mxu0 0.0
        %2419 = vmatprep.subr.mxu0 0.0
        %2420 = vmatpush1.xpose.msra.mxu0 0.0
        %2421 = vmatprep.subr.mxu0 0.0
        %2422 = vmatpush1.xpose.msra.mxu0 0.0
        %2423 = vmatprep.subr.mxu0 0.0
        %2424 = vmatpush1.xpose.msra.mxu0 0.0
        %2425 = vmatprep.subr.mxu0 0.0
        %2426 = vmatpush1.xpose.msra.mxu0 0.0
        %2427 = vmatprep.subr.mxu0 0.0
        %2428 = vmatpush1.xpose.msra.mxu0 0.0
        %2429 = vmatprep.subr.mxu0 0.0
        %2430 = vmatpush1.xpose.msra.mxu0 0.0
        %2431 = vmatprep.subr.mxu0 0.0
        %2432 = vmatpush1.xpose.msra.mxu0 0.0
        %2433 = vmatprep.subr.mxu0 0.0
        %2434 = vmatpush1.xpose.msra.mxu0 0.0
        %2435 = vmatprep.subr.mxu0 0.0
        %2436 = vmatpush1.xpose.msra.mxu0 0.0
        %2437 = vmatprep.subr.mxu0 0.0
        %2438 = vmatpush1.xpose.msra.mxu0 0.0
        %2439 = vmatprep.subr.mxu0 0.0
        %2440 = vmatpush1.xpose.msra.mxu0 0.0
        %2441 = vmatprep.subr.mxu0 0.0
        %2442 = vmatpush1.xpose.msra.mxu0 0.0
        %2443 = vmatprep.subr.mxu0 0.0
        %2444 = vmatpush1.xpose.msra.mxu0 0.0
        %2445 = vmatprep.subr.mxu0 0.0
        %2446 = vmatpush1.xpose.msra.mxu0 0.0
        %2447 = vmatprep.subr.mxu0 0.0
        %2448 = vmatpush1.xpose.msra.mxu0 0.0
        %2449 = vmatprep.subr.mxu0 0.0
        %2450 = vmatpush1.xpose.msra.mxu0 0.0
        %2451 = vmatprep.subr.mxu0 0.0
        %2452 = vmatpush1.xpose.msra.mxu0 0.0
        %2453 = vmatprep.subr.mxu0 0.0
        %2454 = vmatpush1.xpose.msra.mxu0 0.0
        %2455 = vmatprep.subr.mxu0 0.0
        %2456 = vmatpush1.xpose.msra.mxu0 0.0
        %2457 = vmatprep.subr.mxu0 0.0
        %2458 = vmatpush1.xpose.msra.mxu0 0.0
        %2459 = vmatprep.subr.mxu0 0.0
        %2460 = vmatpush1.xpose.msra.mxu0 0.0
        %2461 = vmatprep.subr.mxu0 0.0
        %2462 = vmatpush1.xpose.msra.mxu0 0.0
        %2463 = vmatprep.subr.mxu0 0.0
        %2464 = vmatpush1.xpose.msra.mxu0 0.0
        %2465 = vmatprep.mubr.f32.mxu0 0.0
        %2466 = vmatmul.mubr.f32.gmra.mrb[0].mxu0 %v2397
        %v2467 = vpop.f32.mrb[0].mxu0
        %v2468 = vadd.f32 0.0, %v2467
        %v2469 = vpop.f32.mrb[0].mxu0
        %2470 = vdwg.mxu0
        %2471 = vrot.lane.b32.xlu0 %v688, 112
        %v2472 = vpop.permute.xlu0 %2471
        %2473 = vrot.lane.b32.xlu0 %v688, 80
        %v2474 = vpop.permute.xlu0 %2473
        %v2475 = vsel %vm702, %v2472, 0
        %v2477 = vsel %vm702, %v2474, 0
        %2479 = vmatprep.subr.mxu0 0.0
        %2480 = vmatpush1.xpose.msra.mxu0 %v2477
        %2481 = vmatprep.subr.mxu0 0.0
        %2482 = vmatpush1.xpose.msra.mxu0 0.0
        %2483 = vmatprep.subr.mxu0 0.0
        %2484 = vmatpush1.xpose.msra.mxu0 0.0
        %2485 = vmatprep.subr.mxu0 0.0
        %2486 = vmatpush1.xpose.msra.mxu0 0.0
        %2487 = vmatprep.subr.mxu0 0.0
        %2488 = vmatpush1.xpose.msra.mxu0 0.0
        %2489 = vmatprep.subr.mxu0 0.0
        %2490 = vmatpush1.xpose.msra.mxu0 0.0
        %2491 = vmatprep.subr.mxu0 0.0
        %2492 = vmatpush1.xpose.msra.mxu0 0.0
        %2493 = vmatprep.subr.mxu0 0.0
        %2494 = vmatpush1.xpose.msra.mxu0 0.0
        %2495 = vmatprep.subr.mxu0 0.0
        %2496 = vmatpush1.xpose.msra.mxu0 0.0
        %2497 = vmatprep.subr.mxu0 0.0
        %2498 = vmatpush1.xpose.msra.mxu0 0.0
        %2499 = vmatprep.subr.mxu0 0.0
        %2500 = vmatpush1.xpose.msra.mxu0 0.0
        %2501 = vmatprep.subr.mxu0 0.0
        %2502 = vmatpush1.xpose.msra.mxu0 0.0
        %2503 = vmatprep.subr.mxu0 0.0
        %2504 = vmatpush1.xpose.msra.mxu0 0.0
        %2505 = vmatprep.subr.mxu0 0.0
        %2506 = vmatpush1.xpose.msra.mxu0 0.0
        %2507 = vmatprep.subr.mxu0 0.0
        %2508 = vmatpush1.xpose.msra.mxu0 0.0
        %2509 = vmatprep.subr.mxu0 0.0
        %2510 = vmatpush1.xpose.msra.mxu0 0.0
        %2511 = vmatprep.subr.mxu0 0.0
        %2512 = vmatpush1.xpose.msra.mxu0 0.0
        %2513 = vmatprep.subr.mxu0 0.0
        %2514 = vmatpush1.xpose.msra.mxu0 0.0
        %2515 = vmatprep.subr.mxu0 0.0
        %2516 = vmatpush1.xpose.msra.mxu0 0.0
        %2517 = vmatprep.subr.mxu0 0.0
        %2518 = vmatpush1.xpose.msra.mxu0 0.0
        %2519 = vmatprep.subr.mxu0 0.0
        %2520 = vmatpush1.xpose.msra.mxu0 0.0
        %2521 = vmatprep.subr.mxu0 0.0
        %2522 = vmatpush1.xpose.msra.mxu0 0.0
        %2523 = vmatprep.subr.mxu0 0.0
        %2524 = vmatpush1.xpose.msra.mxu0 0.0
        %2525 = vmatprep.subr.mxu0 0.0
        %2526 = vmatpush1.xpose.msra.mxu0 0.0
        %2527 = vmatprep.subr.mxu0 0.0
        %2528 = vmatpush1.xpose.msra.mxu0 0.0
        %2529 = vmatprep.subr.mxu0 0.0
        %2530 = vmatpush1.xpose.msra.mxu0 0.0
        %2531 = vmatprep.subr.mxu0 0.0
        %2532 = vmatpush1.xpose.msra.mxu0 0.0
        %2533 = vmatprep.subr.mxu0 0.0
        %2534 = vmatpush1.xpose.msra.mxu0 0.0
        %2535 = vmatprep.subr.mxu0 0.0
        %2536 = vmatpush1.xpose.msra.mxu0 0.0
        %2537 = vmatprep.subr.mxu0 0.0
        %2538 = vmatpush1.xpose.msra.mxu0 0.0
        %2539 = vmatprep.subr.mxu0 0.0
        %2540 = vmatpush1.xpose.msra.mxu0 0.0
        %2541 = vmatprep.subr.mxu0 0.0
        %2542 = vmatpush1.xpose.msra.mxu0 0.0
        %2543 = vmatprep.mubr.f32.mxu0 0.0
        %2544 = vmatmul.mubr.f32.gmra.mrb[0].mxu0 %v2475
        %v2545 = vpop.f32.mrb[0].mxu0
        %v2546 = vadd.f32 0.0, %v2545
        %v2547 = vpop.f32.mrb[0].mxu0
        %2548 = vdwg.mxu0
        %v2549 = vmul.f32 %v2312, 0.35355338
        %v2550 = vmul.f32 %v2390, 0.35355338
        %v2551 = vmul.f32 %v2468, 0.35355338
        %v2552 = vmul.f32 %v2546, 0.35355338
        %v2553 = vsel %vm695, -1e+09, %v2549
        %v2554 = vsel %vm696, -1e+09, %v2550
        %v2555 = vsel %vm697, -1e+09, %v2551
        %v2556 = vsel %vm698, -1e+09, %v2552
        %v2557 = vsel %vm702, %v2553, -inf
        %2558 = vmax.xlane.f32.xlu0 %v2557
        %v2559 = vpop.xlane.xlu0 %2558
        %v2560 = vsel %vm702, %v2554, -inf
        %2561 = vmax.xlane.f32.xlu0 %v2560
        %v2562 = vpop.xlane.xlu0 %2561
        %v2563 = vsel %vm702, %v2555, -inf
        %2564 = vmax.xlane.f32.xlu0 %v2563
        %v2565 = vpop.xlane.xlu0 %2564
        %v2566 = vsel %vm702, %v2556, -inf
        %2567 = vmax.xlane.f32.xlu0 %v2566
        %v2568 = vpop.xlane.xlu0 %2567
        %v2569 = vsub.f32 %v2553, %v2559
        %v2570 = vsub.f32 %v2554, %v2562
        %v2571 = vsub.f32 %v2555, %v2565
        %v2572 = vsub.f32 %v2556, %v2568
        %v2573 = vmul.f32 %v2569, 1.442695
        %v2574 = vpow.pop %v2573
        %v2575 = vmul.f32 %v2570, 1.442695
        %v2576 = vpow.pop %v2575
        %v2577 = vmul.f32 %v2571, 1.442695
        %v2578 = vpow.pop %v2577
        %v2579 = vmul.f32 %v2572, 1.442695
        %v2580 = vpow.pop %v2579
        %v2581 = vsel %vm702, %v2574, 0.0
        %2582 = vadd.xlane.f32.xlu0 %v2581
        %v2583 = vpop.xlane.xlu0 %2582
        %v2584 = vsel %vm702, %v2576, 0.0
        %2585 = vadd.xlane.f32.xlu0 %v2584
        %v2586 = vpop.xlane.xlu0 %2585
        %v2587 = vsel %vm702, %v2578, 0.0
        %2588 = vadd.xlane.f32.xlu0 %v2587
        %v2589 = vpop.xlane.xlu0 %2588
        %v2590 = vsel %vm702, %v2580, 0.0
        %2591 = vadd.xlane.f32.xlu0 %v2590
        %v2592 = vpop.xlane.xlu0 %2591
        %v2593 = vrcp.pop %v2583
        %v2594 = vmul.f32 %v2574, %v2593
        %v2595 = vrcp.pop %v2586
        %v2596 = vmul.f32 %v2576, %v2595
        %v2597 = vrcp.pop %v2589
        %v2598 = vmul.f32 %v2578, %v2597
        %v2599 = vrcp.pop %v2592
        %v2600 = vmul.f32 %v2580, %v2599
        %s2601 = scalar_lea.vmem %s568, 16 [#allocation9]
        %2602 = vst.msk [vmem:[%s2601] sm:$0xff] %vm702, %v2594
        %2603 = vst.msk [vmem:[%s2601 + $0x20] sm:$0xff] %vm702, %v2596
        %2604 = vst.msk [vmem:[%s2601 + $0x40] sm:$0xff] %vm702, %v2598
        %2605 = vst.msk [vmem:[%s2601 + $0x60] sm:$0xff] %vm702, %v2600
        %2606 = vrot.lane.b32.xlu0 %v673, 48
        %v2607 = vpop.permute.xlu0 %2606
        %v2610 = vsel %vm702, %v2594, 0
        %2612 = vmatprep.subr.mxu0 0.0
        %2613 = vmatpush1.msra.mxu0 %v2607
        %2614 = vmatprep.subr.mxu0 0.0
        %2615 = vmatpush1.msra.mxu0 0.0
        %2616 = vmatprep.subr.mxu0 0.0
        %2617 = vmatpush1.msra.mxu0 0.0
        %2618 = vmatprep.subr.mxu0 0.0
        %2619 = vmatpush1.msra.mxu0 0.0
        %2620 = vmatprep.subr.mxu0 0.0
        %2621 = vmatpush1.msra.mxu0 0.0
        %2622 = vmatprep.subr.mxu0 0.0
        %2623 = vmatpush1.msra.mxu0 0.0
        %2624 = vmatprep.subr.mxu0 0.0
        %2625 = vmatpush1.msra.mxu0 0.0
        %2626 = vmatprep.subr.mxu0 0.0
        %2627 = vmatpush1.msra.mxu0 0.0
        %2628 = vmatprep.subr.mxu0 0.0
        %2629 = vmatpush1.msra.mxu0 0.0
        %2630 = vmatprep.subr.mxu0 0.0
        %2631 = vmatpush1.msra.mxu0 0.0
        %2632 = vmatprep.subr.mxu0 0.0
        %2633 = vmatpush1.msra.mxu0 0.0
        %2634 = vmatprep.subr.mxu0 0.0
        %2635 = vmatpush1.msra.mxu0 0.0
        %2636 = vmatprep.subr.mxu0 0.0
        %2637 = vmatpush1.msra.mxu0 0.0
        %2638 = vmatprep.subr.mxu0 0.0
        %2639 = vmatpush1.msra.mxu0 0.0
        %2640 = vmatprep.subr.mxu0 0.0
        %2641 = vmatpush1.msra.mxu0 0.0
        %2642 = vmatprep.subr.mxu0 0.0
        %2643 = vmatpush1.msra.mxu0 0.0
        %2644 = vmatprep.subr.mxu0 0.0
        %2645 = vmatpush1.msra.mxu0 0.0
        %2646 = vmatprep.subr.mxu0 0.0
        %2647 = vmatpush1.msra.mxu0 0.0
        %2648 = vmatprep.subr.mxu0 0.0
        %2649 = vmatpush1.msra.mxu0 0.0
        %2650 = vmatprep.subr.mxu0 0.0
        %2651 = vmatpush1.msra.mxu0 0.0
        %2652 = vmatprep.subr.mxu0 0.0
        %2653 = vmatpush1.msra.mxu0 0.0
        %2654 = vmatprep.subr.mxu0 0.0
        %2655 = vmatpush1.msra.mxu0 0.0
        %2656 = vmatprep.subr.mxu0 0.0
        %2657 = vmatpush1.msra.mxu0 0.0
        %2658 = vmatprep.subr.mxu0 0.0
        %2659 = vmatpush1.msra.mxu0 0.0
        %2660 = vmatprep.subr.mxu0 0.0
        %2661 = vmatpush1.msra.mxu0 0.0
        %2662 = vmatprep.subr.mxu0 0.0
        %2663 = vmatpush1.msra.mxu0 0.0
        %2664 = vmatprep.subr.mxu0 0.0
        %2665 = vmatpush1.msra.mxu0 0.0
        %2666 = vmatprep.subr.mxu0 0.0
        %2667 = vmatpush1.msra.mxu0 0.0
        %2668 = vmatprep.subr.mxu0 0.0
        %2669 = vmatpush1.msra.mxu0 0.0
        %2670 = vmatprep.subr.mxu0 0.0
        %2671 = vmatpush1.msra.mxu0 0.0
        %2672 = vmatprep.subr.mxu0 0.0
        %2673 = vmatpush1.msra.mxu0 0.0
        %2674 = vmatprep.subr.mxu0 0.0
        %2675 = vmatpush1.msra.mxu0 0.0
        %2676 = vmatprep.mubr.f32.mxu0 0.0
        %2677 = vmatmul.mubr.f32.gmra.mrb[0].mxu0 %v2610
        %v2678 = vpop.f32.mrb[0].mxu0
        %v2679 = vadd.f32 0.0, %v2678
        %v2680 = vpop.f32.mrb[0].mxu0
        %2681 = vdwg.mxu0
        %2682 = vrot.lane.b32.xlu0 %v678, 48
        %v2683 = vpop.permute.xlu0 %2682
        %v2686 = vsel %vm702, %v2596, 0
        %2688 = vmatprep.subr.mxu0 0.0
        %2689 = vmatpush1.msra.mxu0 %v2683
        %2690 = vmatprep.subr.mxu0 0.0
        %2691 = vmatpush1.msra.mxu0 0.0
        %2692 = vmatprep.subr.mxu0 0.0
        %2693 = vmatpush1.msra.mxu0 0.0
        %2694 = vmatprep.subr.mxu0 0.0
        %2695 = vmatpush1.msra.mxu0 0.0
        %2696 = vmatprep.subr.mxu0 0.0
        %2697 = vmatpush1.msra.mxu0 0.0
        %2698 = vmatprep.subr.mxu0 0.0
        %2699 = vmatpush1.msra.mxu0 0.0
        %2700 = vmatprep.subr.mxu0 0.0
        %2701 = vmatpush1.msra.mxu0 0.0
        %2702 = vmatprep.subr.mxu0 0.0
        %2703 = vmatpush1.msra.mxu0 0.0
        %2704 = vmatprep.subr.mxu0 0.0
        %2705 = vmatpush1.msra.mxu0 0.0
        %2706 = vmatprep.subr.mxu0 0.0
        %2707 = vmatpush1.msra.mxu0 0.0
        %2708 = vmatprep.subr.mxu0 0.0
        %2709 = vmatpush1.msra.mxu0 0.0
        %2710 = vmatprep.subr.mxu0 0.0
        %2711 = vmatpush1.msra.mxu0 0.0
        %2712 = vmatprep.subr.mxu0 0.0
        %2713 = vmatpush1.msra.mxu0 0.0
        %2714 = vmatprep.subr.mxu0 0.0
        %2715 = vmatpush1.msra.mxu0 0.0
        %2716 = vmatprep.subr.mxu0 0.0
        %2717 = vmatpush1.msra.mxu0 0.0
        %2718 = vmatprep.subr.mxu0 0.0
        %2719 = vmatpush1.msra.mxu0 0.0
        %2720 = vmatprep.subr.mxu0 0.0
        %2721 = vmatpush1.msra.mxu0 0.0
        %2722 = vmatprep.subr.mxu0 0.0
        %2723 = vmatpush1.msra.mxu0 0.0
        %2724 = vmatprep.subr.mxu0 0.0
        %2725 = vmatpush1.msra.mxu0 0.0
        %2726 = vmatprep.subr.mxu0 0.0
        %2727 = vmatpush1.msra.mxu0 0.0
        %2728 = vmatprep.subr.mxu0 0.0
        %2729 = vmatpush1.msra.mxu0 0.0
        %2730 = vmatprep.subr.mxu0 0.0
        %2731 = vmatpush1.msra.mxu0 0.0
        %2732 = vmatprep.subr.mxu0 0.0
        %2733 = vmatpush1.msra.mxu0 0.0
        %2734 = vmatprep.subr.mxu0 0.0
        %2735 = vmatpush1.msra.mxu0 0.0
        %2736 = vmatprep.subr.mxu0 0.0
        %2737 = vmatpush1.msra.mxu0 0.0
        %2738 = vmatprep.subr.mxu0 0.0
        %2739 = vmatpush1.msra.mxu0 0.0
        %2740 = vmatprep.subr.mxu0 0.0
        %2741 = vmatpush1.msra.mxu0 0.0
        %2742 = vmatprep.subr.mxu0 0.0
        %2743 = vmatpush1.msra.mxu0 0.0
        %2744 = vmatprep.subr.mxu0 0.0
        %2745 = vmatpush1.msra.mxu0 0.0
        %2746 = vmatprep.subr.mxu0 0.0
        %2747 = vmatpush1.msra.mxu0 0.0
        %2748 = vmatprep.subr.mxu0 0.0
        %2749 = vmatpush1.msra.mxu0 0.0
        %2750 = vmatprep.subr.mxu0 0.0
        %2751 = vmatpush1.msra.mxu0 0.0
        %2752 = vmatprep.mubr.f32.mxu0 0.0
        %2753 = vmatmul.mubr.f32.gmra.mrb[0].mxu0 %v2686
        %v2754 = vpop.f32.mrb[0].mxu0
        %v2755 = vadd.f32 0.0, %v2754
        %v2756 = vpop.f32.mrb[0].mxu0
        %2757 = vdwg.mxu0
        %2758 = vrot.lane.b32.xlu0 %v683, 48
        %v2759 = vpop.permute.xlu0 %2758
        %v2762 = vsel %vm702, %v2598, 0
        %2764 = vmatprep.subr.mxu0 0.0
        %2765 = vmatpush1.msra.mxu0 %v2759
        %2766 = vmatprep.subr.mxu0 0.0
        %2767 = vmatpush1.msra.mxu0 0.0
        %2768 = vmatprep.subr.mxu0 0.0
        %2769 = vmatpush1.msra.mxu0 0.0
        %2770 = vmatprep.subr.mxu0 0.0
        %2771 = vmatpush1.msra.mxu0 0.0
        %2772 = vmatprep.subr.mxu0 0.0
        %2773 = vmatpush1.msra.mxu0 0.0
        %2774 = vmatprep.subr.mxu0 0.0
        %2775 = vmatpush1.msra.mxu0 0.0
        %2776 = vmatprep.subr.mxu0 0.0
        %2777 = vmatpush1.msra.mxu0 0.0
        %2778 = vmatprep.subr.mxu0 0.0
        %2779 = vmatpush1.msra.mxu0 0.0
        %2780 = vmatprep.subr.mxu0 0.0
        %2781 = vmatpush1.msra.mxu0 0.0
        %2782 = vmatprep.subr.mxu0 0.0
        %2783 = vmatpush1.msra.mxu0 0.0
        %2784 = vmatprep.subr.mxu0 0.0
        %2785 = vmatpush1.msra.mxu0 0.0
        %2786 = vmatprep.subr.mxu0 0.0
        %2787 = vmatpush1.msra.mxu0 0.0
        %2788 = vmatprep.subr.mxu0 0.0
        %2789 = vmatpush1.msra.mxu0 0.0
        %2790 = vmatprep.subr.mxu0 0.0
        %2791 = vmatpush1.msra.mxu0 0.0
        %2792 = vmatprep.subr.mxu0 0.0
        %2793 = vmatpush1.msra.mxu0 0.0
        %2794 = vmatprep.subr.mxu0 0.0
        %2795 = vmatpush1.msra.mxu0 0.0
        %2796 = vmatprep.subr.mxu0 0.0
        %2797 = vmatpush1.msra.mxu0 0.0
        %2798 = vmatprep.subr.mxu0 0.0
        %2799 = vmatpush1.msra.mxu0 0.0
        %2800 = vmatprep.subr.mxu0 0.0
        %2801 = vmatpush1.msra.mxu0 0.0
        %2802 = vmatprep.subr.mxu0 0.0
        %2803 = vmatpush1.msra.mxu0 0.0
        %2804 = vmatprep.subr.mxu0 0.0
        %2805 = vmatpush1.msra.mxu0 0.0
        %2806 = vmatprep.subr.mxu0 0.0
        %2807 = vmatpush1.msra.mxu0 0.0
        %2808 = vmatprep.subr.mxu0 0.0
        %2809 = vmatpush1.msra.mxu0 0.0
        %2810 = vmatprep.subr.mxu0 0.0
        %2811 = vmatpush1.msra.mxu0 0.0
        %2812 = vmatprep.subr.mxu0 0.0
        %2813 = vmatpush1.msra.mxu0 0.0
        %2814 = vmatprep.subr.mxu0 0.0
        %2815 = vmatpush1.msra.mxu0 0.0
        %2816 = vmatprep.subr.mxu0 0.0
        %2817 = vmatpush1.msra.mxu0 0.0
        %2818 = vmatprep.subr.mxu0 0.0
        %2819 = vmatpush1.msra.mxu0 0.0
        %2820 = vmatprep.subr.mxu0 0.0
        %2821 = vmatpush1.msra.mxu0 0.0
        %2822 = vmatprep.subr.mxu0 0.0
        %2823 = vmatpush1.msra.mxu0 0.0
        %2824 = vmatprep.subr.mxu0 0.0
        %2825 = vmatpush1.msra.mxu0 0.0
        %2826 = vmatprep.subr.mxu0 0.0
        %2827 = vmatpush1.msra.mxu0 0.0
        %2828 = vmatprep.mubr.f32.mxu0 0.0
        %2829 = vmatmul.mubr.f32.gmra.mrb[0].mxu0 %v2762
        %v2830 = vpop.f32.mrb[0].mxu0
        %v2831 = vadd.f32 0.0, %v2830
        %v2832 = vpop.f32.mrb[0].mxu0
        %2833 = vdwg.mxu0
        %2834 = vrot.lane.b32.xlu0 %v688, 48
        %v2835 = vpop.permute.xlu0 %2834
        %v2838 = vsel %vm702, %v2600, 0
        %2840 = vmatprep.subr.mxu0 0.0
        %2841 = vmatpush1.msra.mxu0 %v2835
        %2842 = vmatprep.subr.mxu0 0.0
        %2843 = vmatpush1.msra.mxu0 0.0
        %2844 = vmatprep.subr.mxu0 0.0
        %2845 = vmatpush1.msra.mxu0 0.0
        %2846 = vmatprep.subr.mxu0 0.0
        %2847 = vmatpush1.msra.mxu0 0.0
        %2848 = vmatprep.subr.mxu0 0.0
        %2849 = vmatpush1.msra.mxu0 0.0
        %2850 = vmatprep.subr.mxu0 0.0
        %2851 = vmatpush1.msra.mxu0 0.0
        %2852 = vmatprep.subr.mxu0 0.0
        %2853 = vmatpush1.msra.mxu0 0.0
        %2854 = vmatprep.subr.mxu0 0.0
        %2855 = vmatpush1.msra.mxu0 0.0
        %2856 = vmatprep.subr.mxu0 0.0
        %2857 = vmatpush1.msra.mxu0 0.0
        %2858 = vmatprep.subr.mxu0 0.0
        %2859 = vmatpush1.msra.mxu0 0.0
        %2860 = vmatprep.subr.mxu0 0.0
        %2861 = vmatpush1.msra.mxu0 0.0
        %2862 = vmatprep.subr.mxu0 0.0
        %2863 = vmatpush1.msra.mxu0 0.0
        %2864 = vmatprep.subr.mxu0 0.0
        %2865 = vmatpush1.msra.mxu0 0.0
        %2866 = vmatprep.subr.mxu0 0.0
        %2867 = vmatpush1.msra.mxu0 0.0
        %2868 = vmatprep.subr.mxu0 0.0
        %2869 = vmatpush1.msra.mxu0 0.0
        %2870 = vmatprep.subr.mxu0 0.0
        %2871 = vmatpush1.msra.mxu0 0.0
        %2872 = vmatprep.subr.mxu0 0.0
        %2873 = vmatpush1.msra.mxu0 0.0
        %2874 = vmatprep.subr.mxu0 0.0
        %2875 = vmatpush1.msra.mxu0 0.0
        %2876 = vmatprep.subr.mxu0 0.0
        %2877 = vmatpush1.msra.mxu0 0.0
        %2878 = vmatprep.subr.mxu0 0.0
        %2879 = vmatpush1.msra.mxu0 0.0
        %2880 = vmatprep.subr.mxu0 0.0
        %2881 = vmatpush1.msra.mxu0 0.0
        %2882 = vmatprep.subr.mxu0 0.0
        %2883 = vmatpush1.msra.mxu0 0.0
        %2884 = vmatprep.subr.mxu0 0.0
        %2885 = vmatpush1.msra.mxu0 0.0
        %2886 = vmatprep.subr.mxu0 0.0
        %2887 = vmatpush1.msra.mxu0 0.0
        %2888 = vmatprep.subr.mxu0 0.0
        %2889 = vmatpush1.msra.mxu0 0.0
        %2890 = vmatprep.subr.mxu0 0.0
        %2891 = vmatpush1.msra.mxu0 0.0
        %2892 = vmatprep.subr.mxu0 0.0
        %2893 = vmatpush1.msra.mxu0 0.0
        %2894 = vmatprep.subr.mxu0 0.0
        %2895 = vmatpush1.msra.mxu0 0.0
        %2896 = vmatprep.subr.mxu0 0.0
        %2897 = vmatpush1.msra.mxu0 0.0
        %2898 = vmatprep.subr.mxu0 0.0
        %2899 = vmatpush1.msra.mxu0 0.0
        %2900 = vmatprep.subr.mxu0 0.0
        %2901 = vmatpush1.msra.mxu0 0.0
        %2902 = vmatprep.subr.mxu0 0.0
        %2903 = vmatpush1.msra.mxu0 0.0
        %2904 = vmatprep.mubr.f32.mxu0 0.0
        %2905 = vmatmul.mubr.f32.gmra.mrb[0].mxu0 %v2838
        %v2906 = vpop.f32.mrb[0].mxu0
        %v2907 = vadd.f32 0.0, %v2906
        %v2908 = vpop.f32.mrb[0].mxu0
        %2909 = vdwg.mxu0
        %v2910 = vld [vmem:[#allocation5 + $0x10] sm:$0xff]
        %v2912 = vsel %vm702, %v2679, 0
        %v2915 = vsel %vm702, %v2755, 0
        %v2918 = vsel %vm702, %v2831, 0
        %v2921 = vsel %vm702, %v2907, 0
        %2923 = vmatprep.subr.mxu0 0.0
        %2924 = vmatpush1.msra.mxu0 %v2910
        %2925 = vmatprep.subr.mxu0 0.0
        %2926 = vmatpush1.msra.mxu0 0.0
        %2927 = vmatprep.subr.mxu0 0.0
        %2928 = vmatpush1.msra.mxu0 0.0
        %2929 = vmatprep.subr.mxu0 0.0
        %2930 = vmatpush1.msra.mxu0 0.0
        %2931 = vmatprep.subr.mxu0 0.0
        %2932 = vmatpush1.msra.mxu0 0.0
        %2933 = vmatprep.subr.mxu0 0.0
        %2934 = vmatpush1.msra.mxu0 0.0
        %2935 = vmatprep.subr.mxu0 0.0
        %2936 = vmatpush1.msra.mxu0 0.0
        %2937 = vmatprep.subr.mxu0 0.0
        %2938 = vmatpush1.msra.mxu0 0.0
        %2939 = vmatprep.subr.mxu0 0.0
        %2940 = vmatpush1.msra.mxu0 0.0
        %2941 = vmatprep.subr.mxu0 0.0
        %2942 = vmatpush1.msra.mxu0 0.0
        %2943 = vmatprep.subr.mxu0 0.0
        %2944 = vmatpush1.msra.mxu0 0.0
        %2945 = vmatprep.subr.mxu0 0.0
        %2946 = vmatpush1.msra.mxu0 0.0
        %2947 = vmatprep.subr.mxu0 0.0
        %2948 = vmatpush1.msra.mxu0 0.0
        %2949 = vmatprep.subr.mxu0 0.0
        %2950 = vmatpush1.msra.mxu0 0.0
        %2951 = vmatprep.subr.mxu0 0.0
        %2952 = vmatpush1.msra.mxu0 0.0
        %2953 = vmatprep.subr.mxu0 0.0
        %2954 = vmatpush1.msra.mxu0 0.0
        %2955 = vmatprep.subr.mxu0 0.0
        %2956 = vmatpush1.msra.mxu0 0.0
        %2957 = vmatprep.subr.mxu0 0.0
        %2958 = vmatpush1.msra.mxu0 0.0
        %2959 = vmatprep.subr.mxu0 0.0
        %2960 = vmatpush1.msra.mxu0 0.0
        %2961 = vmatprep.subr.mxu0 0.0
        %2962 = vmatpush1.msra.mxu0 0.0
        %2963 = vmatprep.subr.mxu0 0.0
        %2964 = vmatpush1.msra.mxu0 0.0
        %2965 = vmatprep.subr.mxu0 0.0
        %2966 = vmatpush1.msra.mxu0 0.0
        %2967 = vmatprep.subr.mxu0 0.0
        %2968 = vmatpush1.msra.mxu0 0.0
        %2969 = vmatprep.subr.mxu0 0.0
        %2970 = vmatpush1.msra.mxu0 0.0
        %2971 = vmatprep.subr.mxu0 0.0
        %2972 = vmatpush1.msra.mxu0 0.0
        %2973 = vmatprep.subr.mxu0 0.0
        %2974 = vmatpush1.msra.mxu0 0.0
        %2975 = vmatprep.subr.mxu0 0.0
        %2976 = vmatpush1.msra.mxu0 0.0
        %2977 = vmatprep.subr.mxu0 0.0
        %2978 = vmatpush1.msra.mxu0 0.0
        %2979 = vmatprep.subr.mxu0 0.0
        %2980 = vmatpush1.msra.mxu0 0.0
        %2981 = vmatprep.subr.mxu0 0.0
        %2982 = vmatpush1.msra.mxu0 0.0
        %2983 = vmatprep.subr.mxu0 0.0
        %2984 = vmatpush1.msra.mxu0 0.0
        %2985 = vmatprep.subr.mxu0 0.0
        %2986 = vmatpush1.msra.mxu0 0.0
        %2987 = vmatprep.mubr.f32.mxu0 0.0
        %2988 = vmatmul.mubr.f32.gmra.mrb[0].mxu0 %v2912
        %v2989 = vpop.f32.mrb[0].mxu0
        %v2990 = vadd.f32 0.0, %v2989
        %v2991 = vpop.f32.mrb[0].mxu0
        %2992 = vmatprep.mubr.f32.mxu0 0.0
        %2993 = vmatmul.mubr.f32.gmra.mrb[0].mxu0 %v2915
        %v2994 = vpop.f32.mrb[0].mxu0
        %v2995 = vadd.f32 0.0, %v2994
        %v2996 = vpop.f32.mrb[0].mxu0
        %2997 = vmatprep.mubr.f32.mxu0 0.0
        %2998 = vmatmul.mubr.f32.gmra.mrb[0].mxu0 %v2918
        %v2999 = vpop.f32.mrb[0].mxu0
        %v3000 = vadd.f32 0.0, %v2999
        %v3001 = vpop.f32.mrb[0].mxu0
        %3002 = vmatprep.mubr.f32.mxu0 0.0
        %3003 = vmatmul.mubr.f32.gmra.mrb[0].mxu0 %v2921
        %v3004 = vpop.f32.mrb[0].mxu0
        %v3005 = vadd.f32 0.0, %v3004
        %v3006 = vpop.f32.mrb[0].mxu0
        %3007 = vdwg.mxu0
        %v3008 = vadd.f32 %v2219, %v2990
        %v3009 = vadd.f32 %v2224, %v2995
        %v3010 = vadd.f32 %v2229, %v3000
        %v3011 = vadd.f32 %v2234, %v3005
        %3012 = vrot.lane.b32.xlu0 %v673, 104
        %v3013 = vpop.permute.xlu0 %3012
        %3014 = vrot.lane.b32.xlu0 %v673, 72
        %v3015 = vpop.permute.xlu0 %3014
        %v3016 = vsel %vm702, %v3013, 0
        %v3018 = vsel %vm702, %v3015, 0
        %3020 = vmatprep.subr.mxu0 0.0
        %3021 = vmatpush1.xpose.msra.mxu0 %v3018
        %3022 = vmatprep.subr.mxu0 0.0
        %3023 = vmatpush1.xpose.msra.mxu0 0.0
        %3024 = vmatprep.subr.mxu0 0.0
        %3025 = vmatpush1.xpose.msra.mxu0 0.0
        %3026 = vmatprep.subr.mxu0 0.0
        %3027 = vmatpush1.xpose.msra.mxu0 0.0
        %3028 = vmatprep.subr.mxu0 0.0
        %3029 = vmatpush1.xpose.msra.mxu0 0.0
        %3030 = vmatprep.subr.mxu0 0.0
        %3031 = vmatpush1.xpose.msra.mxu0 0.0
        %3032 = vmatprep.subr.mxu0 0.0
        %3033 = vmatpush1.xpose.msra.mxu0 0.0
        %3034 = vmatprep.subr.mxu0 0.0
        %3035 = vmatpush1.xpose.msra.mxu0 0.0
        %3036 = vmatprep.subr.mxu0 0.0
        %3037 = vmatpush1.xpose.msra.mxu0 0.0
        %3038 = vmatprep.subr.mxu0 0.0
        %3039 = vmatpush1.xpose.msra.mxu0 0.0
        %3040 = vmatprep.subr.mxu0 0.0
        %3041 = vmatpush1.xpose.msra.mxu0 0.0
        %3042 = vmatprep.subr.mxu0 0.0
        %3043 = vmatpush1.xpose.msra.mxu0 0.0
        %3044 = vmatprep.subr.mxu0 0.0
        %3045 = vmatpush1.xpose.msra.mxu0 0.0
        %3046 = vmatprep.subr.mxu0 0.0
        %3047 = vmatpush1.xpose.msra.mxu0 0.0
        %3048 = vmatprep.subr.mxu0 0.0
        %3049 = vmatpush1.xpose.msra.mxu0 0.0
        %3050 = vmatprep.subr.mxu0 0.0
        %3051 = vmatpush1.xpose.msra.mxu0 0.0
        %3052 = vmatprep.subr.mxu0 0.0
        %3053 = vmatpush1.xpose.msra.mxu0 0.0
        %3054 = vmatprep.subr.mxu0 0.0
        %3055 = vmatpush1.xpose.msra.mxu0 0.0
        %3056 = vmatprep.subr.mxu0 0.0
        %3057 = vmatpush1.xpose.msra.mxu0 0.0
        %3058 = vmatprep.subr.mxu0 0.0
        %3059 = vmatpush1.xpose.msra.mxu0 0.0
        %3060 = vmatprep.subr.mxu0 0.0
        %3061 = vmatpush1.xpose.msra.mxu0 0.0
        %3062 = vmatprep.subr.mxu0 0.0
        %3063 = vmatpush1.xpose.msra.mxu0 0.0
        %3064 = vmatprep.subr.mxu0 0.0
        %3065 = vmatpush1.xpose.msra.mxu0 0.0
        %3066 = vmatprep.subr.mxu0 0.0
        %3067 = vmatpush1.xpose.msra.mxu0 0.0
        %3068 = vmatprep.subr.mxu0 0.0
        %3069 = vmatpush1.xpose.msra.mxu0 0.0
        %3070 = vmatprep.subr.mxu0 0.0
        %3071 = vmatpush1.xpose.msra.mxu0 0.0
        %3072 = vmatprep.subr.mxu0 0.0
        %3073 = vmatpush1.xpose.msra.mxu0 0.0
        %3074 = vmatprep.subr.mxu0 0.0
        %3075 = vmatpush1.xpose.msra.mxu0 0.0
        %3076 = vmatprep.subr.mxu0 0.0
        %3077 = vmatpush1.xpose.msra.mxu0 0.0
        %3078 = vmatprep.subr.mxu0 0.0
        %3079 = vmatpush1.xpose.msra.mxu0 0.0
        %3080 = vmatprep.subr.mxu0 0.0
        %3081 = vmatpush1.xpose.msra.mxu0 0.0
        %3082 = vmatprep.subr.mxu0 0.0
        %3083 = vmatpush1.xpose.msra.mxu0 0.0
        %3084 = vmatprep.mubr.f32.mxu0 0.0
        %3085 = vmatmul.mubr.f32.gmra.mrb[0].mxu0 %v3016
        %v3086 = vpop.f32.mrb[0].mxu0
        %v3087 = vadd.f32 0.0, %v3086
        %v3088 = vpop.f32.mrb[0].mxu0
        %3089 = vdwg.mxu0
        %3090 = vrot.lane.b32.xlu0 %v678, 104
        %v3091 = vpop.permute.xlu0 %3090
        %3092 = vrot.lane.b32.xlu0 %v678, 72
        %v3093 = vpop.permute.xlu0 %3092
        %v3094 = vsel %vm702, %v3091, 0
        %v3096 = vsel %vm702, %v3093, 0
        %3098 = vmatprep.subr.mxu0 0.0
        %3099 = vmatpush1.xpose.msra.mxu0 %v3096
        %3100 = vmatprep.subr.mxu0 0.0
        %3101 = vmatpush1.xpose.msra.mxu0 0.0
        %3102 = vmatprep.subr.mxu0 0.0
        %3103 = vmatpush1.xpose.msra.mxu0 0.0
        %3104 = vmatprep.subr.mxu0 0.0
        %3105 = vmatpush1.xpose.msra.mxu0 0.0
        %3106 = vmatprep.subr.mxu0 0.0
        %3107 = vmatpush1.xpose.msra.mxu0 0.0
        %3108 = vmatprep.subr.mxu0 0.0
        %3109 = vmatpush1.xpose.msra.mxu0 0.0
        %3110 = vmatprep.subr.mxu0 0.0
        %3111 = vmatpush1.xpose.msra.mxu0 0.0
        %3112 = vmatprep.subr.mxu0 0.0
        %3113 = vmatpush1.xpose.msra.mxu0 0.0
        %3114 = vmatprep.subr.mxu0 0.0
        %3115 = vmatpush1.xpose.msra.mxu0 0.0
        %3116 = vmatprep.subr.mxu0 0.0
        %3117 = vmatpush1.xpose.msra.mxu0 0.0
        %3118 = vmatprep.subr.mxu0 0.0
        %3119 = vmatpush1.xpose.msra.mxu0 0.0
        %3120 = vmatprep.subr.mxu0 0.0
        %3121 = vmatpush1.xpose.msra.mxu0 0.0
        %3122 = vmatprep.subr.mxu0 0.0
        %3123 = vmatpush1.xpose.msra.mxu0 0.0
        %3124 = vmatprep.subr.mxu0 0.0
        %3125 = vmatpush1.xpose.msra.mxu0 0.0
        %3126 = vmatprep.subr.mxu0 0.0
        %3127 = vmatpush1.xpose.msra.mxu0 0.0
        %3128 = vmatprep.subr.mxu0 0.0
        %3129 = vmatpush1.xpose.msra.mxu0 0.0
        %3130 = vmatprep.subr.mxu0 0.0
        %3131 = vmatpush1.xpose.msra.mxu0 0.0
        %3132 = vmatprep.subr.mxu0 0.0
        %3133 = vmatpush1.xpose.msra.mxu0 0.0
        %3134 = vmatprep.subr.mxu0 0.0
        %3135 = vmatpush1.xpose.msra.mxu0 0.0
        %3136 = vmatprep.subr.mxu0 0.0
        %3137 = vmatpush1.xpose.msra.mxu0 0.0
        %3138 = vmatprep.subr.mxu0 0.0
        %3139 = vmatpush1.xpose.msra.mxu0 0.0
        %3140 = vmatprep.subr.mxu0 0.0
        %3141 = vmatpush1.xpose.msra.mxu0 0.0
        %3142 = vmatprep.subr.mxu0 0.0
        %3143 = vmatpush1.xpose.msra.mxu0 0.0
        %3144 = vmatprep.subr.mxu0 0.0
        %3145 = vmatpush1.xpose.msra.mxu0 0.0
        %3146 = vmatprep.subr.mxu0 0.0
        %3147 = vmatpush1.xpose.msra.mxu0 0.0
        %3148 = vmatprep.subr.mxu0 0.0
        %3149 = vmatpush1.xpose.msra.mxu0 0.0
        %3150 = vmatprep.subr.mxu0 0.0
        %3151 = vmatpush1.xpose.msra.mxu0 0.0
        %3152 = vmatprep.subr.mxu0 0.0
        %3153 = vmatpush1.xpose.msra.mxu0 0.0
        %3154 = vmatprep.subr.mxu0 0.0
        %3155 = vmatpush1.xpose.msra.mxu0 0.0
        %3156 = vmatprep.subr.mxu0 0.0
        %3157 = vmatpush1.xpose.msra.mxu0 0.0
        %3158 = vmatprep.subr.mxu0 0.0
        %3159 = vmatpush1.xpose.msra.mxu0 0.0
        %3160 = vmatprep.subr.mxu0 0.0
        %3161 = vmatpush1.xpose.msra.mxu0 0.0
        %3162 = vmatprep.mubr.f32.mxu0 0.0
        %3163 = vmatmul.mubr.f32.gmra.mrb[0].mxu0 %v3094
        %v3164 = vpop.f32.mrb[0].mxu0
        %v3165 = vadd.f32 0.0, %v3164
        %v3166 = vpop.f32.mrb[0].mxu0
        %3167 = vdwg.mxu0
        %3168 = vrot.lane.b32.xlu0 %v683, 104
        %v3169 = vpop.permute.xlu0 %3168
        %3170 = vrot.lane.b32.xlu0 %v683, 72
        %v3171 = vpop.permute.xlu0 %3170
        %v3172 = vsel %vm702, %v3169, 0
        %v3174 = vsel %vm702, %v3171, 0
        %3176 = vmatprep.subr.mxu0 0.0
        %3177 = vmatpush1.xpose.msra.mxu0 %v3174
        %3178 = vmatprep.subr.mxu0 0.0
        %3179 = vmatpush1.xpose.msra.mxu0 0.0
        %3180 = vmatprep.subr.mxu0 0.0
        %3181 = vmatpush1.xpose.msra.mxu0 0.0
        %3182 = vmatprep.subr.mxu0 0.0
        %3183 = vmatpush1.xpose.msra.mxu0 0.0
        %3184 = vmatprep.subr.mxu0 0.0
        %3185 = vmatpush1.xpose.msra.mxu0 0.0
        %3186 = vmatprep.subr.mxu0 0.0
        %3187 = vmatpush1.xpose.msra.mxu0 0.0
        %3188 = vmatprep.subr.mxu0 0.0
        %3189 = vmatpush1.xpose.msra.mxu0 0.0
        %3190 = vmatprep.subr.mxu0 0.0
        %3191 = vmatpush1.xpose.msra.mxu0 0.0
        %3192 = vmatprep.subr.mxu0 0.0
        %3193 = vmatpush1.xpose.msra.mxu0 0.0
        %3194 = vmatprep.subr.mxu0 0.0
        %3195 = vmatpush1.xpose.msra.mxu0 0.0
        %3196 = vmatprep.subr.mxu0 0.0
        %3197 = vmatpush1.xpose.msra.mxu0 0.0
        %3198 = vmatprep.subr.mxu0 0.0
        %3199 = vmatpush1.xpose.msra.mxu0 0.0
        %3200 = vmatprep.subr.mxu0 0.0
        %3201 = vmatpush1.xpose.msra.mxu0 0.0
        %3202 = vmatprep.subr.mxu0 0.0
        %3203 = vmatpush1.xpose.msra.mxu0 0.0
        %3204 = vmatprep.subr.mxu0 0.0
        %3205 = vmatpush1.xpose.msra.mxu0 0.0
        %3206 = vmatprep.subr.mxu0 0.0
        %3207 = vmatpush1.xpose.msra.mxu0 0.0
        %3208 = vmatprep.subr.mxu0 0.0
        %3209 = vmatpush1.xpose.msra.mxu0 0.0
        %3210 = vmatprep.subr.mxu0 0.0
        %3211 = vmatpush1.xpose.msra.mxu0 0.0
        %3212 = vmatprep.subr.mxu0 0.0
        %3213 = vmatpush1.xpose.msra.mxu0 0.0
        %3214 = vmatprep.subr.mxu0 0.0
        %3215 = vmatpush1.xpose.msra.mxu0 0.0
        %3216 = vmatprep.subr.mxu0 0.0
        %3217 = vmatpush1.xpose.msra.mxu0 0.0
        %3218 = vmatprep.subr.mxu0 0.0
        %3219 = vmatpush1.xpose.msra.mxu0 0.0
        %3220 = vmatprep.subr.mxu0 0.0
        %3221 = vmatpush1.xpose.msra.mxu0 0.0
        %3222 = vmatprep.subr.mxu0 0.0
        %3223 = vmatpush1.xpose.msra.mxu0 0.0
        %3224 = vmatprep.subr.mxu0 0.0
        %3225 = vmatpush1.xpose.msra.mxu0 0.0
        %3226 = vmatprep.subr.mxu0 0.0
        %3227 = vmatpush1.xpose.msra.mxu0 0.0
        %3228 = vmatprep.subr.mxu0 0.0
        %3229 = vmatpush1.xpose.msra.mxu0 0.0
        %3230 = vmatprep.subr.mxu0 0.0
        %3231 = vmatpush1.xpose.msra.mxu0 0.0
        %3232 = vmatprep.subr.mxu0 0.0
        %3233 = vmatpush1.xpose.msra.mxu0 0.0
        %3234 = vmatprep.subr.mxu0 0.0
        %3235 = vmatpush1.xpose.msra.mxu0 0.0
        %3236 = vmatprep.subr.mxu0 0.0
        %3237 = vmatpush1.xpose.msra.mxu0 0.0
        %3238 = vmatprep.subr.mxu0 0.0
        %3239 = vmatpush1.xpose.msra.mxu0 0.0
        %3240 = vmatprep.mubr.f32.mxu0 0.0
        %3241 = vmatmul.mubr.f32.gmra.mrb[0].mxu0 %v3172
        %v3242 = vpop.f32.mrb[0].mxu0
        %v3243 = vadd.f32 0.0, %v3242
        %v3244 = vpop.f32.mrb[0].mxu0
        %3245 = vdwg.mxu0
        %3246 = vrot.lane.b32.xlu0 %v688, 104
        %v3247 = vpop.permute.xlu0 %3246
        %3248 = vrot.lane.b32.xlu0 %v688, 72
        %v3249 = vpop.permute.xlu0 %3248
        %v3250 = vsel %vm702, %v3247, 0
        %v3252 = vsel %vm702, %v3249, 0
        %3254 = vmatprep.subr.mxu0 0.0
        %3255 = vmatpush1.xpose.msra.mxu0 %v3252
        %3256 = vmatprep.subr.mxu0 0.0
        %3257 = vmatpush1.xpose.msra.mxu0 0.0
        %3258 = vmatprep.subr.mxu0 0.0
        %3259 = vmatpush1.xpose.msra.mxu0 0.0
        %3260 = vmatprep.subr.mxu0 0.0
        %3261 = vmatpush1.xpose.msra.mxu0 0.0
        %3262 = vmatprep.subr.mxu0 0.0
        %3263 = vmatpush1.xpose.msra.mxu0 0.0
        %3264 = vmatprep.subr.mxu0 0.0
        %3265 = vmatpush1.xpose.msra.mxu0 0.0
        %3266 = vmatprep.subr.mxu0 0.0
        %3267 = vmatpush1.xpose.msra.mxu0 0.0
        %3268 = vmatprep.subr.mxu0 0.0
        %3269 = vmatpush1.xpose.msra.mxu0 0.0
        %3270 = vmatprep.subr.mxu0 0.0
        %3271 = vmatpush1.xpose.msra.mxu0 0.0
        %3272 = vmatprep.subr.mxu0 0.0
        %3273 = vmatpush1.xpose.msra.mxu0 0.0
        %3274 = vmatprep.subr.mxu0 0.0
        %3275 = vmatpush1.xpose.msra.mxu0 0.0
        %3276 = vmatprep.subr.mxu0 0.0
        %3277 = vmatpush1.xpose.msra.mxu0 0.0
        %3278 = vmatprep.subr.mxu0 0.0
        %3279 = vmatpush1.xpose.msra.mxu0 0.0
        %3280 = vmatprep.subr.mxu0 0.0
        %3281 = vmatpush1.xpose.msra.mxu0 0.0
        %3282 = vmatprep.subr.mxu0 0.0
        %3283 = vmatpush1.xpose.msra.mxu0 0.0
        %3284 = vmatprep.subr.mxu0 0.0
        %3285 = vmatpush1.xpose.msra.mxu0 0.0
        %3286 = vmatprep.subr.mxu0 0.0
        %3287 = vmatpush1.xpose.msra.mxu0 0.0
        %3288 = vmatprep.subr.mxu0 0.0
        %3289 = vmatpush1.xpose.msra.mxu0 0.0
        %3290 = vmatprep.subr.mxu0 0.0
        %3291 = vmatpush1.xpose.msra.mxu0 0.0
        %3292 = vmatprep.subr.mxu0 0.0
        %3293 = vmatpush1.xpose.msra.mxu0 0.0
        %3294 = vmatprep.subr.mxu0 0.0
        %3295 = vmatpush1.xpose.msra.mxu0 0.0
        %3296 = vmatprep.subr.mxu0 0.0
        %3297 = vmatpush1.xpose.msra.mxu0 0.0
        %3298 = vmatprep.subr.mxu0 0.0
        %3299 = vmatpush1.xpose.msra.mxu0 0.0
        %3300 = vmatprep.subr.mxu0 0.0
        %3301 = vmatpush1.xpose.msra.mxu0 0.0
        %3302 = vmatprep.subr.mxu0 0.0
        %3303 = vmatpush1.xpose.msra.mxu0 0.0
        %3304 = vmatprep.subr.mxu0 0.0
        %3305 = vmatpush1.xpose.msra.mxu0 0.0
        %3306 = vmatprep.subr.mxu0 0.0
        %3307 = vmatpush1.xpose.msra.mxu0 0.0
        %3308 = vmatprep.subr.mxu0 0.0
        %3309 = vmatpush1.xpose.msra.mxu0 0.0
        %3310 = vmatprep.subr.mxu0 0.0
        %3311 = vmatpush1.xpose.msra.mxu0 0.0
        %3312 = vmatprep.subr.mxu0 0.0
        %3313 = vmatpush1.xpose.msra.mxu0 0.0
        %3314 = vmatprep.subr.mxu0 0.0
        %3315 = vmatpush1.xpose.msra.mxu0 0.0
        %3316 = vmatprep.subr.mxu0 0.0
        %3317 = vmatpush1.xpose.msra.mxu0 0.0
        %3318 = vmatprep.mubr.f32.mxu0 0.0
        %3319 = vmatmul.mubr.f32.gmra.mrb[0].mxu0 %v3250
        %v3320 = vpop.f32.mrb[0].mxu0
        %v3321 = vadd.f32 0.0, %v3320
        %v3322 = vpop.f32.mrb[0].mxu0
        %3323 = vdwg.mxu0
        %v3324 = vmul.f32 %v3087, 0.35355338
        %v3325 = vmul.f32 %v3165, 0.35355338
        %v3326 = vmul.f32 %v3243, 0.35355338
        %v3327 = vmul.f32 %v3321, 0.35355338
        %v3328 = vsel %vm695, -1e+09, %v3324
        %v3329 = vsel %vm696, -1e+09, %v3325
        %v3330 = vsel %vm697, -1e+09, %v3326
        %v3331 = vsel %vm698, -1e+09, %v3327
        %v3332 = vsel %vm702, %v3328, -inf
        %3333 = vmax.xlane.f32.xlu0 %v3332
        %v3334 = vpop.xlane.xlu0 %3333
        %v3335 = vsel %vm702, %v3329, -inf
        %3336 = vmax.xlane.f32.xlu0 %v3335
        %v3337 = vpop.xlane.xlu0 %3336
        %v3338 = vsel %vm702, %v3330, -inf
        %3339 = vmax.xlane.f32.xlu0 %v3338
        %v3340 = vpop.xlane.xlu0 %3339
        %v3341 = vsel %vm702, %v3331, -inf
        %3342 = vmax.xlane.f32.xlu0 %v3341
        %v3343 = vpop.xlane.xlu0 %3342
        %v3344 = vsub.f32 %v3328, %v3334
        %v3345 = vsub.f32 %v3329, %v3337
        %v3346 = vsub.f32 %v3330, %v3340
        %v3347 = vsub.f32 %v3331, %v3343
        %v3348 = vmul.f32 %v3344, 1.442695
        %v3349 = vpow.pop %v3348
        %v3350 = vmul.f32 %v3345, 1.442695
        %v3351 = vpow.pop %v3350
        %v3352 = vmul.f32 %v3346, 1.442695
        %v3353 = vpow.pop %v3352
        %v3354 = vmul.f32 %v3347, 1.442695
        %v3355 = vpow.pop %v3354
        %v3356 = vsel %vm702, %v3349, 0.0
        %3357 = vadd.xlane.f32.xlu0 %v3356
        %v3358 = vpop.xlane.xlu0 %3357
        %v3359 = vsel %vm702, %v3351, 0.0
        %3360 = vadd.xlane.f32.xlu0 %v3359
        %v3361 = vpop.xlane.xlu0 %3360
        %v3362 = vsel %vm702, %v3353, 0.0
        %3363 = vadd.xlane.f32.xlu0 %v3362
        %v3364 = vpop.xlane.xlu0 %3363
        %v3365 = vsel %vm702, %v3355, 0.0
        %3366 = vadd.xlane.f32.xlu0 %v3365
        %v3367 = vpop.xlane.xlu0 %3366
        %v3368 = vrcp.pop %v3358
        %v3369 = vmul.f32 %v3349, %v3368
        %v3370 = vrcp.pop %v3361
        %v3371 = vmul.f32 %v3351, %v3370
        %v3372 = vrcp.pop %v3364
        %v3373 = vmul.f32 %v3353, %v3372
        %v3374 = vrcp.pop %v3367
        %v3375 = vmul.f32 %v3355, %v3374
        %s3376 = scalar_lea.vmem %s568, 24 [#allocation9]
        %3377 = vst.msk [vmem:[%s3376] sm:$0xff] %vm702, %v3369
        %3378 = vst.msk [vmem:[%s3376 + $0x20] sm:$0xff] %vm702, %v3371
        %3379 = vst.msk [vmem:[%s3376 + $0x40] sm:$0xff] %vm702, %v3373
        %3380 = vst.msk [vmem:[%s3376 + $0x60] sm:$0xff] %vm702, %v3375
        %3381 = vrot.lane.b32.xlu0 %v673, 40
        %v3382 = vpop.permute.xlu0 %3381
        %v3385 = vsel %vm702, %v3369, 0
        %3387 = vmatprep.subr.mxu0 0.0
        %3388 = vmatpush1.msra.mxu0 %v3382
        %3389 = vmatprep.subr.mxu0 0.0
        %3390 = vmatpush1.msra.mxu0 0.0
        %3391 = vmatprep.subr.mxu0 0.0
        %3392 = vmatpush1.msra.mxu0 0.0
        %3393 = vmatprep.subr.mxu0 0.0
        %3394 = vmatpush1.msra.mxu0 0.0
        %3395 = vmatprep.subr.mxu0 0.0
        %3396 = vmatpush1.msra.mxu0 0.0
        %3397 = vmatprep.subr.mxu0 0.0
        %3398 = vmatpush1.msra.mxu0 0.0
        %3399 = vmatprep.subr.mxu0 0.0
        %3400 = vmatpush1.msra.mxu0 0.0
        %3401 = vmatprep.subr.mxu0 0.0
        %3402 = vmatpush1.msra.mxu0 0.0
        %3403 = vmatprep.subr.mxu0 0.0
        %3404 = vmatpush1.msra.mxu0 0.0
        %3405 = vmatprep.subr.mxu0 0.0
        %3406 = vmatpush1.msra.mxu0 0.0
        %3407 = vmatprep.subr.mxu0 0.0
        %3408 = vmatpush1.msra.mxu0 0.0
        %3409 = vmatprep.subr.mxu0 0.0
        %3410 = vmatpush1.msra.mxu0 0.0
        %3411 = vmatprep.subr.mxu0 0.0
        %3412 = vmatpush1.msra.mxu0 0.0
        %3413 = vmatprep.subr.mxu0 0.0
        %3414 = vmatpush1.msra.mxu0 0.0
        %3415 = vmatprep.subr.mxu0 0.0
        %3416 = vmatpush1.msra.mxu0 0.0
        %3417 = vmatprep.subr.mxu0 0.0
        %3418 = vmatpush1.msra.mxu0 0.0
        %3419 = vmatprep.subr.mxu0 0.0
        %3420 = vmatpush1.msra.mxu0 0.0
        %3421 = vmatprep.subr.mxu0 0.0
        %3422 = vmatpush1.msra.mxu0 0.0
        %3423 = vmatprep.subr.mxu0 0.0
        %3424 = vmatpush1.msra.mxu0 0.0
        %3425 = vmatprep.subr.mxu0 0.0
        %3426 = vmatpush1.msra.mxu0 0.0
        %3427 = vmatprep.subr.mxu0 0.0
        %3428 = vmatpush1.msra.mxu0 0.0
        %3429 = vmatprep.subr.mxu0 0.0
        %3430 = vmatpush1.msra.mxu0 0.0
        %3431 = vmatprep.subr.mxu0 0.0
        %3432 = vmatpush1.msra.mxu0 0.0
        %3433 = vmatprep.subr.mxu0 0.0
        %3434 = vmatpush1.msra.mxu0 0.0
        %3435 = vmatprep.subr.mxu0 0.0
        %3436 = vmatpush1.msra.mxu0 0.0
        %3437 = vmatprep.subr.mxu0 0.0
        %3438 = vmatpush1.msra.mxu0 0.0
        %3439 = vmatprep.subr.mxu0 0.0
        %3440 = vmatpush1.msra.mxu0 0.0
        %3441 = vmatprep.subr.mxu0 0.0
        %3442 = vmatpush1.msra.mxu0 0.0
        %3443 = vmatprep.subr.mxu0 0.0
        %3444 = vmatpush1.msra.mxu0 0.0
        %3445 = vmatprep.subr.mxu0 0.0
        %3446 = vmatpush1.msra.mxu0 0.0
        %3447 = vmatprep.subr.mxu0 0.0
        %3448 = vmatpush1.msra.mxu0 0.0
        %3449 = vmatprep.subr.mxu0 0.0
        %3450 = vmatpush1.msra.mxu0 0.0
        %3451 = vmatprep.mubr.f32.mxu0 0.0
        %3452 = vmatmul.mubr.f32.gmra.mrb[0].mxu0 %v3385
        %v3453 = vpop.f32.mrb[0].mxu0
        %v3454 = vadd.f32 0.0, %v3453
        %v3455 = vpop.f32.mrb[0].mxu0
        %3456 = vdwg.mxu0
        %3457 = vrot.lane.b32.xlu0 %v678, 40
        %v3458 = vpop.permute.xlu0 %3457
        %v3461 = vsel %vm702, %v3371, 0
        %3463 = vmatprep.subr.mxu0 0.0
        %3464 = vmatpush1.msra.mxu0 %v3458
        %3465 = vmatprep.subr.mxu0 0.0
        %3466 = vmatpush1.msra.mxu0 0.0
        %3467 = vmatprep.subr.mxu0 0.0
        %3468 = vmatpush1.msra.mxu0 0.0
        %3469 = vmatprep.subr.mxu0 0.0
        %3470 = vmatpush1.msra.mxu0 0.0
        %3471 = vmatprep.subr.mxu0 0.0
        %3472 = vmatpush1.msra.mxu0 0.0
        %3473 = vmatprep.subr.mxu0 0.0
        %3474 = vmatpush1.msra.mxu0 0.0
        %3475 = vmatprep.subr.mxu0 0.0
        %3476 = vmatpush1.msra.mxu0 0.0
        %3477 = vmatprep.subr.mxu0 0.0
        %3478 = vmatpush1.msra.mxu0 0.0
        %3479 = vmatprep.subr.mxu0 0.0
        %3480 = vmatpush1.msra.mxu0 0.0
        %3481 = vmatprep.subr.mxu0 0.0
        %3482 = vmatpush1.msra.mxu0 0.0
        %3483 = vmatprep.subr.mxu0 0.0
        %3484 = vmatpush1.msra.mxu0 0.0
        %3485 = vmatprep.subr.mxu0 0.0
        %3486 = vmatpush1.msra.mxu0 0.0
        %3487 = vmatprep.subr.mxu0 0.0
        %3488 = vmatpush1.msra.mxu0 0.0
        %3489 = vmatprep.subr.mxu0 0.0
        %3490 = vmatpush1.msra.mxu0 0.0
        %3491 = vmatprep.subr.mxu0 0.0
        %3492 = vmatpush1.msra.mxu0 0.0
        %3493 = vmatprep.subr.mxu0 0.0
        %3494 = vmatpush1.msra.mxu0 0.0
        %3495 = vmatprep.subr.mxu0 0.0
        %3496 = vmatpush1.msra.mxu0 0.0
        %3497 = vmatprep.subr.mxu0 0.0
        %3498 = vmatpush1.msra.mxu0 0.0
        %3499 = vmatprep.subr.mxu0 0.0
        %3500 = vmatpush1.msra.mxu0 0.0
        %3501 = vmatprep.subr.mxu0 0.0
        %3502 = vmatpush1.msra.mxu0 0.0
        %3503 = vmatprep.subr.mxu0 0.0
        %3504 = vmatpush1.msra.mxu0 0.0
        %3505 = vmatprep.subr.mxu0 0.0
        %3506 = vmatpush1.msra.mxu0 0.0
        %3507 = vmatprep.subr.mxu0 0.0
        %3508 = vmatpush1.msra.mxu0 0.0
        %3509 = vmatprep.subr.mxu0 0.0
        %3510 = vmatpush1.msra.mxu0 0.0
        %3511 = vmatprep.subr.mxu0 0.0
        %3512 = vmatpush1.msra.mxu0 0.0
        %3513 = vmatprep.subr.mxu0 0.0
        %3514 = vmatpush1.msra.mxu0 0.0
        %3515 = vmatprep.subr.mxu0 0.0
        %3516 = vmatpush1.msra.mxu0 0.0
        %3517 = vmatprep.subr.mxu0 0.0
        %3518 = vmatpush1.msra.mxu0 0.0
        %3519 = vmatprep.subr.mxu0 0.0
        %3520 = vmatpush1.msra.mxu0 0.0
        %3521 = vmatprep.subr.mxu0 0.0
        %3522 = vmatpush1.msra.mxu0 0.0
        %3523 = vmatprep.subr.mxu0 0.0
        %3524 = vmatpush1.msra.mxu0 0.0
        %3525 = vmatprep.subr.mxu0 0.0
        %3526 = vmatpush1.msra.mxu0 0.0
        %3527 = vmatprep.mubr.f32.mxu0 0.0
        %3528 = vmatmul.mubr.f32.gmra.mrb[0].mxu0 %v3461
        %v3529 = vpop.f32.mrb[0].mxu0
        %v3530 = vadd.f32 0.0, %v3529
        %v3531 = vpop.f32.mrb[0].mxu0
        %3532 = vdwg.mxu0
        %3533 = vrot.lane.b32.xlu0 %v683, 40
        %v3534 = vpop.permute.xlu0 %3533
        %v3537 = vsel %vm702, %v3373, 0
        %3539 = vmatprep.subr.mxu0 0.0
        %3540 = vmatpush1.msra.mxu0 %v3534
        %3541 = vmatprep.subr.mxu0 0.0
        %3542 = vmatpush1.msra.mxu0 0.0
        %3543 = vmatprep.subr.mxu0 0.0
        %3544 = vmatpush1.msra.mxu0 0.0
        %3545 = vmatprep.subr.mxu0 0.0
        %3546 = vmatpush1.msra.mxu0 0.0
        %3547 = vmatprep.subr.mxu0 0.0
        %3548 = vmatpush1.msra.mxu0 0.0
        %3549 = vmatprep.subr.mxu0 0.0
        %3550 = vmatpush1.msra.mxu0 0.0
        %3551 = vmatprep.subr.mxu0 0.0
        %3552 = vmatpush1.msra.mxu0 0.0
        %3553 = vmatprep.subr.mxu0 0.0
        %3554 = vmatpush1.msra.mxu0 0.0
        %3555 = vmatprep.subr.mxu0 0.0
        %3556 = vmatpush1.msra.mxu0 0.0
        %3557 = vmatprep.subr.mxu0 0.0
        %3558 = vmatpush1.msra.mxu0 0.0
        %3559 = vmatprep.subr.mxu0 0.0
        %3560 = vmatpush1.msra.mxu0 0.0
        %3561 = vmatprep.subr.mxu0 0.0
        %3562 = vmatpush1.msra.mxu0 0.0
        %3563 = vmatprep.subr.mxu0 0.0
        %3564 = vmatpush1.msra.mxu0 0.0
        %3565 = vmatprep.subr.mxu0 0.0
        %3566 = vmatpush1.msra.mxu0 0.0
        %3567 = vmatprep.subr.mxu0 0.0
        %3568 = vmatpush1.msra.mxu0 0.0
        %3569 = vmatprep.subr.mxu0 0.0
        %3570 = vmatpush1.msra.mxu0 0.0
        %3571 = vmatprep.subr.mxu0 0.0
        %3572 = vmatpush1.msra.mxu0 0.0
        %3573 = vmatprep.subr.mxu0 0.0
        %3574 = vmatpush1.msra.mxu0 0.0
        %3575 = vmatprep.subr.mxu0 0.0
        %3576 = vmatpush1.msra.mxu0 0.0
        %3577 = vmatprep.subr.mxu0 0.0
        %3578 = vmatpush1.msra.mxu0 0.0
        %3579 = vmatprep.subr.mxu0 0.0
        %3580 = vmatpush1.msra.mxu0 0.0
        %3581 = vmatprep.subr.mxu0 0.0
        %3582 = vmatpush1.msra.mxu0 0.0
        %3583 = vmatprep.subr.mxu0 0.0
        %3584 = vmatpush1.msra.mxu0 0.0
        %3585 = vmatprep.subr.mxu0 0.0
        %3586 = vmatpush1.msra.mxu0 0.0
        %3587 = vmatprep.subr.mxu0 0.0
        %3588 = vmatpush1.msra.mxu0 0.0
        %3589 = vmatprep.subr.mxu0 0.0
        %3590 = vmatpush1.msra.mxu0 0.0
        %3591 = vmatprep.subr.mxu0 0.0
        %3592 = vmatpush1.msra.mxu0 0.0
        %3593 = vmatprep.subr.mxu0 0.0
        %3594 = vmatpush1.msra.mxu0 0.0
        %3595 = vmatprep.subr.mxu0 0.0
        %3596 = vmatpush1.msra.mxu0 0.0
        %3597 = vmatprep.subr.mxu0 0.0
        %3598 = vmatpush1.msra.mxu0 0.0
        %3599 = vmatprep.subr.mxu0 0.0
        %3600 = vmatpush1.msra.mxu0 0.0
        %3601 = vmatprep.subr.mxu0 0.0
        %3602 = vmatpush1.msra.mxu0 0.0
        %3603 = vmatprep.mubr.f32.mxu0 0.0
        %3604 = vmatmul.mubr.f32.gmra.mrb[0].mxu0 %v3537
        %v3605 = vpop.f32.mrb[0].mxu0
        %v3606 = vadd.f32 0.0, %v3605
        %v3607 = vpop.f32.mrb[0].mxu0
        %3608 = vdwg.mxu0
        %3609 = vrot.lane.b32.xlu0 %v688, 40
        %v3610 = vpop.permute.xlu0 %3609
        %v3613 = vsel %vm702, %v3375, 0
        %3615 = vmatprep.subr.mxu0 0.0
        %3616 = vmatpush1.msra.mxu0 %v3610
        %3617 = vmatprep.subr.mxu0 0.0
        %3618 = vmatpush1.msra.mxu0 0.0
        %3619 = vmatprep.subr.mxu0 0.0
        %3620 = vmatpush1.msra.mxu0 0.0
        %3621 = vmatprep.subr.mxu0 0.0
        %3622 = vmatpush1.msra.mxu0 0.0
        %3623 = vmatprep.subr.mxu0 0.0
        %3624 = vmatpush1.msra.mxu0 0.0
        %3625 = vmatprep.subr.mxu0 0.0
        %3626 = vmatpush1.msra.mxu0 0.0
        %3627 = vmatprep.subr.mxu0 0.0
        %3628 = vmatpush1.msra.mxu0 0.0
        %3629 = vmatprep.subr.mxu0 0.0
        %3630 = vmatpush1.msra.mxu0 0.0
        %3631 = vmatprep.subr.mxu0 0.0
        %3632 = vmatpush1.msra.mxu0 0.0
        %3633 = vmatprep.subr.mxu0 0.0
        %3634 = vmatpush1.msra.mxu0 0.0
        %3635 = vmatprep.subr.mxu0 0.0
        %3636 = vmatpush1.msra.mxu0 0.0
        %3637 = vmatprep.subr.mxu0 0.0
        %3638 = vmatpush1.msra.mxu0 0.0
        %3639 = vmatprep.subr.mxu0 0.0
        %3640 = vmatpush1.msra.mxu0 0.0
        %3641 = vmatprep.subr.mxu0 0.0
        %3642 = vmatpush1.msra.mxu0 0.0
        %3643 = vmatprep.subr.mxu0 0.0
        %3644 = vmatpush1.msra.mxu0 0.0
        %3645 = vmatprep.subr.mxu0 0.0
        %3646 = vmatpush1.msra.mxu0 0.0
        %3647 = vmatprep.subr.mxu0 0.0
        %3648 = vmatpush1.msra.mxu0 0.0
        %3649 = vmatprep.subr.mxu0 0.0
        %3650 = vmatpush1.msra.mxu0 0.0
        %3651 = vmatprep.subr.mxu0 0.0
        %3652 = vmatpush1.msra.mxu0 0.0
        %3653 = vmatprep.subr.mxu0 0.0
        %3654 = vmatpush1.msra.mxu0 0.0
        %3655 = vmatprep.subr.mxu0 0.0
        %3656 = vmatpush1.msra.mxu0 0.0
        %3657 = vmatprep.subr.mxu0 0.0
        %3658 = vmatpush1.msra.mxu0 0.0
        %3659 = vmatprep.subr.mxu0 0.0
        %3660 = vmatpush1.msra.mxu0 0.0
        %3661 = vmatprep.subr.mxu0 0.0
        %3662 = vmatpush1.msra.mxu0 0.0
        %3663 = vmatprep.subr.mxu0 0.0
        %3664 = vmatpush1.msra.mxu0 0.0
        %3665 = vmatprep.subr.mxu0 0.0
        %3666 = vmatpush1.msra.mxu0 0.0
        %3667 = vmatprep.subr.mxu0 0.0
        %3668 = vmatpush1.msra.mxu0 0.0
        %3669 = vmatprep.subr.mxu0 0.0
        %3670 = vmatpush1.msra.mxu0 0.0
        %3671 = vmatprep.subr.mxu0 0.0
        %3672 = vmatpush1.msra.mxu0 0.0
        %3673 = vmatprep.subr.mxu0 0.0
        %3674 = vmatpush1.msra.mxu0 0.0
        %3675 = vmatprep.subr.mxu0 0.0
        %3676 = vmatpush1.msra.mxu0 0.0
        %3677 = vmatprep.subr.mxu0 0.0
        %3678 = vmatpush1.msra.mxu0 0.0
        %3679 = vmatprep.mubr.f32.mxu0 0.0
        %3680 = vmatmul.mubr.f32.gmra.mrb[0].mxu0 %v3613
        %v3681 = vpop.f32.mrb[0].mxu0
        %v3682 = vadd.f32 0.0, %v3681
        %v3683 = vpop.f32.mrb[0].mxu0
        %3684 = vdwg.mxu0
        %v3685 = vld [vmem:[#allocation5 + $0x18] sm:$0xff]
        %v3687 = vsel %vm702, %v3454, 0
        %v3690 = vsel %vm702, %v3530, 0
        %v3693 = vsel %vm702, %v3606, 0
        %v3696 = vsel %vm702, %v3682, 0
        %3698 = vmatprep.subr.mxu0 0.0
        %3699 = vmatpush1.msra.mxu0 %v3685
        %3700 = vmatprep.subr.mxu0 0.0
        %3701 = vmatpush1.msra.mxu0 0.0
        %3702 = vmatprep.subr.mxu0 0.0
        %3703 = vmatpush1.msra.mxu0 0.0
        %3704 = vmatprep.subr.mxu0 0.0
        %3705 = vmatpush1.msra.mxu0 0.0
        %3706 = vmatprep.subr.mxu0 0.0
        %3707 = vmatpush1.msra.mxu0 0.0
        %3708 = vmatprep.subr.mxu0 0.0
        %3709 = vmatpush1.msra.mxu0 0.0
        %3710 = vmatprep.subr.mxu0 0.0
        %3711 = vmatpush1.msra.mxu0 0.0
        %3712 = vmatprep.subr.mxu0 0.0
        %3713 = vmatpush1.msra.mxu0 0.0
        %3714 = vmatprep.subr.mxu0 0.0
        %3715 = vmatpush1.msra.mxu0 0.0
        %3716 = vmatprep.subr.mxu0 0.0
        %3717 = vmatpush1.msra.mxu0 0.0
        %3718 = vmatprep.subr.mxu0 0.0
        %3719 = vmatpush1.msra.mxu0 0.0
        %3720 = vmatprep.subr.mxu0 0.0
        %3721 = vmatpush1.msra.mxu0 0.0
        %3722 = vmatprep.subr.mxu0 0.0
        %3723 = vmatpush1.msra.mxu0 0.0
        %3724 = vmatprep.subr.mxu0 0.0
        %3725 = vmatpush1.msra.mxu0 0.0
        %3726 = vmatprep.subr.mxu0 0.0
        %3727 = vmatpush1.msra.mxu0 0.0
        %3728 = vmatprep.subr.mxu0 0.0
        %3729 = vmatpush1.msra.mxu0 0.0
        %3730 = vmatprep.subr.mxu0 0.0
        %3731 = vmatpush1.msra.mxu0 0.0
        %3732 = vmatprep.subr.mxu0 0.0
        %3733 = vmatpush1.msra.mxu0 0.0
        %3734 = vmatprep.subr.mxu0 0.0
        %3735 = vmatpush1.msra.mxu0 0.0
        %3736 = vmatprep.subr.mxu0 0.0
        %3737 = vmatpush1.msra.mxu0 0.0
        %3738 = vmatprep.subr.mxu0 0.0
        %3739 = vmatpush1.msra.mxu0 0.0
        %3740 = vmatprep.subr.mxu0 0.0
        %3741 = vmatpush1.msra.mxu0 0.0
        %3742 = vmatprep.subr.mxu0 0.0
        %3743 = vmatpush1.msra.mxu0 0.0
        %3744 = vmatprep.subr.mxu0 0.0
        %3745 = vmatpush1.msra.mxu0 0.0
        %3746 = vmatprep.subr.mxu0 0.0
        %3747 = vmatpush1.msra.mxu0 0.0
        %3748 = vmatprep.subr.mxu0 0.0
        %3749 = vmatpush1.msra.mxu0 0.0
        %3750 = vmatprep.subr.mxu0 0.0
        %3751 = vmatpush1.msra.mxu0 0.0
        %3752 = vmatprep.subr.mxu0 0.0
        %3753 = vmatpush1.msra.mxu0 0.0
        %3754 = vmatprep.subr.mxu0 0.0
        %3755 = vmatpush1.msra.mxu0 0.0
        %3756 = vmatprep.subr.mxu0 0.0
        %3757 = vmatpush1.msra.mxu0 0.0
        %3758 = vmatprep.subr.mxu0 0.0
        %3759 = vmatpush1.msra.mxu0 0.0
        %3760 = vmatprep.subr.mxu0 0.0
        %3761 = vmatpush1.msra.mxu0 0.0
        %3762 = vmatprep.mubr.f32.mxu0 0.0
        %3763 = vmatmul.mubr.f32.gmra.mrb[0].mxu0 %v3687
        %v3764 = vpop.f32.mrb[0].mxu0
        %v3765 = vadd.f32 0.0, %v3764
        %v3766 = vpop.f32.mrb[0].mxu0
        %3767 = vmatprep.mubr.f32.mxu0 0.0
        %3768 = vmatmul.mubr.f32.gmra.mrb[0].mxu0 %v3690
        %v3769 = vpop.f32.mrb[0].mxu0
        %v3770 = vadd.f32 0.0, %v3769
        %v3771 = vpop.f32.mrb[0].mxu0
        %3772 = vmatprep.mubr.f32.mxu0 0.0
        %3773 = vmatmul.mubr.f32.gmra.mrb[0].mxu0 %v3693
        %v3774 = vpop.f32.mrb[0].mxu0
        %v3775 = vadd.f32 0.0, %v3774
        %v3776 = vpop.f32.mrb[0].mxu0
        %3777 = vmatprep.mubr.f32.mxu0 0.0
        %3778 = vmatmul.mubr.f32.gmra.mrb[0].mxu0 %v3696
        %v3779 = vpop.f32.mrb[0].mxu0
        %v3780 = vadd.f32 0.0, %v3779
        %v3781 = vpop.f32.mrb[0].mxu0
        %3782 = vdwg.mxu0
        %v3783 = vadd.f32 %v3008, %v3765
        %v3784 = vadd.f32 %v3009, %v3770
        %v3785 = vadd.f32 %v3010, %v3775
        %v3786 = vadd.f32 %v3011, %v3780
        %v3787 = vld [vmem:[%s5] sm:$0x1]
        %v3789 = vlaneseq
        %v3790 = vshrl.u32 %v3789, 7
        %v3791 = vsub.s32 0, %v3790
        %v3792 = vrot.slane %v3787, %v3791
        %v3794 = vadd.f32 %v3783, %v3792
        %v3795 = vadd.f32 %v3784, %v3792
        %v3796 = vadd.f32 %v3785, %v3792
        %v3797 = vadd.f32 %v3786, %v3792
        %v3798 = vadd.f32 %v3794, %v578
        %v3799 = vadd.f32 %v3795, %v579
        %v3800 = vadd.f32 %v3796, %v580
        %v3801 = vadd.f32 %v3797, %v581
        %v3802 = vsel %vm593, %v3798, 0.0
        %3803 = vadd.xlane.f32.xlu0 %v3802
        %v3804 = vpop.xlane.xlu0 %3803
        %v3805 = vsel %vm593, %v3799, 0.0
        %3806 = vadd.xlane.f32.xlu0 %v3805
        %v3807 = vpop.xlane.xlu0 %3806
        %v3808 = vsel %vm593, %v3800, 0.0
        %3809 = vadd.xlane.f32.xlu0 %v3808
        %v3810 = vpop.xlane.xlu0 %3809
        %v3811 = vsel %vm593, %v3801, 0.0
        %3812 = vadd.xlane.f32.xlu0 %v3811
        %v3813 = vpop.xlane.xlu0 %3812
        %v3814 = vrcp.pop 32.0
        %v3815 = vmul.f32 %v3804, %v3814
        %v3816 = vmul.f32 %v3807, %v3814
        %v3817 = vmul.f32 %v3810, %v3814
        %v3818 = vmul.f32 %v3813, %v3814
        %v3819 = vsub.f32 %v3798, %v3815
        %v3820 = vsub.f32 %v3799, %v3816
        %v3821 = vsub.f32 %v3800, %v3817
        %v3822 = vsub.f32 %v3801, %v3818
        %v3823 = vmul.f32 %v3819, %v3819
        %v3824 = vmul.f32 %v3820, %v3820
        %v3825 = vmul.f32 %v3821, %v3821
        %v3826 = vmul.f32 %v3822, %v3822
        %v3827 = vsel %vm593, %v3823, 0.0
        %3828 = vadd.xlane.f32.xlu0 %v3827
        %v3829 = vpop.xlane.xlu0 %3828
        %v3830 = vsel %vm593, %v3824, 0.0
        %3831 = vadd.xlane.f32.xlu0 %v3830
        %v3832 = vpop.xlane.xlu0 %3831
        %v3833 = vsel %vm593, %v3825, 0.0
        %3834 = vadd.xlane.f32.xlu0 %v3833
        %v3835 = vpop.xlane.xlu0 %3834
        %v3836 = vsel %vm593, %v3826, 0.0
        %3837 = vadd.xlane.f32.xlu0 %v3836
        %v3838 = vpop.xlane.xlu0 %3837
        %v3839 = vmul.f32 %v3829, %v3814
        %v3840 = vmul.f32 %v3832, %v3814
        %v3841 = vmul.f32 %v3835, %v3814
        %v3842 = vmul.f32 %v3838, %v3814
        %v3843 = vadd.f32 %v3839, 1e-05
        %v3844 = vadd.f32 %v3840, 1e-05
        %v3845 = vadd.f32 %v3841, 1e-05
        %v3846 = vadd.f32 %v3842, 1e-05
        %v3847 = vrsqrt.pop %v3843
        %v3848 = vrsqrt.pop %v3844
        %v3849 = vrsqrt.pop %v3845
        %v3850 = vrsqrt.pop %v3846
        %v3851 = vmul.f32 %v3819, %v3847
        %v3852 = vmul.f32 %v3820, %v3848
        %v3853 = vmul.f32 %v3821, %v3849
        %v3854 = vmul.f32 %v3822, %v3850
        %v3855 = vld [vmem:[%s6] sm:$0x1]
        %v3857 = vlaneseq
        %v3858 = vshrl.u32 %v3857, 7
        %v3859 = vsub.s32 0, %v3858
        %v3860 = vrot.slane %v3855, %v3859
        %v3862 = vmul.f32 %v3851, %v3860
        %v3863 = vmul.f32 %v3852, %v3860
        %v3864 = vmul.f32 %v3853, %v3860
        %v3865 = vmul.f32 %v3854, %v3860
        %v3866 = vld [vmem:[%s7] sm:$0x1]
        %v3868 = vlaneseq
        %v3869 = vshrl.u32 %v3868, 7
        %v3870 = vsub.s32 0, %v3869
        %v3871 = vrot.slane %v3866, %v3870
        %v3873 = vadd.f32 %v3862, %v3871
        %v3874 = vadd.f32 %v3863, %v3871
        %v3875 = vadd.f32 %v3864, %v3871
        %v3876 = vadd.f32 %v3865, %v3871
        %v3877 = vld [vmem:[#allocation7] sm:$0xff]
        %v3878 = vld [vmem:[#allocation7 + $0x8] sm:$0xff]
        %v3879 = vld [vmem:[#allocation7 + $0x10] sm:$0xff]
        %v3880 = vld [vmem:[#allocation7 + $0x18] sm:$0xff]
        %v3881 = vld [vmem:[%s9] sm:$0x1]
        %v3883 = vlaneseq
        %v3884 = vshrl.u32 %v3883, 7
        %v3885 = vsub.s32 0, %v3884
        %v3886 = vrot.slane %v3881, %v3885
        %v3889 = vsel %vm593, %v3873, 0
        %v3892 = vsel %vm593, %v3874, 0
        %v3895 = vsel %vm593, %v3875, 0
        %v3898 = vsel %vm593, %v3876, 0
        %3900 = vmatprep.subr.mxu0 0.0
        %3901 = vmatpush1.msra.mxu0 %v3877
        %3902 = vmatprep.subr.mxu0 0.0
        %3903 = vmatpush1.msra.mxu0 %v3878
        %3904 = vmatprep.subr.mxu0 0.0
        %3905 = vmatpush1.msra.mxu0 %v3879
        %3906 = vmatprep.subr.mxu0 0.0
        %3907 = vmatpush1.msra.mxu0 %v3880
        %3908 = vmatprep.subr.mxu0 0.0
        %3909 = vmatpush1.msra.mxu0 0.0
        %3910 = vmatprep.subr.mxu0 0.0
        %3911 = vmatpush1.msra.mxu0 0.0
        %3912 = vmatprep.subr.mxu0 0.0
        %3913 = vmatpush1.msra.mxu0 0.0
        %3914 = vmatprep.subr.mxu0 0.0
        %3915 = vmatpush1.msra.mxu0 0.0
        %3916 = vmatprep.subr.mxu0 0.0
        %3917 = vmatpush1.msra.mxu0 0.0
        %3918 = vmatprep.subr.mxu0 0.0
        %3919 = vmatpush1.msra.mxu0 0.0
        %3920 = vmatprep.subr.mxu0 0.0
        %3921 = vmatpush1.msra.mxu0 0.0
        %3922 = vmatprep.subr.mxu0 0.0
        %3923 = vmatpush1.msra.mxu0 0.0
        %3924 = vmatprep.subr.mxu0 0.0
        %3925 = vmatpush1.msra.mxu0 0.0
        %3926 = vmatprep.subr.mxu0 0.0
        %3927 = vmatpush1.msra.mxu0 0.0
        %3928 = vmatprep.subr.mxu0 0.0
        %3929 = vmatpush1.msra.mxu0 0.0
        %3930 = vmatprep.subr.mxu0 0.0
        %3931 = vmatpush1.msra.mxu0 0.0
        %3932 = vmatprep.subr.mxu0 0.0
        %3933 = vmatpush1.msra.mxu0 0.0
        %3934 = vmatprep.subr.mxu0 0.0
        %3935 = vmatpush1.msra.mxu0 0.0
        %3936 = vmatprep.subr.mxu0 0.0
        %3937 = vmatpush1.msra.mxu0 0.0
        %3938 = vmatprep.subr.mxu0 0.0
        %3939 = vmatpush1.msra.mxu0 0.0
        %3940 = vmatprep.subr.mxu0 0.0
        %3941 = vmatpush1.msra.mxu0 0.0
        %3942 = vmatprep.subr.mxu0 0.0
        %3943 = vmatpush1.msra.mxu0 0.0
        %3944 = vmatprep.subr.mxu0 0.0
        %3945 = vmatpush1.msra.mxu0 0.0
        %3946 = vmatprep.subr.mxu0 0.0
        %3947 = vmatpush1.msra.mxu0 0.0
        %3948 = vmatprep.subr.mxu0 0.0
        %3949 = vmatpush1.msra.mxu0 0.0
        %3950 = vmatprep.subr.mxu0 0.0
        %3951 = vmatpush1.msra.mxu0 0.0
        %3952 = vmatprep.subr.mxu0 0.0
        %3953 = vmatpush1.msra.mxu0 0.0
        %3954 = vmatprep.subr.mxu0 0.0
        %3955 = vmatpush1.msra.mxu0 0.0
        %3956 = vmatprep.subr.mxu0 0.0
        %3957 = vmatpush1.msra.mxu0 0.0
        %3958 = vmatprep.subr.mxu0 0.0
        %3959 = vmatpush1.msra.mxu0 0.0
        %3960 = vmatprep.subr.mxu0 0.0
        %3961 = vmatpush1.msra.mxu0 0.0
        %3962 = vmatprep.subr.mxu0 0.0
        %3963 = vmatpush1.msra.mxu0 0.0
        %3964 = vmatprep.mubr.f32.mxu0 0.0
        %3965 = vmatmul.mubr.f32.gmra.mrb[0].mxu0 %v3889
        %v3966 = vpop.f32.mrb[0].mxu0
        %v3967 = vadd.f32 %v3886, %v3966
        %v3968 = vpop.f32.mrb[0].mxu0
        %3969 = vmatprep.mubr.f32.mxu0 0.0
        %3970 = vmatmul.mubr.f32.gmra.mrb[0].mxu0 %v3892
        %v3971 = vpop.f32.mrb[0].mxu0
        %v3972 = vadd.f32 %v3886, %v3971
        %v3973 = vpop.f32.mrb[0].mxu0
        %3974 = vmatprep.mubr.f32.mxu0 0.0
        %3975 = vmatmul.mubr.f32.gmra.mrb[0].mxu0 %v3895
        %v3976 = vpop.f32.mrb[0].mxu0
        %v3977 = vadd.f32 %v3886, %v3976
        %v3978 = vpop.f32.mrb[0].mxu0
        %3979 = vmatprep.mubr.f32.mxu0 0.0
        %3980 = vmatmul.mubr.f32.gmra.mrb[0].mxu0 %v3898
        %v3981 = vpop.f32.mrb[0].mxu0
        %v3982 = vadd.f32 %v3886, %v3981
        %v3983 = vpop.f32.mrb[0].mxu0
        %3984 = vdwg.mxu0
        %v3985 = vmax.f32 %v3967, 0.0
        %v3986 = vmax.f32 %v3972, 0.0
        %v3987 = vmax.f32 %v3977, 0.0
        %v3988 = vmax.f32 %v3982, 0.0
        %v3989 = vld [vmem:[%s10] sm:$0xff]
        %v3990 = vld [vmem:[%s10 + $0x8] sm:$0xff]
        %v3991 = vld [vmem:[%s10 + $0x10] sm:$0xff]
        %v3992 = vld [vmem:[%s10 + $0x18] sm:$0xff]
        %v3993 = vld [vmem:[%s10 + $0x20] sm:$0xff]
        %v3994 = vld [vmem:[%s10 + $0x28] sm:$0xff]
        %v3995 = vld [vmem:[%s10 + $0x30] sm:$0xff]
        %v3996 = vld [vmem:[%s10 + $0x38] sm:$0xff]
        %v3997 = vld [vmem:[%s11] sm:$0x1]
        %v3999 = vlaneseq
        %v4000 = vshrl.u32 %v3999, 7
        %v4001 = vsub.s32 0, %v4000
        %v4002 = vrot.slane %v3997, %v4001
        %vm4004 = vcmask 523264
        %v4006 = vsel %vm4004, %v3985, 0
        %v4009 = vsel %vm4004, %v3986, 0
        %v4012 = vsel %vm4004, %v3987, 0
        %v4015 = vsel %vm4004, %v3988, 0
        %4017 = vmatprep.subr.mxu0 0.0
        %4018 = vmatpush1.msra.mxu0 %v3989
        %4019 = vmatprep.subr.mxu0 0.0
        %4020 = vmatpush1.msra.mxu0 %v3990
        %4021 = vmatprep.subr.mxu0 0.0
        %4022 = vmatpush1.msra.mxu0 %v3991
        %4023 = vmatprep.subr.mxu0 0.0
        %4024 = vmatpush1.msra.mxu0 %v3992
        %4025 = vmatprep.subr.mxu0 0.0
        %4026 = vmatpush1.msra.mxu0 %v3993
        %4027 = vmatprep.subr.mxu0 0.0
        %4028 = vmatpush1.msra.mxu0 %v3994
        %4029 = vmatprep.subr.mxu0 0.0
        %4030 = vmatpush1.msra.mxu0 %v3995
        %4031 = vmatprep.subr.mxu0 0.0
        %4032 = vmatpush1.msra.mxu0 %v3996
        %4033 = vmatprep.subr.mxu0 0.0
        %4034 = vmatpush1.msra.mxu0 0.0
        %4035 = vmatprep.subr.mxu0 0.0
        %4036 = vmatpush1.msra.mxu0 0.0
        %4037 = vmatprep.subr.mxu0 0.0
        %4038 = vmatpush1.msra.mxu0 0.0
        %4039 = vmatprep.subr.mxu0 0.0
        %4040 = vmatpush1.msra.mxu0 0.0
        %4041 = vmatprep.subr.mxu0 0.0
        %4042 = vmatpush1.msra.mxu0 0.0
        %4043 = vmatprep.subr.mxu0 0.0
        %4044 = vmatpush1.msra.mxu0 0.0
        %4045 = vmatprep.subr.mxu0 0.0
        %4046 = vmatpush1.msra.mxu0 0.0
        %4047 = vmatprep.subr.mxu0 0.0
        %4048 = vmatpush1.msra.mxu0 0.0
        %4049 = vmatprep.subr.mxu0 0.0
        %4050 = vmatpush1.msra.mxu0 0.0
        %4051 = vmatprep.subr.mxu0 0.0
        %4052 = vmatpush1.msra.mxu0 0.0
        %4053 = vmatprep.subr.mxu0 0.0
        %4054 = vmatpush1.msra.mxu0 0.0
        %4055 = vmatprep.subr.mxu0 0.0
        %4056 = vmatpush1.msra.mxu0 0.0
        %4057 = vmatprep.subr.mxu0 0.0
        %4058 = vmatpush1.msra.mxu0 0.0
        %4059 = vmatprep.subr.mxu0 0.0
        %4060 = vmatpush1.msra.mxu0 0.0
        %4061 = vmatprep.subr.mxu0 0.0
        %4062 = vmatpush1.msra.mxu0 0.0
        %4063 = vmatprep.subr.mxu0 0.0
        %4064 = vmatpush1.msra.mxu0 0.0
        %4065 = vmatprep.subr.mxu0 0.0
        %4066 = vmatpush1.msra.mxu0 0.0
        %4067 = vmatprep.subr.mxu0 0.0
        %4068 = vmatpush1.msra.mxu0 0.0
        %4069 = vmatprep.subr.mxu0 0.0
        %4070 = vmatpush1.msra.mxu0 0.0
        %4071 = vmatprep.subr.mxu0 0.0
        %4072 = vmatpush1.msra.mxu0 0.0
        %4073 = vmatprep.subr.mxu0 0.0
        %4074 = vmatpush1.msra.mxu0 0.0
        %4075 = vmatprep.subr.mxu0 0.0
        %4076 = vmatpush1.msra.mxu0 0.0
        %4077 = vmatprep.subr.mxu0 0.0
        %4078 = vmatpush1.msra.mxu0 0.0
        %4079 = vmatprep.subr.mxu0 0.0
        %4080 = vmatpush1.msra.mxu0 0.0
        %4081 = vmatprep.mubr.f32.mxu0 0.0
        %4082 = vmatmul.mubr.f32.gmra.mrb[0].mxu0 %v4006
        %v4083 = vpop.f32.mrb[0].mxu0
        %v4084 = vadd.f32 %v4002, %v4083
        %v4085 = vpop.f32.mrb[0].mxu0
        %4086 = vmatprep.mubr.f32.mxu0 0.0
        %4087 = vmatmul.mubr.f32.gmra.mrb[0].mxu0 %v4009
        %v4088 = vpop.f32.mrb[0].mxu0
        %v4089 = vadd.f32 %v4002, %v4088
        %v4090 = vpop.f32.mrb[0].mxu0
        %4091 = vmatprep.mubr.f32.mxu0 0.0
        %4092 = vmatmul.mubr.f32.gmra.mrb[0].mxu0 %v4012
        %v4093 = vpop.f32.mrb[0].mxu0
        %v4094 = vadd.f32 %v4002, %v4093
        %v4095 = vpop.f32.mrb[0].mxu0
        %4096 = vmatprep.mubr.f32.mxu0 0.0
        %4097 = vmatmul.mubr.f32.gmra.mrb[0].mxu0 %v4015
        %v4098 = vpop.f32.mrb[0].mxu0
        %v4099 = vadd.f32 %v4002, %v4098
        %v4100 = vpop.f32.mrb[0].mxu0
        %4101 = vdwg.mxu0
        %v4102 = vadd.f32 %v4084, %v3873
        %v4103 = vadd.f32 %v4089, %v3874
        %v4104 = vadd.f32 %v4094, %v3875
        %v4105 = vadd.f32 %v4099, %v3876
        %v4106 = vsel %vm593, %v4102, 0.0
        %4107 = vadd.xlane.f32.xlu0 %v4106
        %v4108 = vpop.xlane.xlu0 %4107
        %v4109 = vsel %vm593, %v4103, 0.0
        %4110 = vadd.xlane.f32.xlu0 %v4109
        %v4111 = vpop.xlane.xlu0 %4110
        %v4112 = vsel %vm593, %v4104, 0.0
        %4113 = vadd.xlane.f32.xlu0 %v4112
        %v4114 = vpop.xlane.xlu0 %4113
        %v4115 = vsel %vm593, %v4105, 0.0
        %4116 = vadd.xlane.f32.xlu0 %v4115
        %v4117 = vpop.xlane.xlu0 %4116
        %v4118 = vmul.f32 %v4108, %v3814
        %v4119 = vmul.f32 %v4111, %v3814
        %v4120 = vmul.f32 %v4114, %v3814
        %v4121 = vmul.f32 %v4117, %v3814
        %v4122 = vsub.f32 %v4102, %v4118
        %v4123 = vsub.f32 %v4103, %v4119
        %v4124 = vsub.f32 %v4104, %v4120
        %v4125 = vsub.f32 %v4105, %v4121
        %v4126 = vmul.f32 %v4122, %v4122
        %v4127 = vmul.f32 %v4123, %v4123
        %v4128 = vmul.f32 %v4124, %v4124
        %v4129 = vmul.f32 %v4125, %v4125
        %v4130 = vsel %vm593, %v4126, 0.0
        %4131 = vadd.xlane.f32.xlu0 %v4130
        %v4132 = vpop.xlane.xlu0 %4131
        %v4133 = vsel %vm593, %v4127, 0.0
        %4134 = vadd.xlane.f32.xlu0 %v4133
        %v4135 = vpop.xlane.xlu0 %4134
        %v4136 = vsel %vm593, %v4128, 0.0
        %4137 = vadd.xlane.f32.xlu0 %v4136
        %v4138 = vpop.xlane.xlu0 %4137
        %v4139 = vsel %vm593, %v4129, 0.0
        %4140 = vadd.xlane.f32.xlu0 %v4139
        %v4141 = vpop.xlane.xlu0 %4140
        %v4142 = vmul.f32 %v4132, %v3814
        %v4143 = vmul.f32 %v4135, %v3814
        %v4144 = vmul.f32 %v4138, %v3814
        %v4145 = vmul.f32 %v4141, %v3814
        %v4146 = vadd.f32 %v4142, 1e-05
        %v4147 = vadd.f32 %v4143, 1e-05
        %v4148 = vadd.f32 %v4144, 1e-05
        %v4149 = vadd.f32 %v4145, 1e-05
        %v4150 = vrsqrt.pop %v4146
        %v4151 = vrsqrt.pop %v4147
        %v4152 = vrsqrt.pop %v4148
        %v4153 = vrsqrt.pop %v4149
        %v4154 = vmul.f32 %v4122, %v4150
        %v4155 = vmul.f32 %v4123, %v4151
        %v4156 = vmul.f32 %v4124, %v4152
        %v4157 = vmul.f32 %v4125, %v4153
        %v4158 = vld [vmem:[%s12] sm:$0x1]
        %v4160 = vlaneseq
        %v4161 = vshrl.u32 %v4160, 7
        %v4162 = vsub.s32 0, %v4161
        %v4163 = vrot.slane %v4158, %v4162
        %v4165 = vmul.f32 %v4154, %v4163
        %v4166 = vmul.f32 %v4155, %v4163
        %v4167 = vmul.f32 %v4156, %v4163
        %v4168 = vmul.f32 %v4157, %v4163
        %v4169 = vld [vmem:[%s13] sm:$0x1]
        %v4171 = vlaneseq
        %v4172 = vshrl.u32 %v4171, 7
        %v4173 = vsub.s32 0, %v4172
        %v4174 = vrot.slane %v4169, %v4173
        %v4176 = vadd.f32 %v4165, %v4174
        %v4177 = vadd.f32 %v4166, %v4174
        %v4178 = vadd.f32 %v4167, %v4174
        %v4179 = vadd.f32 %v4168, %v4174
        %4180 = vst.msk [vmem:[%s561] sm:$0xff] %vm593, %v4176
        %4181 = vst.msk [vmem:[%s561 + $0x8] sm:$0xff] %vm593, %v4177
        %4182 = vst.msk [vmem:[%s561 + $0x10] sm:$0xff] %vm593, %v4178
        %4183 = vst.msk [vmem:[%s561 + $0x18] sm:$0xff] %vm593, %v4179
        %s4184 = sand.u32 %s349, 1
        %s4185 = scalar_lea.sflag [#allocation4], %s4184
        %s4186 = sand.u32 %s349, 1
        %s4187 = smul.addr %s4186, 32
        %s4188 = scalar_lea.vmem [#allocation8], %s4187
        %s4189 = sand.u32 %s375, 1
        %s4190 = scalar_lea.sflag [#allocation10], %s4189
        %s4191 = sand.u32 %s375, 1
        %s4192 = smul.addr %s4191, 128
        %s4193 = scalar_lea.vmem [#allocation9], %s4192
        // Predicated region
        $region89: #{tpu_custom_call.1} parent=75 // pred_check
          %p4194 = pneg %p359
        $region90: #{tpu_custom_call.1} parent=75 // pred_check_branch
          %4196 = sbr.rel (%p4194) target = $region92
        $region91: #{tpu_custom_call.1} parent=75 // pred_region
          %s4197 = smul.u32 4, %s37
          %s4199 = ssub.s32 512, 512
          %4200 = vsyncadd %s4185, %s4199
          %s4201 = smul.addr %s4197, 128
          %s4202 = scalar_lea.hbm %s14, %s4201
          %s4203 = sshll.u32 %s4188, 4
          %s4204 = int_to_ptr.vmem [resolvable:$true] %s4203
          %4209 = dma.vmem_to_hbm [thread:$0]  %s4204, 512, %s4202, %s4185, 128, 128, 8
        $region92: #{tpu_custom_call.1} parent=75 // pred_fallthru
          _
        // Predicated region
        $region93: #{tpu_custom_call.1} parent=75 // pred_check
          %p4210 = pneg %p385
        $region94: #{tpu_custom_call.1} parent=75 // pred_check_branch
          %4212 = sbr.rel (%p4210) target = $region96
        $region95: #{tpu_custom_call.1} parent=75 // pred_region
          %s4213 = smul.u32 4, %s37
          %s4215 = ssub.s32 2048, 2048
          %4216 = vsyncadd %s4190, %s4215
          %s4217 = smul.addr %s4213, 4
          %s4218 = smul.addr %s4217, 128
          %s4219 = scalar_lea.hbm %s15, %s4218
          %s4220 = sshll.u32 %s4193, 4
          %s4221 = int_to_ptr.vmem [resolvable:$true] %s4220
          %4226 = dma.vmem_to_hbm [thread:$0]  %s4221, 2048, %s4219, %s4190, 128, 128, 8
        $region96: #{tpu_custom_call.1} parent=75 // pred_fallthru
          _
      $region76: #{tpu_custom_call.1} parent=5 // pred_fallthru
        _
      %p4227 = scmp.le.s32.totalorder 2, %s32
      // Predicated region
      $region97: #{tpu_custom_call.1} parent=5 // pred_check
        %p4228 = pneg %p4227
      $region98: #{tpu_custom_call.1} parent=5 // pred_check_branch
        %4230 = sbr.rel (%p4228) target = $region100
      $region99: #{tpu_custom_call.1} parent=5 // pred_region
        %s4231 = ssub.s32 %s32, 2
        // Predicated region
        $region101: #{tpu_custom_call.1} parent=99 // pred_check
          %p4232 = pneg %p365
        $region102: #{tpu_custom_call.1} parent=99 // pred_check_branch
          %4234 = sbr.rel (%p4232) target = $region104
        $region103: #{tpu_custom_call.1} parent=99 // pred_region
          %s4235 = sand.u32 %s350, 1
          %s4236 = scalar_lea.sflag [#allocation4], %s4235
          %s4237 = sand.u32 %s350, 1
          %s4238 = smul.addr %s4237, 32
          %s4239 = scalar_lea.vmem [#allocation8], %s4238
          %4240 = dma.done %s4236, 512
        $region104: #{tpu_custom_call.1} parent=99 // pred_fallthru
          _
        // Predicated region
        $region105: #{tpu_custom_call.1} parent=99 // pred_check
          %p4241 = pneg %p391
        $region106: #{tpu_custom_call.1} parent=99 // pred_check_branch
          %4243 = sbr.rel (%p4241) target = $region108
        $region107: #{tpu_custom_call.1} parent=99 // pred_region
          %s4244 = sand.u32 %s376, 1
          %s4245 = scalar_lea.sflag [#allocation10], %s4244
          %s4246 = sand.u32 %s376, 1
          %s4247 = smul.addr %s4246, 128
          %s4248 = scalar_lea.vmem [#allocation9], %s4247
          %4249 = dma.done %s4245, 2048
        $region108: #{tpu_custom_call.1} parent=99 // pred_fallthru
          _
      $region100: #{tpu_custom_call.1} parent=5 // pred_fallthru
        _
    $region6: #{tpu_custom_call.1} parent=1 // loop_footer
      %s36 = sadd.s32 1, %s32
    $region7: #{tpu_custom_call.1} parent=1 // loop_footer_branch
      %31 = sbr.rel target = $region3
    $region8: #{tpu_custom_call.1} parent=1 // loop_exit
      _
    %4250 = vsyncpa [#allocation3], 1
    %s4251 = scalar_lea.sflag [#allocation3], 1
    %4252 = vsyncpa %s4251, 1
    %4253 = vsyncpa [#allocation6], 1
    %4254 = vsyncpa [#allocation4], 1
    %s4255 = scalar_lea.sflag [#allocation4], 1
    %4256 = vsyncpa %s4255, 1
    %4257 = vsyncpa [#allocation10], 1
    %s4258 = scalar_lea.sflag [#allocation10], 1
    %4259 = vsyncpa %s4258, 1

</llo_original>
